<compile_context>
chip_gen: v6e
topology: v6e:2x2x1
jax: 0.10.0
libtpu: 0.0.40
codegen_flags: <defaults>
</compile_context>

<pallas_src>
import functools

import jax
import jax.numpy as jnp
from jax import lax
from jax.experimental import pallas as pl
from jax.experimental.pallas import tpu as pltpu


# ----------------------------------------------------------------------------
# In-kernel conv tile (shared by both paths)
# ----------------------------------------------------------------------------
def _conv_tile(x_ref, w_ref, *, t_oh, ow, stride, kh, kw):
    """Conv for one (batch, OH-tile) grid point.

    x_ref : (1, H, W, Cin) bf16 VMEM view of the current image.
    w_ref : (kh*kw, Cin, Cout) bf16, VMEM resident.
    Returns the (t_oh*OW, Cout) f32 accumulator (contraction = kh*kw*Cin).
    """
    cout = w_ref.shape[-1]
    t = pl.program_id(1)                       # OH-tile index
    h0 = t * (t_oh * stride)                   # first input row of this tile
    acc = jnp.zeros((t_oh * ow, cout), jnp.float32)
    for i in range(kh):                        # static unroll, kh*kw small
        if stride == 1:
            rows = x_ref[0, pl.ds(h0 + i, t_oh), :, :]          # (t_oh, W, Cin)
        else:
            rows = x_ref[0, pl.ds(h0 + i, t_oh, stride=stride), :, :]
        for j in range(kw):
            if stride == 1:
                win = rows[:, j:j + ow, :]                       # (t_oh, OW, Cin)
            else:
                win = lax.slice(rows, (0, j, 0),
                                (t_oh, j + (ow - 1) * stride + 1, rows.shape[2]),
                                (1, stride, 1))
            acc = acc + jnp.dot(win.reshape(t_oh * ow, -1), w_ref[i * kw + j],
                                preferred_element_type=jnp.float32)
    return acc


# ----------------------------------------------------------------------------
# Kernels
# ----------------------------------------------------------------------------
def _conv_bias_act_kernel(x_ref, w_ref, b_ref, o_ref, *,
                          t_oh, ow, stride, kh, kw, slope):
    """Conv + bias + LeakyReLU (norm=False path)."""
    cout = w_ref.shape[-1]
    acc = _conv_tile(x_ref, w_ref, t_oh=t_oh, ow=ow, stride=stride, kh=kh, kw=kw)
    y = acc.reshape(1, t_oh, ow, cout) + b_ref[...]              # (1,Cout) bcast
    o_ref[...] = jnp.where(y > 0, y, slope * y)


def _conv_stats_kernel(x_ref, w_ref, y_ref, stats_ref, *,
                       t_oh, ow, stride, kh, kw):
    """Conv + per-tile (sum, centered M2) partials (BN pass 1).

    The conv bias is intentionally omitted: BatchNorm's mean subtraction
    cancels it.  The intermediate is stored in bf16; statistics come from the
    f32 accumulator.
    """
    cout = w_ref.shape[-1]
    acc = _conv_tile(x_ref, w_ref, t_oh=t_oh, ow=ow, stride=stride, kh=kh, kw=kw)
    y_ref[...] = acc.reshape(1, t_oh, ow, cout).astype(y_ref.dtype)
    s = jnp.sum(acc, axis=0, keepdims=True)                      # (1, Cout)
    mean_t = s * (1.0 / (t_oh * ow))
    d = acc - mean_t
    ss = jnp.sum(d * d, axis=0, keepdims=True)                   # (1, Cout)
    stats_ref[0, 0, 0:1, :] = s                                  # direct stores
    stats_ref[0, 0, 1:2, :] = ss


def _scale_shift_act_kernel(y_ref, scale_ref, shift_ref, o_ref, *, slope):
    """Folded BatchNorm affine (one FMA) + LeakyReLU (BN pass 2)."""
    y = y_ref[...].astype(jnp.float32) * scale_ref[...] + shift_ref[...]
    o_ref[...] = jnp.where(y > 0, y, slope * y)


# ----------------------------------------------------------------------------
# Tile sizing / VMEM budgeting
# ----------------------------------------------------------------------------
def _vmem_limit_bytes():
    cap = 64 * 1024 * 1024                     # conservative default (v7x)
    try:
        info = pltpu.get_tpu_info()
        cap = int(getattr(info, "vmem_capacity_bytes", cap))
    except Exception:
        pass
    # <=48 MiB on 64 MiB parts (v7x), ~100 MiB on 128 MiB parts (v5e/v6e).
    return 48 * 1024 * 1024 if cap <= 64 * 1024 * 1024 else 100 * 1024 * 1024


def _pick_t_oh(n, oh, ow, h, w, cin, cout, kh, kw, *, budget):
    """Largest OH-tile (divisor of OH) that fits the VMEM budget, then shrink
    until the grid has >=4 programs (keeps v7x's second TensorCore busy)."""
    divs = sorted((d for d in range(1, oh + 1) if oh % d == 0), reverse=True)
    fixed = (2 * h * w * cin * 2               # double-buffered bf16 image
             + 2 * kh * kw * cin * cout * 2    # weight (buffered)
             + (1 << 20))                      # misc headroom
    pick = 1
    for t in divs:
        per_tile = (2 * t * ow * cout * 4      # double-buffered f32 out tile
                    + 4 * t * ow * cout * 4    # acc + elementwise temporaries
                    + 2 * t * w * cin * 4)     # widened LHS working values
        if fixed + per_tile <= budget:
            pick = t
            break
    while n * (oh // pick) < 4:
        smaller = [d for d in divs if d < pick]
        if not smaller:
            break
        pick = smaller[0]
    return pick


# ----------------------------------------------------------------------------
# Wrapper
# ----------------------------------------------------------------------------
def conv_block_forward(x, params, *, stride, norm=False, eps=1e-5,
                       negative_slope=0.01, compute_dtype=jnp.bfloat16,
                       nhwc_out=False):
    """x: (N, Cin, H, W) float32 NCHW.  Returns (N, Cout, OH, OW) float32
    (or (N, OH, OW, Cout) if nhwc_out=True)."""
    w = params["conv_w"]          # (Cout, Cin, kH, kW) -- PyTorch Conv2d layout
    b = params["conv_b"]          # (Cout,)
    gamma = params["bn_gamma"]    # (Cout,)
    beta = params["bn_beta"]      # (Cout,)

    n, cin, h, wdt = x.shape
    cout, cin_w, kh, kw = w.shape
    assert cin == cin_w, "channel mismatch"
    oh = (h - kh) // stride + 1                   # padding='valid'
    ow = (wdt - kw) // stride + 1
    assert oh > 0 and ow > 0

    # Glue over x: NCHW -> NHWC + bf16 cast (single fused XLA pass).
    x_nhwc = jnp.transpose(x, (0, 2, 3, 1)).astype(compute_dtype)
    # Raw conv weight, (kh*kw, Cin, Cout): tiny, no Toeplitz blow-up.
    w_r = jnp.transpose(w, (2, 3, 1, 0)).reshape(kh * kw, cin, cout)
    w_r = w_r.astype(compute_dtype)

    vmem_limit = _vmem_limit_bytes()
    t_oh = _pick_t_oh(n, oh, ow, h, wdt, cin, cout, kh, kw,
                      budget=int(vmem_limit * 0.85))
    n_t = oh // t_oh
    grid = (n, n_t)
    # TODO(synk): for feature maps whose bf16 NHWC image exceeds the VMEM
    # budget, an H-slab streaming variant (manual DMA) would be needed.

    cparams = pltpu.CompilerParams(
        dimension_semantics=("parallel", "parallel"),
        vmem_limit_bytes=vmem_limit)

    x_spec = pl.BlockSpec((1, h, wdt, cin), lambda ni, ti: (ni, 0, 0, 0))
    w_spec = pl.BlockSpec((kh * kw, cin, cout), lambda ni, ti: (0, 0, 0))
    vec_spec = pl.BlockSpec((1, cout), lambda ni, ti: (0, 0))
    y_spec = pl.BlockSpec((1, t_oh, ow, cout), lambda ni, ti: (ni, ti, 0, 0))

    conv_kw = dict(t_oh=t_oh, ow=ow, stride=stride, kh=kh, kw=kw)

    if not norm:
        bias2d = b.astype(jnp.float32).reshape(1, cout)
        out_nhwc = pl.pallas_call(
            functools.partial(_conv_bias_act_kernel, slope=negative_slope,
                              **conv_kw),
            out_shape=jax.ShapeDtypeStruct((n, oh, ow, cout), jnp.float32),
            grid=grid,
            in_specs=[x_spec, w_spec, vec_spec],
            out_specs=y_spec,
            compiler_params=cparams,
        )(x_nhwc, w_r, bias2d)
    else:
        # Pass 1: conv + per-tile statistics partials; bf16 intermediate.
        stats_spec = pl.BlockSpec((1, 1, 2, cout), lambda ni, ti: (ni, ti, 0, 0))
        y_bf16, stats = pl.pallas_call(
            functools.partial(_conv_stats_kernel, **conv_kw),
            out_shape=(jax.ShapeDtypeStruct((n, oh, ow, cout), compute_dtype),
                       jax.ShapeDtypeStruct((n, n_t, 2, cout), jnp.float32)),
            grid=grid,
            in_specs=[x_spec, w_spec],
            out_specs=(y_spec, stats_spec),
            compiler_params=cparams,
        )(x_nhwc, w_r)

        # Tiny O(Cout) glue: Chan combine of per-tile (sum, centered M2).
        cnt_t = float(t_oh * ow)
        m_total = float(n * oh * ow)
        sum_t = stats[..., 0, :].reshape(-1, cout)         # (N*T, Cout)
        ss_t = stats[..., 1, :].reshape(-1, cout)
        mean = jnp.sum(sum_t, axis=0) / m_total
        mean_t = sum_t / cnt_t
        m2 = jnp.sum(ss_t, axis=0) + cnt_t * jnp.sum(
            (mean_t - mean[None, :]) ** 2, axis=0)
        var = jnp.maximum(m2 / m_total, 0.0)                # biased (training)
        scale_c = gamma.astype(jnp.float32) * lax.rsqrt(var + eps)
        shift_c = beta.astype(jnp.float32) - mean * scale_c  # conv bias cancels
        scale2d = scale_c.reshape(1, cout)
        shift2d = shift_c.reshape(1, cout)
        # TODO(synk): BatchNorm2d running_mean/running_var buffers are not
        # updated; the forward uses training-mode batch statistics only.

        # Pass 2: fused scale/shift + LeakyReLU.
        out_nhwc = pl.pallas_call(
            functools.partial(_scale_shift_act_kernel, slope=negative_slope),
            out_shape=jax.ShapeDtypeStruct((n, oh, ow, cout), jnp.float32),
            grid=grid,
            in_specs=[y_spec, vec_spec, vec_spec],
            out_specs=y_spec,
            compiler_params=cparams,
        )(y_bf16, scale2d, shift2d)

    if nhwc_out:
        return out_nhwc
    # Layout plumbing only (PyTorch interface); NHWC consumers should pass
    # nhwc_out=True and skip this full-tensor transpose.
    return jnp.transpose(out_nhwc, (0, 3, 1, 2))


# ----------------------------------------------------------------------------
# Params / pure-JAX reference
# ----------------------------------------------------------------------------
def init_params(key, in_channels, out_channels, kernel_size):
    k1, k2, k3, k4 = jax.random.split(key, 4)
    fan_in = in_channels * kernel_size * kernel_size
    bound = 1.0 / jnp.sqrt(jnp.float32(fan_in))
    return {
        "conv_w": jax.random.uniform(
            k1, (out_channels, in_channels, kernel_size, kernel_size),
            jnp.float32, -bound, bound),
        "conv_b": jax.random.uniform(k2, (out_channels,), jnp.float32,
                                     -bound, bound),
        "bn_gamma": 1.0 + 0.1 * jax.random.normal(k3, (out_channels,),
                                                  jnp.float32),
        "bn_beta": 0.1 * jax.random.normal(k4, (out_channels,), jnp.float32),
    }


def _reference(x, params, *, stride, norm, eps=1e-5, negative_slope=0.01):
    y = lax.conv_general_dilated(
        x, params["conv_w"], window_strides=(stride, stride), padding="VALID",
        dimension_numbers=("NCHW", "OIHW", "NCHW"))
    y = y + params["conv_b"].reshape(1, -1, 1, 1)
    if norm:
        mean = jnp.mean(y, axis=(0, 2, 3), keepdims=True)
        var = jnp.var(y, axis=(0, 2, 3), keepdims=True)          # biased
        y = (y - mean) * lax.rsqrt(var + eps)
        y = (y * params["bn_gamma"].reshape(1, -1, 1, 1)
             + params["bn_beta"].reshape(1, -1, 1, 1))
    return jnp.where(y > 0, y, negative_slope * y)


# ----------------------------------------------------------------------------
# Demo
# ----------------------------------------------------------------------------
if __name__ == "__main__":
    key = jax.random.PRNGKey(0)
    kx, kp = jax.random.split(key)

    # ConvBlock(in_channels=4, out_channels=32, kernel_size=3, stride=1,
    #           padding='valid') on a 16x16 input: OH = OW = 14.
    N, C_in, H, W, C_out, K, S = 2, 4, 16, 16, 32, 3, 1

    x = jax.random.normal(kx, (N, C_in, H, W), jnp.float32)
    params = init_params(kp, C_in, C_out, K)

    oh = (H - K) // S + 1
    ow = (W - K) // S + 1
    for norm in (True, False):                    # exercise BN and no-BN paths
        out = jax.block_until_ready(
            conv_block_forward(x, params, stride=S, norm=norm))
        assert out.shape == (N, C_out, oh, ow), out.shape
        assert bool(jnp.all(jnp.isfinite(out)))
        ref = _reference(x, params, stride=S, norm=norm)
        err = float(jnp.max(jnp.abs(out - ref)))
        assert err < 0.08, f"norm={norm}: max abs error {err}"

    print("KERNEL_OK")
</pallas_src>

<mosaic_0001>
module attributes {stable_mosaic.version = 11 : i64} {
  func.func @_conv_stats_kernel(%arg0: i32, %arg1: i32, %arg2: memref<1x16x16x4xbf16, #tpu.memory_space<vmem>>, %arg3: memref<9x4x32xbf16, #tpu.memory_space<vmem>>, %arg4: memref<1x7x14x32xbf16, #tpu.memory_space<vmem>>, %arg5: memref<1x1x2x32xf32, #tpu.memory_space<vmem>>) attributes {dimension_semantics = [#tpu.dimension_semantics<parallel>, #tpu.dimension_semantics<parallel>], iteration_bounds = array<i64: 2, 2>, scalar_prefetch = 0 : i64, scratch_operands = 0 : i64, tpu.core_type = #tpu.core_type<tc>, window_params = [{transform_indices = @transform_0, window_bounds = array<i64: 1, 16, 16, 4>}, {pipeline_mode = #tpu.pipeline_mode<synchronous>, transform_indices = @transform_1, window_bounds = array<i64: 9, 4, 32>}, {transform_indices = @transform_2, window_bounds = array<i64: 1, 7, 14, 32>}, {transform_indices = @transform_3, window_bounds = array<i64: 1, 1, 2, 32>}]} {
    %c7_i32 = arith.constant 7 : i32
    %0 = arith.muli %arg1, %c7_i32 : i32
    %cst = arith.constant 0.000000e+00 : f32
    %1 = vector.broadcast %cst : f32 to vector<98x32xf32>
    %c0_i32 = arith.constant 0 : i32
    %2 = arith.addi %0, %c0_i32 : i32
    %c0 = arith.constant 0 : index
    %3 = arith.index_cast %2 : i32 to index
    %c0_0 = arith.constant 0 : index
    %c0_1 = arith.constant 0 : index
    %4 = vector.load %arg2[%c0, %3, %c0_0, %c0_1] : memref<1x16x16x4xbf16, #tpu.memory_space<vmem>>, vector<1x7x16x4xbf16>
    %5 = vector.shape_cast %4 : vector<1x7x16x4xbf16> to vector<7x16x4xbf16>
    %6 = vector.extract_strided_slice %5 {offsets = [0, 0, 0], sizes = [7, 14, 4], strides = [1, 1, 1]} : vector<7x16x4xbf16> to vector<7x14x4xbf16>
    %7 = vector.shape_cast %6 : vector<7x14x4xbf16> to vector<98x4xbf16>
    %c0_2 = arith.constant 0 : index
    %c0_3 = arith.constant 0 : index
    %c0_4 = arith.constant 0 : index
    %8 = vector.load %arg3[%c0_2, %c0_3, %c0_4] : memref<9x4x32xbf16, #tpu.memory_space<vmem>>, vector<1x4x32xbf16>
    %9 = vector.shape_cast %8 : vector<1x4x32xbf16> to vector<4x32xbf16>
    %cst_5 = arith.constant dense<0.000000e+00> : vector<98x32xf32>
    %10 = tpu.matmul %7, %9, %cst_5 {dimension_numbers = #tpu.dot_dimension_numbers<[1], [0], [0], [1], [0, 0, 1, 1], [], []>} : vector<98x4xbf16>, vector<4x32xbf16>, vector<98x32xf32> -> vector<98x32xf32>
    %11 = arith.addf %1, %10 : vector<98x32xf32>
    %12 = vector.extract_strided_slice %5 {offsets = [0, 1, 0], sizes = [7, 14, 4], strides = [1, 1, 1]} : vector<7x16x4xbf16> to vector<7x14x4xbf16>
    %13 = vector.shape_cast %12 : vector<7x14x4xbf16> to vector<98x4xbf16>
    %c1 = arith.constant 1 : index
    %c0_6 = arith.constant 0 : index
    %c0_7 = arith.constant 0 : index
    %14 = vector.load %arg3[%c1, %c0_6, %c0_7] : memref<9x4x32xbf16, #tpu.memory_space<vmem>>, vector<1x4x32xbf16>
    %15 = vector.shape_cast %14 : vector<1x4x32xbf16> to vector<4x32xbf16>
    %cst_8 = arith.constant dense<0.000000e+00> : vector<98x32xf32>
    %16 = tpu.matmul %13, %15, %cst_8 {dimension_numbers = #tpu.dot_dimension_numbers<[1], [0], [0], [1], [0, 0, 1, 1], [], []>} : vector<98x4xbf16>, vector<4x32xbf16>, vector<98x32xf32> -> vector<98x32xf32>
    %17 = arith.addf %11, %16 : vector<98x32xf32>
    %18 = vector.extract_strided_slice %5 {offsets = [0, 2, 0], sizes = [7, 14, 4], strides = [1, 1, 1]} : vector<7x16x4xbf16> to vector<7x14x4xbf16>
    %19 = vector.shape_cast %18 : vector<7x14x4xbf16> to vector<98x4xbf16>
    %c2 = arith.constant 2 : index
    %c0_9 = arith.constant 0 : index
    %c0_10 = arith.constant 0 : index
    %20 = vector.load %arg3[%c2, %c0_9, %c0_10] : memref<9x4x32xbf16, #tpu.memory_space<vmem>>, vector<1x4x32xbf16>
    %21 = vector.shape_cast %20 : vector<1x4x32xbf16> to vector<4x32xbf16>
    %cst_11 = arith.constant dense<0.000000e+00> : vector<98x32xf32>
    %22 = tpu.matmul %19, %21, %cst_11 {dimension_numbers = #tpu.dot_dimension_numbers<[1], [0], [0], [1], [0, 0, 1, 1], [], []>} : vector<98x4xbf16>, vector<4x32xbf16>, vector<98x32xf32> -> vector<98x32xf32>
    %23 = arith.addf %17, %22 : vector<98x32xf32>
    %c1_i32 = arith.constant 1 : i32
    %24 = arith.addi %0, %c1_i32 : i32
    %c0_12 = arith.constant 0 : index
    %25 = arith.index_cast %24 : i32 to index
    %c0_13 = arith.constant 0 : index
    %c0_14 = arith.constant 0 : index
    %26 = vector.load %arg2[%c0_12, %25, %c0_13, %c0_14] : memref<1x16x16x4xbf16, #tpu.memory_space<vmem>>, vector<1x7x16x4xbf16>
    %27 = vector.shape_cast %26 : vector<1x7x16x4xbf16> to vector<7x16x4xbf16>
    %28 = vector.extract_strided_slice %27 {offsets = [0, 0, 0], sizes = [7, 14, 4], strides = [1, 1, 1]} : vector<7x16x4xbf16> to vector<7x14x4xbf16>
    %29 = vector.shape_cast %28 : vector<7x14x4xbf16> to vector<98x4xbf16>
    %c3 = arith.constant 3 : index
    %c0_15 = arith.constant 0 : index
    %c0_16 = arith.constant 0 : index
    %30 = vector.load %arg3[%c3, %c0_15, %c0_16] : memref<9x4x32xbf16, #tpu.memory_space<vmem>>, vector<1x4x32xbf16>
    %31 = vector.shape_cast %30 : vector<1x4x32xbf16> to vector<4x32xbf16>
    %cst_17 = arith.constant dense<0.000000e+00> : vector<98x32xf32>
    %32 = tpu.matmul %29, %31, %cst_17 {dimension_numbers = #tpu.dot_dimension_numbers<[1], [0], [0], [1], [0, 0, 1, 1], [], []>} : vector<98x4xbf16>, vector<4x32xbf16>, vector<98x32xf32> -> vector<98x32xf32>
    %33 = arith.addf %23, %32 : vector<98x32xf32>
    %34 = vector.extract_strided_slice %27 {offsets = [0, 1, 0], sizes = [7, 14, 4], strides = [1, 1, 1]} : vector<7x16x4xbf16> to vector<7x14x4xbf16>
    %35 = vector.shape_cast %34 : vector<7x14x4xbf16> to vector<98x4xbf16>
    %c4 = arith.constant 4 : index
    %c0_18 = arith.constant 0 : index
    %c0_19 = arith.constant 0 : index
    %36 = vector.load %arg3[%c4, %c0_18, %c0_19] : memref<9x4x32xbf16, #tpu.memory_space<vmem>>, vector<1x4x32xbf16>
    %37 = vector.shape_cast %36 : vector<1x4x32xbf16> to vector<4x32xbf16>
    %cst_20 = arith.constant dense<0.000000e+00> : vector<98x32xf32>
    %38 = tpu.matmul %35, %37, %cst_20 {dimension_numbers = #tpu.dot_dimension_numbers<[1], [0], [0], [1], [0, 0, 1, 1], [], []>} : vector<98x4xbf16>, vector<4x32xbf16>, vector<98x32xf32> -> vector<98x32xf32>
    %39 = arith.addf %33, %38 : vector<98x32xf32>
    %40 = vector.extract_strided_slice %27 {offsets = [0, 2, 0], sizes = [7, 14, 4], strides = [1, 1, 1]} : vector<7x16x4xbf16> to vector<7x14x4xbf16>
    %41 = vector.shape_cast %40 : vector<7x14x4xbf16> to vector<98x4xbf16>
    %c5 = arith.constant 5 : index
    %c0_21 = arith.constant 0 : index
    %c0_22 = arith.constant 0 : index
    %42 = vector.load %arg3[%c5, %c0_21, %c0_22] : memref<9x4x32xbf16, #tpu.memory_space<vmem>>, vector<1x4x32xbf16>
    %43 = vector.shape_cast %42 : vector<1x4x32xbf16> to vector<4x32xbf16>
    %cst_23 = arith.constant dense<0.000000e+00> : vector<98x32xf32>
    %44 = tpu.matmul %41, %43, %cst_23 {dimension_numbers = #tpu.dot_dimension_numbers<[1], [0], [0], [1], [0, 0, 1, 1], [], []>} : vector<98x4xbf16>, vector<4x32xbf16>, vector<98x32xf32> -> vector<98x32xf32>
    %45 = arith.addf %39, %44 : vector<98x32xf32>
    %c2_i32 = arith.constant 2 : i32
    %46 = arith.addi %0, %c2_i32 : i32
    %c0_24 = arith.constant 0 : index
    %47 = arith.index_cast %46 : i32 to index
    %c0_25 = arith.constant 0 : index
    %c0_26 = arith.constant 0 : index
    %48 = vector.load %arg2[%c0_24, %47, %c0_25, %c0_26] : memref<1x16x16x4xbf16, #tpu.memory_space<vmem>>, vector<1x7x16x4xbf16>
    %49 = vector.shape_cast %48 : vector<1x7x16x4xbf16> to vector<7x16x4xbf16>
    %50 = vector.extract_strided_slice %49 {offsets = [0, 0, 0], sizes = [7, 14, 4], strides = [1, 1, 1]} : vector<7x16x4xbf16> to vector<7x14x4xbf16>
    %51 = vector.shape_cast %50 : vector<7x14x4xbf16> to vector<98x4xbf16>
    %c6 = arith.constant 6 : index
    %c0_27 = arith.constant 0 : index
    %c0_28 = arith.constant 0 : index
    %52 = vector.load %arg3[%c6, %c0_27, %c0_28] : memref<9x4x32xbf16, #tpu.memory_space<vmem>>, vector<1x4x32xbf16>
    %53 = vector.shape_cast %52 : vector<1x4x32xbf16> to vector<4x32xbf16>
    %cst_29 = arith.constant dense<0.000000e+00> : vector<98x32xf32>
    %54 = tpu.matmul %51, %53, %cst_29 {dimension_numbers = #tpu.dot_dimension_numbers<[1], [0], [0], [1], [0, 0, 1, 1], [], []>} : vector<98x4xbf16>, vector<4x32xbf16>, vector<98x32xf32> -> vector<98x32xf32>
    %55 = arith.addf %45, %54 : vector<98x32xf32>
    %56 = vector.extract_strided_slice %49 {offsets = [0, 1, 0], sizes = [7, 14, 4], strides = [1, 1, 1]} : vector<7x16x4xbf16> to vector<7x14x4xbf16>
    %57 = vector.shape_cast %56 : vector<7x14x4xbf16> to vector<98x4xbf16>
    %c7 = arith.constant 7 : index
    %c0_30 = arith.constant 0 : index
    %c0_31 = arith.constant 0 : index
    %58 = vector.load %arg3[%c7, %c0_30, %c0_31] : memref<9x4x32xbf16, #tpu.memory_space<vmem>>, vector<1x4x32xbf16>
    %59 = vector.shape_cast %58 : vector<1x4x32xbf16> to vector<4x32xbf16>
    %cst_32 = arith.constant dense<0.000000e+00> : vector<98x32xf32>
    %60 = tpu.matmul %57, %59, %cst_32 {dimension_numbers = #tpu.dot_dimension_numbers<[1], [0], [0], [1], [0, 0, 1, 1], [], []>} : vector<98x4xbf16>, vector<4x32xbf16>, vector<98x32xf32> -> vector<98x32xf32>
    %61 = arith.addf %55, %60 : vector<98x32xf32>
    %62 = vector.extract_strided_slice %49 {offsets = [0, 2, 0], sizes = [7, 14, 4], strides = [1, 1, 1]} : vector<7x16x4xbf16> to vector<7x14x4xbf16>
    %63 = vector.shape_cast %62 : vector<7x14x4xbf16> to vector<98x4xbf16>
    %c8 = arith.constant 8 : index
    %c0_33 = arith.constant 0 : index
    %c0_34 = arith.constant 0 : index
    %64 = vector.load %arg3[%c8, %c0_33, %c0_34] : memref<9x4x32xbf16, #tpu.memory_space<vmem>>, vector<1x4x32xbf16>
    %65 = vector.shape_cast %64 : vector<1x4x32xbf16> to vector<4x32xbf16>
    %cst_35 = arith.constant dense<0.000000e+00> : vector<98x32xf32>
    %66 = tpu.matmul %63, %65, %cst_35 {dimension_numbers = #tpu.dot_dimension_numbers<[1], [0], [0], [1], [0, 0, 1, 1], [], []>} : vector<98x4xbf16>, vector<4x32xbf16>, vector<98x32xf32> -> vector<98x32xf32>
    %67 = arith.addf %61, %66 : vector<98x32xf32>
    %68 = vector.shape_cast %67 : vector<98x32xf32> to vector<1x7x14x32xf32>
    %69 = arith.truncf %68 : vector<1x7x14x32xf32> to vector<1x7x14x32xbf16>
    %c0_36 = arith.constant 0 : index
    %c0_37 = arith.constant 0 : index
    %c0_38 = arith.constant 0 : index
    %c0_39 = arith.constant 0 : index
    %70 = vector.load %arg4[%c0_36, %c0_37, %c0_38, %c0_39] : memref<1x7x14x32xbf16, #tpu.memory_space<vmem>>, vector<1x7x14x32xbf16>
    tpu.vector_store %arg4[%c0_36, %c0_37, %c0_38, %c0_39], %69 {strides = array<i32>} : memref<1x7x14x32xbf16, #tpu.memory_space<vmem>>, vector<1x7x14x32xbf16>,
    %cst_40 = arith.constant dense<0.000000e+00> : vector<32xf32>
    %71 = vector.multi_reduction <add>, %67, %cst_40 [0] : vector<98x32xf32> to vector<32xf32>
    %72 = vector.shape_cast %71 : vector<32xf32> to vector<1x32xf32>
    %cst_41 = arith.constant 0.0102040814 : f32
    %73 = vector.broadcast %cst_41 : f32 to vector<1x32xf32>
    %74 = arith.mulf %72, %73 : vector<1x32xf32>
    %75 = vector.broadcast %74 : vector<1x32xf32> to vector<98x32xf32>
    %76 = arith.subf %67, %75 : vector<98x32xf32>
    %77 = arith.mulf %76, %76 : vector<98x32xf32>
    %cst_42 = arith.constant dense<0.000000e+00> : vector<32xf32>
    %78 = vector.multi_reduction <add>, %77, %cst_42 [0] : vector<98x32xf32> to vector<32xf32>
    %79 = vector.shape_cast %78 : vector<32xf32> to vector<1x32xf32>
    %c0_43 = arith.constant 0 : index
    %c0_44 = arith.constant 0 : index
    %c0_45 = arith.constant 0 : index
    %c0_46 = arith.constant 0 : index
    %80 = vector.load %arg5[%c0_43, %c0_44, %c0_45, %c0_46] : memref<1x1x2x32xf32, #tpu.memory_space<vmem>>, vector<1x1x1x32xf32>
    %81 = vector.shape_cast %80 : vector<1x1x1x32xf32> to vector<1x32xf32>
    %82 = vector.shape_cast %72 : vector<1x32xf32> to vector<1x1x1x32xf32>
    tpu.vector_store %arg5[%c0_43, %c0_44, %c0_45, %c0_46], %82 {strides = array<i32>} : memref<1x1x2x32xf32, #tpu.memory_space<vmem>>, vector<1x1x1x32xf32>,
    %c0_47 = arith.constant 0 : index
    %c0_48 = arith.constant 0 : index
    %c1_49 = arith.constant 1 : index
    %c0_50 = arith.constant 0 : index
    %83 = vector.load %arg5[%c0_47, %c0_48, %c1_49, %c0_50] : memref<1x1x2x32xf32, #tpu.memory_space<vmem>>, vector<1x1x1x32xf32>
    %84 = vector.shape_cast %83 : vector<1x1x1x32xf32> to vector<1x32xf32>
    %85 = vector.shape_cast %79 : vector<1x32xf32> to vector<1x1x1x32xf32>
    tpu.vector_store %arg5[%c0_47, %c0_48, %c1_49, %c0_50], %85 {strides = array<i32>} : memref<1x1x2x32xf32, #tpu.memory_space<vmem>>, vector<1x1x1x32xf32>,
    return
  }
  func.func @transform_0(%arg0: i32, %arg1: i32) -> (i32, i32, i32, i32) {
    %c0_i32 = arith.constant 0 : i32
    %c0_i32_0 = arith.constant 0 : i32
    %c0_i32_1 = arith.constant 0 : i32
    %c0_i32_2 = arith.constant 0 : i32
    return %arg0, %c0_i32, %c0_i32_0, %c0_i32_1 : i32, i32, i32, i32
  }
  func.func @transform_1(%arg0: i32, %arg1: i32) -> (i32, i32, i32) {
    %c0_i32 = arith.constant 0 : i32
    %c0_i32_0 = arith.constant 0 : i32
    %c0_i32_1 = arith.constant 0 : i32
    %c0_i32_2 = arith.constant 0 : i32
    return %c0_i32, %c0_i32_0, %c0_i32_1 : i32, i32, i32
  }
  func.func @transform_2(%arg0: i32, %arg1: i32) -> (i32, i32, i32, i32) {
    %c0_i32 = arith.constant 0 : i32
    %c0_i32_0 = arith.constant 0 : i32
    %c0_i32_1 = arith.constant 0 : i32
    return %arg0, %arg1, %c0_i32, %c0_i32_0 : i32, i32, i32, i32
  }
  func.func @transform_3(%arg0: i32, %arg1: i32) -> (i32, i32, i32, i32) {
    %c0_i32 = arith.constant 0 : i32
    %c0_i32_0 = arith.constant 0 : i32
    %c0_i32_1 = arith.constant 0 : i32
    return %arg0, %arg1, %c0_i32, %c0_i32_0 : i32, i32, i32, i32
  }
}

</mosaic_0001>

<llo_original>
// kernel: tpu_custom_call.1
$region0: #{tpu_custom_call.1}
  #allocation0 [shape = 'u32[]', space=smem, size = 0x4, offset = 0x4, fixed_abs, tag = 'smem constant byte address 0x4 - core index']
  #allocation1 [shape = 'u32[144,128]{1,0:T(1,128)}', space=vmem, size = 0x12000, scoped, tag = 'internal scratch']
  %s0 = inlined_call_operand.vmem [shape: bf16[2,16,16,4], index: 0, kind: input, shape index: {}]
  %s1 = inlined_call_operand.vmem [shape: bf16[9,4,32], index: 1, kind: input, shape index: {}]
  %s2 = inlined_call_operand.vmem [shape: bf16[2,14,14,32], index: 2, kind: output, shape index: {0}]
  %s3 = inlined_call_operand.hbm [shape: f32[2,2,2,32], index: 3, kind: output, shape index: {1}]
  %4 = xla_tuple %s2, %s3
  %s5 = sld [smem:[#allocation0]]
  $region49: #{tpu_custom_call.1} parent=0
    _
  %s7 = ssub.s32 1, %s5
  %s8 = scalar_select 0, %s7, %s5
  $region1: #{tpu_custom_call.1} parent=0
    #allocation2 [shape = 'u8[2048]{0}', space=vmem, size = 0x800, scoped, tag = 'output window, operand 1']
    #allocation3 [shape = 's32[2]{0}', space=sflag, size = 0x8, scoped, tag = 'scoped memory for tpu_custom_call.1']
    %9 = vsyncpa [#allocation3], 0
    %s10 = scalar_lea.sflag [#allocation3], 1
    %11 = vsyncpa %s10, 0
    loop: start=0, step=1, limit=6
    $region2: #{tpu_custom_call.1} parent=1 // loop_pre_header
      _
    $region3: #{tpu_custom_call.1} parent=1 // loop_header
      %s13 = sphi 0, %s17
      %p14 = scmp.ge.s32.totalorder %s13, 6
      %s20 = sphi 0, %s32
      %s21 = sphi 0, %s28
      %s22 = sphi 0, %s20
      %s23 = sphi 0, %s21
      %s24 = sphi 0, %s22
      %s25 = sphi 0, %s23
      %s35 = sphi 0, %s37
      %s38 = sphi 0, %s35
      %s39 = sphi 0, %s38
      %s55 = sphi 0, %s39
      %s59 = sphi 0, %s59
      %s61 = sphi 0, %s59
      %s62 = sphi 0, %s61
      %s76 = sphi 0, %s62
      %s84 = sphi 0, %s86
      %s87 = sphi 0, %s84
      %s88 = sphi 0, %s87
      %s104 = sphi 0, %s88
      %s112 = sphi 0, %s114
      %s115 = sphi 0, %s112
      %s116 = sphi 0, %s115
      %s132 = sphi 0, %s116
    $region4: #{tpu_custom_call.1} parent=1 // loop_header_branch
      %16 = sbr.rel (%p14) target = $region8
    $region5: #{tpu_custom_call.1} parent=1 // loop_body
      %s18 = ssub.s32 %s13, 1
      %s19 = ssub.s32 %s13, 2
      %s26 = sadd.s32 1, %s21
      %p27 = scmp.ge.s32.totalorder %s26, 2
      %s28 = scalar_select %p27, 0, %s26
      %s29 = sadd.s32 1, %s20
      %s30 = scalar_select %p27, %s29, %s20
      %p31 = scmp.ge.s32.totalorder %s30, 2
      %s32 = scalar_select %p31, 0, %s30
      %s33 = ssub.s32 %s20, %s32
      %p34 = scmp.eq.s32.totalorder %s33, 0
      %s36 = sadd.s32 %s35, 1
      %s37 = scalar_select %p34, %s35, %s36
      %p40 = pneg %p34
      %p41 = scmp.eq.s32.totalorder %s13, 3
      %p42 = por %p40, %p41
      %p43 = scmp.ne.s32.totalorder %s35, %s38
      %p44 = scmp.eq.s32.totalorder %s13, 0
      %p45 = por %p43, %p44
      %p46 = scmp.ne.s32.totalorder %s35, %s38
      %p47 = scmp.eq.s32.totalorder %s18, 3
      %p48 = por %p46, %p47
      %p49 = scmp.ne.s32.totalorder %s38, %s39
      %p50 = scmp.eq.s32.totalorder %s18, 0
      %p51 = por %p49, %p50
      %p52 = scmp.ne.s32.totalorder %s38, %s39
      %p53 = scmp.eq.s32.totalorder %s19, 3
      %p54 = por %p52, %p53
      %p56 = scmp.ne.s32.totalorder %s39, %s55
      %p57 = scmp.eq.s32.totalorder %s19, 0
      %p58 = por %p56, %p57
      %s60 = sadd.s32 %s59, 1
      %p63 = scmp.eq.s32.totalorder %s13, 3
      %p64 = scmp.ne.s32.totalorder %s59, %s61
      %p65 = scmp.eq.s32.totalorder %s13, 0
      %p66 = por %p64, %p65
      %p67 = scmp.ne.s32.totalorder %s59, %s61
      %p68 = scmp.eq.s32.totalorder %s18, 3
      %p69 = por %p67, %p68
      %p70 = scmp.ne.s32.totalorder %s61, %s62
      %p71 = scmp.eq.s32.totalorder %s18, 0
      %p72 = por %p70, %p71
      %p73 = scmp.ne.s32.totalorder %s61, %s62
      %p74 = scmp.eq.s32.totalorder %s19, 3
      %p75 = por %p73, %p74
      %p77 = scmp.ne.s32.totalorder %s62, %s76
      %p78 = scmp.eq.s32.totalorder %s19, 0
      %p79 = por %p77, %p78
      %s80 = ssub.s32 %s20, %s32
      %s81 = ssub.s32 %s21, %s28
      %s82 = sor.u32 %s80, %s81
      %p83 = scmp.eq.s32.totalorder %s82, 0
      %s85 = sadd.s32 %s84, 1
      %s86 = scalar_select %p83, %s84, %s85
      %p89 = pneg %p83
      %p90 = scmp.eq.s32.totalorder %s13, 3
      %p91 = por %p89, %p90
      %p92 = scmp.ne.s32.totalorder %s84, %s87
      %p93 = scmp.eq.s32.totalorder %s13, 0
      %p94 = por %p92, %p93
      %p95 = scmp.ne.s32.totalorder %s84, %s87
      %p96 = scmp.eq.s32.totalorder %s18, 3
      %p97 = por %p95, %p96
      %p98 = scmp.ne.s32.totalorder %s87, %s88
      %p99 = scmp.eq.s32.totalorder %s18, 0
      %p100 = por %p98, %p99
      %p101 = scmp.ne.s32.totalorder %s87, %s88
      %p102 = scmp.eq.s32.totalorder %s19, 3
      %p103 = por %p101, %p102
      %p105 = scmp.ne.s32.totalorder %s88, %s104
      %p106 = scmp.eq.s32.totalorder %s19, 0
      %p107 = por %p105, %p106
      %s108 = ssub.s32 %s20, %s32
      %s109 = ssub.s32 %s21, %s28
      %s110 = sor.u32 %s108, %s109
      %p111 = scmp.eq.s32.totalorder %s110, 0
      %s113 = sadd.s32 %s112, 1
      %s114 = scalar_select %p111, %s112, %s113
      %p117 = pneg %p111
      %p118 = scmp.eq.s32.totalorder %s13, 3
      %p119 = por %p117, %p118
      %p120 = scmp.ne.s32.totalorder %s112, %s115
      %p121 = scmp.eq.s32.totalorder %s13, 0
      %p122 = por %p120, %p121
      %p123 = scmp.ne.s32.totalorder %s112, %s115
      %p124 = scmp.eq.s32.totalorder %s18, 3
      %p125 = por %p123, %p124
      %p126 = scmp.ne.s32.totalorder %s115, %s116
      %p127 = scmp.eq.s32.totalorder %s18, 0
      %p128 = por %p126, %p127
      %p129 = scmp.ne.s32.totalorder %s115, %s116
      %p130 = scmp.eq.s32.totalorder %s19, 3
      %p131 = por %p129, %p130
      %p133 = scmp.ne.s32.totalorder %s116, %s132
      %p134 = scmp.eq.s32.totalorder %s19, 0
      %p135 = por %p133, %p134
      %p136 = scmp.le.s32.totalorder 1, %s13
      %p137 = scmp.lt.s32.totalorder %s13, 5
      %p138 = pnand %p136, %p137
      %p139 = pneg %p138
      // Predicated region
      $region9: #{tpu_custom_call.1} parent=5 // pred_check
        _
      $region10: #{tpu_custom_call.1} parent=5 // pred_check_branch
        %141 = sbr.rel (%p138) target = $region12
      $region11: #{tpu_custom_call.1} parent=5 // pred_region
        %s142 = ssub.s32 %s13, 1
        // Predicated region
        $region13: #{tpu_custom_call.1} parent=11 // pred_check
          %p143 = pneg %p72
        $region14: #{tpu_custom_call.1} parent=11 // pred_check_branch
          %145 = sbr.rel (%p143) target = $region16
        $region15: #{tpu_custom_call.1} parent=11 // pred_region
          _
        $region16: #{tpu_custom_call.1} parent=11 // pred_fallthru
          _
      $region12: #{tpu_custom_call.1} parent=5 // pred_fallthru
        _
      %p146 = scmp.lt.s32.totalorder %s13, 4
      // Predicated region
      $region17: #{tpu_custom_call.1} parent=5 // pred_check
        %p147 = pneg %p146
      $region18: #{tpu_custom_call.1} parent=5 // pred_check_branch
        %149 = sbr.rel (%p147) target = $region20
      $region19: #{tpu_custom_call.1} parent=5 // pred_region
        // Predicated region
        $region21: #{tpu_custom_call.1} parent=19 // pred_check
          %p150 = pneg %p45
        $region22: #{tpu_custom_call.1} parent=19 // pred_check_branch
          %152 = sbr.rel (%p150) target = $region24
        $region23: #{tpu_custom_call.1} parent=19 // pred_region
          %p153 = scmp.lt.s32.totalorder %s20, 1
          %s154 = scalar_select %p153, %s20, 1
          %s155 = smul.addr %s154, 32
          %s156 = smul.addr %s155, 4
          %s157 = scalar_lea.vmem %s0, %s156
        $region24: #{tpu_custom_call.1} parent=19 // pred_fallthru
          _
      $region20: #{tpu_custom_call.1} parent=5 // pred_fallthru
        _
      %p158 = scmp.le.s32.totalorder 1, %s13
      %p159 = scmp.lt.s32.totalorder %s13, 5
      %p160 = pnand %p158, %p159
      %p161 = pneg %p160
      // Predicated region
      $region25: #{tpu_custom_call.1} parent=5 // pred_check
        _
      $region26: #{tpu_custom_call.1} parent=5 // pred_check_branch
        %163 = sbr.rel (%p160) target = $region28
      $region27: #{tpu_custom_call.1} parent=5 // pred_region
        %s164 = ssub.s32 %s13, 1
        %p165 = scmp.lt.s32.totalorder %s22, 1
        %s166 = scalar_select %p165, %s22, 1
        %s167 = smul.addr %s166, 32
        %s168 = smul.addr %s167, 4
        %s169 = scalar_lea.vmem %s0, %s168
        %p170 = pneg %p51
        %p171 = pneg %p48
        %p172 = pneg %p72
        %p173 = pneg %p69
        %p174 = pneg %p100
        %p175 = pneg %p97
        %s176 = smul.u32 7, %s23
        %p177 = scmp.lt.s32.totalorder %s22, 1
        %s178 = scalar_select %p177, %s22, 1
        %p179 = scmp.lt.s32.totalorder %s176, 13
        %s180 = scalar_select %p179, %s176, 13
        %s181 = smul.addr %s180, 2
        %s182 = smul.addr %s178, 28
        %s183 = sadd.s32 %s181, %s182
        %s184 = smul.addr %s183, 4
        %s185 = scalar_lea.vmem %s2, %s184
        %p186 = pneg %p128
        %p187 = pneg %p125
        %s188 = sand.u32 %s115, 1
        %s189 = scalar_lea.sflag [#allocation3], %s188
        %s190 = sand.u32 %s115, 1
        %s191 = smul.addr %s190, 2
        %s192 = scalar_lea.vmem [#allocation2], %s191
        %p193 = scmp.lt.s32.totalorder %s22, 1
        %s194 = scalar_select %p193, %s22, 1
        %s195 = smul.addr %s194, 32
        %s196 = smul.addr %s195, 4
        %s197 = scalar_lea.vmem %s0, %s196
        %s198 = smul.u32 7, %s23
        %p199 = scmp.lt.s32.totalorder %s22, 1
        %s200 = scalar_select %p199, %s22, 1
        %p201 = scmp.lt.s32.totalorder %s198, 13
        %s202 = scalar_select %p201, %s198, 13
        %s203 = smul.addr %s202, 2
        %s204 = smul.addr %s200, 28
        %s205 = sadd.s32 %s203, %s204
        %s206 = smul.addr %s205, 4
        %s207 = scalar_lea.vmem %s2, %s206
        %s208 = smul.u32 7, %s23
        %s210 = smul.u32 %s23, 7
        %s211 = smul.u32 %s210, 2
        %s212 = smul.addr %s211, 4
        %s213 = scalar_lea.vmem %s197, %s212
        %v214 = vld [vmem:[%s213] sm:$0xf]
        %v215 = vld [vmem:[%s213 + $0x4] sm:$0xf]
        %v216 = vld [vmem:[%s213 + $0x8] sm:$0xf]
        %v217 = vld [vmem:[%s213 + $0xc] sm:$0xf]
        %v218 = vld [vmem:[%s213 + $0x10] sm:$0xf]
        %v219 = vld [vmem:[%s213 + $0x14] sm:$0xf]
        %v220 = vld [vmem:[%s213 + $0x18] sm:$0xf]
        %v221 = vld [vmem:[%s213 + $0x1c] sm:$0xf]
        %v222 = vld [vmem:[%s213 + $0x20] sm:$0xf]
        %v223 = vld [vmem:[%s213 + $0x24] sm:$0xf]
        %v224 = vld [vmem:[%s213 + $0x28] sm:$0xf]
        %v225 = vld [vmem:[%s213 + $0x2c] sm:$0xf]
        %v226 = vld [vmem:[%s213 + $0x30] sm:$0xf]
        %v227 = vld [vmem:[%s213 + $0x34] sm:$0xf]
        %v243 = vunpack.c.l.s4 1966171168
        %v244 = vunpack.c.0.s8 %v243
        %v245 = vlaneseq
        %v246 = vshrl.u32 %v245, 7
        %v247 = vsub.s32 %v244, %v246
        %v248 = vrot.slane %v214, %v247
        %v249 = vcombine.high %v248, %v248
        %v251 = vunpack.c.l.s4 1966171168
        %v252 = vunpack.c.0.s8 %v251
        %v253 = vlaneseq
        %v254 = vshrl.u32 %v253, 7
        %v255 = vsub.s32 %v252, %v254
        %v256 = vrot.slane %v248, %v255
        %v258 = vunpack.c.l.s4 1966171168
        %v259 = vunpack.c.0.s8 %v258
        %v260 = vlaneseq
        %v261 = vshrl.u32 %v260, 7
        %v262 = vsub.s32 %v259, %v261
        %v263 = vrot.slane %v249, %v262
        %v264 = vcombine.high %v256, %v256
        %v265 = vcombine.high %v263, %v263
        %v267 = vunpack.c.l.s4 1966171168
        %v268 = vunpack.c.0.s8 %v267
        %v269 = vlaneseq
        %v270 = vshrl.u32 %v269, 7
        %v271 = vsub.s32 %v268, %v270
        %v272 = vrot.slane %v215, %v271
        %v273 = vcombine.high %v272, %v272
        %v275 = vunpack.c.l.s4 1966171168
        %v276 = vunpack.c.0.s8 %v275
        %v277 = vlaneseq
        %v278 = vshrl.u32 %v277, 7
        %v279 = vsub.s32 %v276, %v278
        %v280 = vrot.slane %v272, %v279
        %v282 = vunpack.c.l.s4 1966171168
        %v283 = vunpack.c.0.s8 %v282
        %v284 = vlaneseq
        %v285 = vshrl.u32 %v284, 7
        %v286 = vsub.s32 %v283, %v285
        %v287 = vrot.slane %v273, %v286
        %v288 = vcombine.high %v280, %v280
        %v290 = vunpack.c.l.s4 1966171168
        %v291 = vunpack.c.0.s8 %v290
        %v292 = vlaneseq
        %v293 = vshrl.u32 %v292, 7
        %v294 = vsub.s32 %v291, %v293
        %v295 = vrot.slane %v216, %v294
        %v296 = vcombine.high %v295, %v295
        %v298 = vunpack.c.l.s4 1966171168
        %v299 = vunpack.c.0.s8 %v298
        %v300 = vlaneseq
        %v301 = vshrl.u32 %v300, 7
        %v302 = vsub.s32 %v299, %v301
        %v303 = vrot.slane %v295, %v302
        %v305 = vunpack.c.l.s4 1966171168
        %v306 = vunpack.c.0.s8 %v305
        %v307 = vlaneseq
        %v308 = vshrl.u32 %v307, 7
        %v309 = vsub.s32 %v306, %v308
        %v310 = vrot.slane %v296, %v309
        %v311 = vcombine.high %v303, %v303
        %v312 = vcombine.high %v310, %v310
        %v314 = vunpack.c.l.s4 1966171168
        %v315 = vunpack.c.0.s8 %v314
        %v316 = vlaneseq
        %v317 = vshrl.u32 %v316, 7
        %v318 = vsub.s32 %v315, %v317
        %v319 = vrot.slane %v217, %v318
        %v320 = vcombine.high %v319, %v319
        %v322 = vunpack.c.l.s4 1966171168
        %v323 = vunpack.c.0.s8 %v322
        %v324 = vlaneseq
        %v325 = vshrl.u32 %v324, 7
        %v326 = vsub.s32 %v323, %v325
        %v327 = vrot.slane %v319, %v326
        %v329 = vunpack.c.l.s4 1966171168
        %v330 = vunpack.c.0.s8 %v329
        %v331 = vlaneseq
        %v332 = vshrl.u32 %v331, 7
        %v333 = vsub.s32 %v330, %v332
        %v334 = vrot.slane %v320, %v333
        %v335 = vcombine.high %v327, %v327
        %v337 = vunpack.c.l.s4 1966171168
        %v338 = vunpack.c.0.s8 %v337
        %v339 = vlaneseq
        %v340 = vshrl.u32 %v339, 7
        %v341 = vsub.s32 %v338, %v340
        %v342 = vrot.slane %v218, %v341
        %v343 = vcombine.high %v342, %v342
        %v345 = vunpack.c.l.s4 1966171168
        %v346 = vunpack.c.0.s8 %v345
        %v347 = vlaneseq
        %v348 = vshrl.u32 %v347, 7
        %v349 = vsub.s32 %v346, %v348
        %v350 = vrot.slane %v342, %v349
        %v352 = vunpack.c.l.s4 1966171168
        %v353 = vunpack.c.0.s8 %v352
        %v354 = vlaneseq
        %v355 = vshrl.u32 %v354, 7
        %v356 = vsub.s32 %v353, %v355
        %v357 = vrot.slane %v343, %v356
        %v358 = vcombine.high %v350, %v350
        %v359 = vcombine.high %v357, %v357
        %v361 = vunpack.c.l.s4 1966171168
        %v362 = vunpack.c.0.s8 %v361
        %v363 = vlaneseq
        %v364 = vshrl.u32 %v363, 7
        %v365 = vsub.s32 %v362, %v364
        %v366 = vrot.slane %v219, %v365
        %v367 = vcombine.high %v366, %v366
        %v369 = vunpack.c.l.s4 1966171168
        %v370 = vunpack.c.0.s8 %v369
        %v371 = vlaneseq
        %v372 = vshrl.u32 %v371, 7
        %v373 = vsub.s32 %v370, %v372
        %v374 = vrot.slane %v366, %v373
        %v376 = vunpack.c.l.s4 1966171168
        %v377 = vunpack.c.0.s8 %v376
        %v378 = vlaneseq
        %v379 = vshrl.u32 %v378, 7
        %v380 = vsub.s32 %v377, %v379
        %v381 = vrot.slane %v367, %v380
        %v382 = vcombine.high %v374, %v374
        %v384 = vunpack.c.l.s4 1966171168
        %v385 = vunpack.c.0.s8 %v384
        %v386 = vlaneseq
        %v387 = vshrl.u32 %v386, 7
        %v388 = vsub.s32 %v385, %v387
        %v389 = vrot.slane %v220, %v388
        %v390 = vcombine.high %v389, %v389
        %v392 = vunpack.c.l.s4 1966171168
        %v393 = vunpack.c.0.s8 %v392
        %v394 = vlaneseq
        %v395 = vshrl.u32 %v394, 7
        %v396 = vsub.s32 %v393, %v395
        %v397 = vrot.slane %v389, %v396
        %v399 = vunpack.c.l.s4 1966171168
        %v400 = vunpack.c.0.s8 %v399
        %v401 = vlaneseq
        %v402 = vshrl.u32 %v401, 7
        %v403 = vsub.s32 %v400, %v402
        %v404 = vrot.slane %v390, %v403
        %v405 = vcombine.high %v397, %v397
        %v406 = vcombine.high %v404, %v404
        %v408 = vunpack.c.l.s4 1966171168
        %v409 = vunpack.c.0.s8 %v408
        %v410 = vlaneseq
        %v411 = vshrl.u32 %v410, 7
        %v412 = vsub.s32 %v409, %v411
        %v413 = vrot.slane %v221, %v412
        %v414 = vcombine.high %v413, %v413
        %v416 = vunpack.c.l.s4 1966171168
        %v417 = vunpack.c.0.s8 %v416
        %v418 = vlaneseq
        %v419 = vshrl.u32 %v418, 7
        %v420 = vsub.s32 %v417, %v419
        %v421 = vrot.slane %v413, %v420
        %v423 = vunpack.c.l.s4 1966171168
        %v424 = vunpack.c.0.s8 %v423
        %v425 = vlaneseq
        %v426 = vshrl.u32 %v425, 7
        %v427 = vsub.s32 %v424, %v426
        %v428 = vrot.slane %v414, %v427
        %v429 = vcombine.high %v421, %v421
        %v431 = vunpack.c.l.s4 1966171168
        %v432 = vunpack.c.0.s8 %v431
        %v433 = vlaneseq
        %v434 = vshrl.u32 %v433, 7
        %v435 = vsub.s32 %v432, %v434
        %v436 = vrot.slane %v222, %v435
        %v437 = vcombine.high %v436, %v436
        %v439 = vunpack.c.l.s4 1966171168
        %v440 = vunpack.c.0.s8 %v439
        %v441 = vlaneseq
        %v442 = vshrl.u32 %v441, 7
        %v443 = vsub.s32 %v440, %v442
        %v444 = vrot.slane %v436, %v443
        %v446 = vunpack.c.l.s4 1966171168
        %v447 = vunpack.c.0.s8 %v446
        %v448 = vlaneseq
        %v449 = vshrl.u32 %v448, 7
        %v450 = vsub.s32 %v447, %v449
        %v451 = vrot.slane %v437, %v450
        %v452 = vcombine.high %v444, %v444
        %v453 = vcombine.high %v451, %v451
        %v455 = vunpack.c.l.s4 1966171168
        %v456 = vunpack.c.0.s8 %v455
        %v457 = vlaneseq
        %v458 = vshrl.u32 %v457, 7
        %v459 = vsub.s32 %v456, %v458
        %v460 = vrot.slane %v223, %v459
        %v461 = vcombine.high %v460, %v460
        %v463 = vunpack.c.l.s4 1966171168
        %v464 = vunpack.c.0.s8 %v463
        %v465 = vlaneseq
        %v466 = vshrl.u32 %v465, 7
        %v467 = vsub.s32 %v464, %v466
        %v468 = vrot.slane %v460, %v467
        %v470 = vunpack.c.l.s4 1966171168
        %v471 = vunpack.c.0.s8 %v470
        %v472 = vlaneseq
        %v473 = vshrl.u32 %v472, 7
        %v474 = vsub.s32 %v471, %v473
        %v475 = vrot.slane %v461, %v474
        %v476 = vcombine.high %v468, %v468
        %v478 = vunpack.c.l.s4 1966171168
        %v479 = vunpack.c.0.s8 %v478
        %v480 = vlaneseq
        %v481 = vshrl.u32 %v480, 7
        %v482 = vsub.s32 %v479, %v481
        %v483 = vrot.slane %v224, %v482
        %v484 = vcombine.high %v483, %v483
        %v486 = vunpack.c.l.s4 1966171168
        %v487 = vunpack.c.0.s8 %v486
        %v488 = vlaneseq
        %v489 = vshrl.u32 %v488, 7
        %v490 = vsub.s32 %v487, %v489
        %v491 = vrot.slane %v483, %v490
        %v493 = vunpack.c.l.s4 1966171168
        %v494 = vunpack.c.0.s8 %v493
        %v495 = vlaneseq
        %v496 = vshrl.u32 %v495, 7
        %v497 = vsub.s32 %v494, %v496
        %v498 = vrot.slane %v484, %v497
        %v499 = vcombine.high %v491, %v491
        %v500 = vcombine.high %v498, %v498
        %v502 = vunpack.c.l.s4 1966171168
        %v503 = vunpack.c.0.s8 %v502
        %v504 = vlaneseq
        %v505 = vshrl.u32 %v504, 7
        %v506 = vsub.s32 %v503, %v505
        %v507 = vrot.slane %v225, %v506
        %v508 = vcombine.high %v507, %v507
        %v510 = vunpack.c.l.s4 1966171168
        %v511 = vunpack.c.0.s8 %v510
        %v512 = vlaneseq
        %v513 = vshrl.u32 %v512, 7
        %v514 = vsub.s32 %v511, %v513
        %v515 = vrot.slane %v507, %v514
        %v517 = vunpack.c.l.s4 1966171168
        %v518 = vunpack.c.0.s8 %v517
        %v519 = vlaneseq
        %v520 = vshrl.u32 %v519, 7
        %v521 = vsub.s32 %v518, %v520
        %v522 = vrot.slane %v508, %v521
        %v523 = vcombine.high %v515, %v515
        %v525 = vunpack.c.l.s4 1966171168
        %v526 = vunpack.c.0.s8 %v525
        %v527 = vlaneseq
        %v528 = vshrl.u32 %v527, 7
        %v529 = vsub.s32 %v526, %v528
        %v530 = vrot.slane %v226, %v529
        %v531 = vcombine.high %v530, %v530
        %v533 = vunpack.c.l.s4 1966171168
        %v534 = vunpack.c.0.s8 %v533
        %v535 = vlaneseq
        %v536 = vshrl.u32 %v535, 7
        %v537 = vsub.s32 %v534, %v536
        %v538 = vrot.slane %v530, %v537
        %v540 = vunpack.c.l.s4 1966171168
        %v541 = vunpack.c.0.s8 %v540
        %v542 = vlaneseq
        %v543 = vshrl.u32 %v542, 7
        %v544 = vsub.s32 %v541, %v543
        %v545 = vrot.slane %v531, %v544
        %v546 = vcombine.high %v538, %v538
        %v547 = vcombine.high %v545, %v545
        %v549 = vunpack.c.l.s4 1966171168
        %v550 = vunpack.c.0.s8 %v549
        %v551 = vlaneseq
        %v552 = vshrl.u32 %v551, 7
        %v553 = vsub.s32 %v550, %v552
        %v554 = vrot.slane %v227, %v553
        %v555 = vcombine.high %v554, %v554
        %v557 = vunpack.c.l.s4 1966171168
        %v558 = vunpack.c.0.s8 %v557
        %v559 = vlaneseq
        %v560 = vshrl.u32 %v559, 7
        %v561 = vsub.s32 %v558, %v560
        %v562 = vrot.slane %v554, %v561
        %v564 = vunpack.c.l.s4 1966171168
        %v565 = vunpack.c.0.s8 %v564
        %v566 = vlaneseq
        %v567 = vshrl.u32 %v566, 7
        %v568 = vsub.s32 %v565, %v567
        %v569 = vrot.slane %v555, %v568
        %v570 = vcombine.high %v562, %v562
        %v571 = vld [vmem:[%s1] sm:$0x3]
        %v572 = vcombine.high %v287, %v287
        %v573 = vcombine.high %v334, %v334
        %v574 = vcombine.high %v381, %v381
        %v575 = vcombine.high %v428, %v428
        %v576 = vcombine.high %v475, %v475
        %v577 = vcombine.high %v522, %v522
        %v578 = vcombine.high %v569, %v569
        %vm579 = vsmask.f32 256
        %vm580 = vsmask.f32 1284
        %vm581 = vmor %vm579, %vm580
        %vm582 = vsmask.f32 2312
        %vm583 = vmor %vm581, %vm582
        %vm584 = vsmask.f32 3340
        %vm585 = vmor %vm583, %vm584
        %vm586 = vsmask.f32 4368
        %vm587 = vmor %vm585, %vm586
        %vm588 = vsmask.f32 5396
        %vm589 = vmor %vm587, %vm588
        %vm590 = vsmask.f32 6424
        %vm591 = vmor %vm589, %vm590
        %vm592 = vsmask.f32 7452
        %vm593 = vmor %vm591, %vm592
        %v595 = vshrl.u32 %v256, 16
        %v597 = vrot.slane %v595, 7
        %v598 = vrot.slane %v597, 1
        %v600 = vshll.u32 %v263, 16
        %v602 = vsel %vm593, %v598, %v600
        %v603 = vshrl.u32 %v263, 16
        %v605 = vrot.slane %v603, 7
        %v606 = vrot.slane %v605, 1
        %v608 = vshll.u32 %v264, 16
        %v610 = vsel %vm593, %v606, %v608
        %v611 = vshrl.u32 %v264, 16
        %v613 = vrot.slane %v611, 7
        %v614 = vrot.slane %v613, 1
        %v616 = vshll.u32 %v265, 16
        %v618 = vsel %vm593, %v614, %v616
        %v619 = vshrl.u32 %v265, 16
        %v621 = vrot.slane %v619, 7
        %v622 = vrot.slane %v621, 1
        %v624 = vshll.u32 %v280, 16
        %v626 = vsel %vm593, %v622, %v624
        %v627 = vshrl.u32 %v280, 16
        %v629 = vrot.slane %v627, 7
        %v630 = vrot.slane %v629, 1
        %v632 = vshll.u32 %v287, 16
        %v634 = vsel %vm593, %v630, %v632
        %v635 = vshrl.u32 %v287, 16
        %v637 = vrot.slane %v635, 7
        %v638 = vrot.slane %v637, 1
        %v640 = vshll.u32 %v288, 16
        %v642 = vsel %vm593, %v638, %v640
        %v643 = vshrl.u32 %v288, 16
        %v645 = vrot.slane %v643, 7
        %v646 = vrot.slane %v645, 1
        %v648 = vshll.u32 %v572, 16
        %v650 = vsel %vm593, %v646, %v648
        %v652 = vshrl.u32 %v303, 16
        %v654 = vrot.slane %v652, 7
        %v655 = vrot.slane %v654, 1
        %v657 = vshll.u32 %v310, 16
        %v659 = vsel %vm593, %v655, %v657
        %v660 = vshrl.u32 %v310, 16
        %v662 = vrot.slane %v660, 7
        %v663 = vrot.slane %v662, 1
        %v665 = vshll.u32 %v311, 16
        %v667 = vsel %vm593, %v663, %v665
        %v668 = vshrl.u32 %v311, 16
        %v670 = vrot.slane %v668, 7
        %v671 = vrot.slane %v670, 1
        %v673 = vshll.u32 %v312, 16
        %v675 = vsel %vm593, %v671, %v673
        %v676 = vshrl.u32 %v312, 16
        %v678 = vrot.slane %v676, 7
        %v679 = vrot.slane %v678, 1
        %v681 = vshll.u32 %v327, 16
        %v683 = vsel %vm593, %v679, %v681
        %v684 = vshrl.u32 %v327, 16
        %v686 = vrot.slane %v684, 7
        %v687 = vrot.slane %v686, 1
        %v689 = vshll.u32 %v334, 16
        %v691 = vsel %vm593, %v687, %v689
        %v692 = vshrl.u32 %v334, 16
        %v694 = vrot.slane %v692, 7
        %v695 = vrot.slane %v694, 1
        %v697 = vshll.u32 %v335, 16
        %v699 = vsel %vm593, %v695, %v697
        %v700 = vshrl.u32 %v335, 16
        %v702 = vrot.slane %v700, 7
        %v703 = vrot.slane %v702, 1
        %v705 = vshll.u32 %v573, 16
        %v707 = vsel %vm593, %v703, %v705
        %v709 = vshrl.u32 %v350, 16
        %v711 = vrot.slane %v709, 7
        %v712 = vrot.slane %v711, 1
        %v714 = vshll.u32 %v357, 16
        %v716 = vsel %vm593, %v712, %v714
        %v717 = vshrl.u32 %v357, 16
        %v719 = vrot.slane %v717, 7
        %v720 = vrot.slane %v719, 1
        %v722 = vshll.u32 %v358, 16
        %v724 = vsel %vm593, %v720, %v722
        %v725 = vshrl.u32 %v358, 16
        %v727 = vrot.slane %v725, 7
        %v728 = vrot.slane %v727, 1
        %v730 = vshll.u32 %v359, 16
        %v732 = vsel %vm593, %v728, %v730
        %v733 = vshrl.u32 %v359, 16
        %v735 = vrot.slane %v733, 7
        %v736 = vrot.slane %v735, 1
        %v738 = vshll.u32 %v374, 16
        %v740 = vsel %vm593, %v736, %v738
        %v741 = vshrl.u32 %v374, 16
        %v743 = vrot.slane %v741, 7
        %v744 = vrot.slane %v743, 1
        %v746 = vshll.u32 %v381, 16
        %v748 = vsel %vm593, %v744, %v746
        %v749 = vshrl.u32 %v381, 16
        %v751 = vrot.slane %v749, 7
        %v752 = vrot.slane %v751, 1
        %v754 = vshll.u32 %v382, 16
        %v756 = vsel %vm593, %v752, %v754
        %v757 = vshrl.u32 %v382, 16
        %v759 = vrot.slane %v757, 7
        %v760 = vrot.slane %v759, 1
        %v762 = vshll.u32 %v574, 16
        %v764 = vsel %vm593, %v760, %v762
        %v766 = vshrl.u32 %v397, 16
        %v768 = vrot.slane %v766, 7
        %v769 = vrot.slane %v768, 1
        %v771 = vshll.u32 %v404, 16
        %v773 = vsel %vm593, %v769, %v771
        %v774 = vshrl.u32 %v404, 16
        %v776 = vrot.slane %v774, 7
        %v777 = vrot.slane %v776, 1
        %v779 = vshll.u32 %v405, 16
        %v781 = vsel %vm593, %v777, %v779
        %v782 = vshrl.u32 %v405, 16
        %v784 = vrot.slane %v782, 7
        %v785 = vrot.slane %v784, 1
        %v787 = vshll.u32 %v406, 16
        %v789 = vsel %vm593, %v785, %v787
        %v790 = vshrl.u32 %v406, 16
        %v792 = vrot.slane %v790, 7
        %v793 = vrot.slane %v792, 1
        %v795 = vshll.u32 %v421, 16
        %v797 = vsel %vm593, %v793, %v795
        %v798 = vshrl.u32 %v421, 16
        %v800 = vrot.slane %v798, 7
        %v801 = vrot.slane %v800, 1
        %v803 = vshll.u32 %v428, 16
        %v805 = vsel %vm593, %v801, %v803
        %v806 = vshrl.u32 %v428, 16
        %v808 = vrot.slane %v806, 7
        %v809 = vrot.slane %v808, 1
        %v811 = vshll.u32 %v429, 16
        %v813 = vsel %vm593, %v809, %v811
        %v814 = vshrl.u32 %v429, 16
        %v816 = vrot.slane %v814, 7
        %v817 = vrot.slane %v816, 1
        %v819 = vshll.u32 %v575, 16
        %v821 = vsel %vm593, %v817, %v819
        %v823 = vshrl.u32 %v444, 16
        %v825 = vrot.slane %v823, 7
        %v826 = vrot.slane %v825, 1
        %v828 = vshll.u32 %v451, 16
        %v830 = vsel %vm593, %v826, %v828
        %v831 = vshrl.u32 %v451, 16
        %v833 = vrot.slane %v831, 7
        %v834 = vrot.slane %v833, 1
        %v836 = vshll.u32 %v452, 16
        %v838 = vsel %vm593, %v834, %v836
        %v839 = vshrl.u32 %v452, 16
        %v841 = vrot.slane %v839, 7
        %v842 = vrot.slane %v841, 1
        %v844 = vshll.u32 %v453, 16
        %v846 = vsel %vm593, %v842, %v844
        %v847 = vshrl.u32 %v453, 16
        %v849 = vrot.slane %v847, 7
        %v850 = vrot.slane %v849, 1
        %v852 = vshll.u32 %v468, 16
        %v854 = vsel %vm593, %v850, %v852
        %v855 = vshrl.u32 %v468, 16
        %v857 = vrot.slane %v855, 7
        %v858 = vrot.slane %v857, 1
        %v860 = vshll.u32 %v475, 16
        %v862 = vsel %vm593, %v858, %v860
        %v863 = vshrl.u32 %v475, 16
        %v865 = vrot.slane %v863, 7
        %v866 = vrot.slane %v865, 1
        %v868 = vshll.u32 %v476, 16
        %v870 = vsel %vm593, %v866, %v868
        %v871 = vshrl.u32 %v476, 16
        %v873 = vrot.slane %v871, 7
        %v874 = vrot.slane %v873, 1
        %v876 = vshll.u32 %v576, 16
        %v878 = vsel %vm593, %v874, %v876
        %v880 = vshrl.u32 %v491, 16
        %v882 = vrot.slane %v880, 7
        %v883 = vrot.slane %v882, 1
        %v885 = vshll.u32 %v498, 16
        %v887 = vsel %vm593, %v883, %v885
        %v888 = vshrl.u32 %v498, 16
        %v890 = vrot.slane %v888, 7
        %v891 = vrot.slane %v890, 1
        %v893 = vshll.u32 %v499, 16
        %v895 = vsel %vm593, %v891, %v893
        %v896 = vshrl.u32 %v499, 16
        %v898 = vrot.slane %v896, 7
        %v899 = vrot.slane %v898, 1
        %v901 = vshll.u32 %v500, 16
        %v903 = vsel %vm593, %v899, %v901
        %v904 = vshrl.u32 %v500, 16
        %v906 = vrot.slane %v904, 7
        %v907 = vrot.slane %v906, 1
        %v909 = vshll.u32 %v515, 16
        %v911 = vsel %vm593, %v907, %v909
        %v912 = vshrl.u32 %v515, 16
        %v914 = vrot.slane %v912, 7
        %v915 = vrot.slane %v914, 1
        %v917 = vshll.u32 %v522, 16
        %v919 = vsel %vm593, %v915, %v917
        %v920 = vshrl.u32 %v522, 16
        %v922 = vrot.slane %v920, 7
        %v923 = vrot.slane %v922, 1
        %v925 = vshll.u32 %v523, 16
        %v927 = vsel %vm593, %v923, %v925
        %v928 = vshrl.u32 %v523, 16
        %v930 = vrot.slane %v928, 7
        %v931 = vrot.slane %v930, 1
        %v933 = vshll.u32 %v577, 16
        %v935 = vsel %vm593, %v931, %v933
        %v937 = vshrl.u32 %v538, 16
        %v939 = vrot.slane %v937, 7
        %v940 = vrot.slane %v939, 1
        %v942 = vshll.u32 %v545, 16
        %v944 = vsel %vm593, %v940, %v942
        %v945 = vshrl.u32 %v545, 16
        %v947 = vrot.slane %v945, 7
        %v948 = vrot.slane %v947, 1
        %v950 = vshll.u32 %v546, 16
        %v952 = vsel %vm593, %v948, %v950
        %v953 = vshrl.u32 %v546, 16
        %v955 = vrot.slane %v953, 7
        %v956 = vrot.slane %v955, 1
        %v958 = vshll.u32 %v547, 16
        %v960 = vsel %vm593, %v956, %v958
        %v961 = vshrl.u32 %v547, 16
        %v963 = vrot.slane %v961, 7
        %v964 = vrot.slane %v963, 1
        %v966 = vshll.u32 %v562, 16
        %v968 = vsel %vm593, %v964, %v966
        %v969 = vshrl.u32 %v562, 16
        %v971 = vrot.slane %v969, 7
        %v972 = vrot.slane %v971, 1
        %v974 = vshll.u32 %v569, 16
        %v976 = vsel %vm593, %v972, %v974
        %v977 = vshrl.u32 %v569, 16
        %v979 = vrot.slane %v977, 7
        %v980 = vrot.slane %v979, 1
        %v982 = vshll.u32 %v570, 16
        %v984 = vsel %vm593, %v980, %v982
        %v985 = vshrl.u32 %v570, 16
        %v987 = vrot.slane %v985, 7
        %v988 = vrot.slane %v987, 1
        %v990 = vshll.u32 %v578, 16
        %v992 = vsel %vm593, %v988, %v990
        %s993 = scalar_lea.vmem %s1, 2
        %v994 = vld [vmem:[%s993] sm:$0x3]
        %v995 = vcombine.low %v602, %v610
        %v996 = vcombine.low %v618, %v626
        %v997 = vcombine.low %v634, %v642
        %v998 = vcombine.low %v650, %v659
        %v1000 = vunpack.c.l.s4 1966171168
        %v1001 = vunpack.c.0.s8 %v1000
        %v1002 = vlaneseq
        %v1003 = vshrl.u32 %v1002, 7
        %v1004 = vsub.s32 %v1001, %v1003
        %v1005 = vrot.slane %v995, %v1004
        %v1007 = vunpack.c.l.s4 1966171168
        %v1008 = vunpack.c.0.s8 %v1007
        %v1009 = vlaneseq
        %v1010 = vshrl.u32 %v1009, 7
        %v1011 = vsub.s32 %v1008, %v1010
        %v1012 = vrot.slane %v996, %v1011
        %v1014 = vunpack.c.l.s4 1966171168
        %v1015 = vunpack.c.0.s8 %v1014
        %v1016 = vlaneseq
        %v1017 = vshrl.u32 %v1016, 7
        %v1018 = vsub.s32 %v1015, %v1017
        %v1019 = vrot.slane %v997, %v1018
        %v1021 = vunpack.c.l.s4 1966171168
        %v1022 = vunpack.c.0.s8 %v1021
        %v1023 = vlaneseq
        %v1024 = vshrl.u32 %v1023, 7
        %v1025 = vsub.s32 %v1022, %v1024
        %v1026 = vrot.slane %v998, %v1025
        %v1027 = vcombine.low %v1005, %v1012
        %v1028 = vcombine.low %v1019, %v1026
        %v1030 = vunpack.c.l.s4 1966171168
        %v1031 = vunpack.c.0.s8 %v1030
        %v1032 = vlaneseq
        %v1033 = vshrl.u32 %v1032, 7
        %v1034 = vsub.s32 %v1031, %v1033
        %v1035 = vrot.slane %v1027, %v1034
        %v1037 = vunpack.c.l.s4 1966171168
        %v1038 = vunpack.c.0.s8 %v1037
        %v1039 = vlaneseq
        %v1040 = vshrl.u32 %v1039, 7
        %v1041 = vsub.s32 %v1038, %v1040
        %v1042 = vrot.slane %v1028, %v1041
        %v1043 = vcombine.low %v1035, %v1042
        %v1044 = vcombine.low %v667, %v675
        %v1045 = vcombine.low %v683, %v691
        %v1046 = vcombine.low %v699, %v707
        %v1047 = vcombine.low %v716, %v724
        %v1049 = vunpack.c.l.s4 1966171168
        %v1050 = vunpack.c.0.s8 %v1049
        %v1051 = vlaneseq
        %v1052 = vshrl.u32 %v1051, 7
        %v1053 = vsub.s32 %v1050, %v1052
        %v1054 = vrot.slane %v1044, %v1053
        %v1056 = vunpack.c.l.s4 1966171168
        %v1057 = vunpack.c.0.s8 %v1056
        %v1058 = vlaneseq
        %v1059 = vshrl.u32 %v1058, 7
        %v1060 = vsub.s32 %v1057, %v1059
        %v1061 = vrot.slane %v1045, %v1060
        %v1063 = vunpack.c.l.s4 1966171168
        %v1064 = vunpack.c.0.s8 %v1063
        %v1065 = vlaneseq
        %v1066 = vshrl.u32 %v1065, 7
        %v1067 = vsub.s32 %v1064, %v1066
        %v1068 = vrot.slane %v1046, %v1067
        %v1070 = vunpack.c.l.s4 1966171168
        %v1071 = vunpack.c.0.s8 %v1070
        %v1072 = vlaneseq
        %v1073 = vshrl.u32 %v1072, 7
        %v1074 = vsub.s32 %v1071, %v1073
        %v1075 = vrot.slane %v1047, %v1074
        %v1076 = vcombine.low %v1054, %v1061
        %v1077 = vcombine.low %v1068, %v1075
        %v1079 = vunpack.c.l.s4 1966171168
        %v1080 = vunpack.c.0.s8 %v1079
        %v1081 = vlaneseq
        %v1082 = vshrl.u32 %v1081, 7
        %v1083 = vsub.s32 %v1080, %v1082
        %v1084 = vrot.slane %v1076, %v1083
        %v1086 = vunpack.c.l.s4 1966171168
        %v1087 = vunpack.c.0.s8 %v1086
        %v1088 = vlaneseq
        %v1089 = vshrl.u32 %v1088, 7
        %v1090 = vsub.s32 %v1087, %v1089
        %v1091 = vrot.slane %v1077, %v1090
        %v1092 = vcombine.low %v1084, %v1091
        %v1093 = vcombine.low %v732, %v740
        %v1094 = vcombine.low %v748, %v756
        %v1095 = vcombine.low %v764, %v773
        %v1096 = vcombine.low %v781, %v789
        %v1098 = vunpack.c.l.s4 1966171168
        %v1099 = vunpack.c.0.s8 %v1098
        %v1100 = vlaneseq
        %v1101 = vshrl.u32 %v1100, 7
        %v1102 = vsub.s32 %v1099, %v1101
        %v1103 = vrot.slane %v1093, %v1102
        %v1105 = vunpack.c.l.s4 1966171168
        %v1106 = vunpack.c.0.s8 %v1105
        %v1107 = vlaneseq
        %v1108 = vshrl.u32 %v1107, 7
        %v1109 = vsub.s32 %v1106, %v1108
        %v1110 = vrot.slane %v1094, %v1109
        %v1112 = vunpack.c.l.s4 1966171168
        %v1113 = vunpack.c.0.s8 %v1112
        %v1114 = vlaneseq
        %v1115 = vshrl.u32 %v1114, 7
        %v1116 = vsub.s32 %v1113, %v1115
        %v1117 = vrot.slane %v1095, %v1116
        %v1119 = vunpack.c.l.s4 1966171168
        %v1120 = vunpack.c.0.s8 %v1119
        %v1121 = vlaneseq
        %v1122 = vshrl.u32 %v1121, 7
        %v1123 = vsub.s32 %v1120, %v1122
        %v1124 = vrot.slane %v1096, %v1123
        %v1125 = vcombine.low %v1103, %v1110
        %v1126 = vcombine.low %v1117, %v1124
        %v1128 = vunpack.c.l.s4 1966171168
        %v1129 = vunpack.c.0.s8 %v1128
        %v1130 = vlaneseq
        %v1131 = vshrl.u32 %v1130, 7
        %v1132 = vsub.s32 %v1129, %v1131
        %v1133 = vrot.slane %v1125, %v1132
        %v1135 = vunpack.c.l.s4 1966171168
        %v1136 = vunpack.c.0.s8 %v1135
        %v1137 = vlaneseq
        %v1138 = vshrl.u32 %v1137, 7
        %v1139 = vsub.s32 %v1136, %v1138
        %v1140 = vrot.slane %v1126, %v1139
        %v1141 = vcombine.low %v1133, %v1140
        %v1142 = vcombine.low %v797, %v805
        %v1143 = vcombine.low %v813, %v821
        %v1144 = vcombine.low %v830, %v838
        %v1145 = vcombine.low %v846, %v854
        %v1147 = vunpack.c.l.s4 1966171168
        %v1148 = vunpack.c.0.s8 %v1147
        %v1149 = vlaneseq
        %v1150 = vshrl.u32 %v1149, 7
        %v1151 = vsub.s32 %v1148, %v1150
        %v1152 = vrot.slane %v1142, %v1151
        %v1154 = vunpack.c.l.s4 1966171168
        %v1155 = vunpack.c.0.s8 %v1154
        %v1156 = vlaneseq
        %v1157 = vshrl.u32 %v1156, 7
        %v1158 = vsub.s32 %v1155, %v1157
        %v1159 = vrot.slane %v1143, %v1158
        %v1161 = vunpack.c.l.s4 1966171168
        %v1162 = vunpack.c.0.s8 %v1161
        %v1163 = vlaneseq
        %v1164 = vshrl.u32 %v1163, 7
        %v1165 = vsub.s32 %v1162, %v1164
        %v1166 = vrot.slane %v1144, %v1165
        %v1168 = vunpack.c.l.s4 1966171168
        %v1169 = vunpack.c.0.s8 %v1168
        %v1170 = vlaneseq
        %v1171 = vshrl.u32 %v1170, 7
        %v1172 = vsub.s32 %v1169, %v1171
        %v1173 = vrot.slane %v1145, %v1172
        %v1174 = vcombine.low %v1152, %v1159
        %v1175 = vcombine.low %v1166, %v1173
        %v1177 = vunpack.c.l.s4 1966171168
        %v1178 = vunpack.c.0.s8 %v1177
        %v1179 = vlaneseq
        %v1180 = vshrl.u32 %v1179, 7
        %v1181 = vsub.s32 %v1178, %v1180
        %v1182 = vrot.slane %v1174, %v1181
        %v1184 = vunpack.c.l.s4 1966171168
        %v1185 = vunpack.c.0.s8 %v1184
        %v1186 = vlaneseq
        %v1187 = vshrl.u32 %v1186, 7
        %v1188 = vsub.s32 %v1185, %v1187
        %v1189 = vrot.slane %v1175, %v1188
        %v1190 = vcombine.low %v1182, %v1189
        %v1191 = vcombine.low %v862, %v870
        %v1192 = vcombine.low %v878, %v887
        %v1193 = vcombine.low %v895, %v903
        %v1194 = vcombine.low %v911, %v919
        %v1196 = vunpack.c.l.s4 1966171168
        %v1197 = vunpack.c.0.s8 %v1196
        %v1198 = vlaneseq
        %v1199 = vshrl.u32 %v1198, 7
        %v1200 = vsub.s32 %v1197, %v1199
        %v1201 = vrot.slane %v1191, %v1200
        %v1203 = vunpack.c.l.s4 1966171168
        %v1204 = vunpack.c.0.s8 %v1203
        %v1205 = vlaneseq
        %v1206 = vshrl.u32 %v1205, 7
        %v1207 = vsub.s32 %v1204, %v1206
        %v1208 = vrot.slane %v1192, %v1207
        %v1210 = vunpack.c.l.s4 1966171168
        %v1211 = vunpack.c.0.s8 %v1210
        %v1212 = vlaneseq
        %v1213 = vshrl.u32 %v1212, 7
        %v1214 = vsub.s32 %v1211, %v1213
        %v1215 = vrot.slane %v1193, %v1214
        %v1217 = vunpack.c.l.s4 1966171168
        %v1218 = vunpack.c.0.s8 %v1217
        %v1219 = vlaneseq
        %v1220 = vshrl.u32 %v1219, 7
        %v1221 = vsub.s32 %v1218, %v1220
        %v1222 = vrot.slane %v1194, %v1221
        %v1223 = vcombine.low %v1201, %v1208
        %v1224 = vcombine.low %v1215, %v1222
        %v1226 = vunpack.c.l.s4 1966171168
        %v1227 = vunpack.c.0.s8 %v1226
        %v1228 = vlaneseq
        %v1229 = vshrl.u32 %v1228, 7
        %v1230 = vsub.s32 %v1227, %v1229
        %v1231 = vrot.slane %v1223, %v1230
        %v1233 = vunpack.c.l.s4 1966171168
        %v1234 = vunpack.c.0.s8 %v1233
        %v1235 = vlaneseq
        %v1236 = vshrl.u32 %v1235, 7
        %v1237 = vsub.s32 %v1234, %v1236
        %v1238 = vrot.slane %v1224, %v1237
        %v1239 = vcombine.low %v1231, %v1238
        %v1240 = vcombine.low %v927, %v935
        %v1241 = vcombine.low %v944, %v952
        %v1242 = vcombine.low %v960, %v968
        %v1243 = vcombine.low %v976, %v984
        %v1245 = vunpack.c.l.s4 1966171168
        %v1246 = vunpack.c.0.s8 %v1245
        %v1247 = vlaneseq
        %v1248 = vshrl.u32 %v1247, 7
        %v1249 = vsub.s32 %v1246, %v1248
        %v1250 = vrot.slane %v1240, %v1249
        %v1252 = vunpack.c.l.s4 1966171168
        %v1253 = vunpack.c.0.s8 %v1252
        %v1254 = vlaneseq
        %v1255 = vshrl.u32 %v1254, 7
        %v1256 = vsub.s32 %v1253, %v1255
        %v1257 = vrot.slane %v1241, %v1256
        %v1259 = vunpack.c.l.s4 1966171168
        %v1260 = vunpack.c.0.s8 %v1259
        %v1261 = vlaneseq
        %v1262 = vshrl.u32 %v1261, 7
        %v1263 = vsub.s32 %v1260, %v1262
        %v1264 = vrot.slane %v1242, %v1263
        %v1266 = vunpack.c.l.s4 1966171168
        %v1267 = vunpack.c.0.s8 %v1266
        %v1268 = vlaneseq
        %v1269 = vshrl.u32 %v1268, 7
        %v1270 = vsub.s32 %v1267, %v1269
        %v1271 = vrot.slane %v1243, %v1270
        %v1272 = vcombine.low %v1250, %v1257
        %v1273 = vcombine.low %v1264, %v1271
        %v1275 = vunpack.c.l.s4 1966171168
        %v1276 = vunpack.c.0.s8 %v1275
        %v1277 = vlaneseq
        %v1278 = vshrl.u32 %v1277, 7
        %v1279 = vsub.s32 %v1276, %v1278
        %v1280 = vrot.slane %v1272, %v1279
        %v1282 = vunpack.c.l.s4 1966171168
        %v1283 = vunpack.c.0.s8 %v1282
        %v1284 = vlaneseq
        %v1285 = vshrl.u32 %v1284, 7
        %v1286 = vsub.s32 %v1283, %v1285
        %v1287 = vrot.slane %v1273, %v1286
        %v1288 = vcombine.low %v1280, %v1287
        %v1290 = vunpack.c.l.s4 1966171168
        %v1291 = vunpack.c.0.s8 %v1290
        %v1292 = vlaneseq
        %v1293 = vshrl.u32 %v1292, 7
        %v1294 = vsub.s32 %v1291, %v1293
        %v1295 = vrot.slane %v992, %v1294
        %v1297 = vunpack.c.l.s4 1966171168
        %v1298 = vunpack.c.0.s8 %v1297
        %v1299 = vlaneseq
        %v1300 = vshrl.u32 %v1299, 7
        %v1301 = vsub.s32 %v1298, %v1300
        %v1302 = vrot.slane %v1295, %v1301
        %vm1303 = vcmask 31744
        %v1305 = vsel %vm1303, %v1043, 0
        %v1308 = vsel %vm1303, %v1092, 0
        %v1311 = vsel %vm1303, %v1141, 0
        %v1314 = vsel %vm1303, %v1190, 0
        %v1317 = vsel %vm1303, %v1239, 0
        %v1320 = vsel %vm1303, %v1288, 0
        %v1323 = vsel %vm1303, %v1302, 0
        %vm1325 = vcmask 1041408
        %v1327 = vsel %vm1325, %v994, 0
        %1329 = vmatprep.subr.bf16.mxu0 0
        %1330 = vmatpush1.bf16.msra.mxu0 0
        %1331 = vmatprep.subr.bf16.mxu0 0
        %1332 = vmatpush1.bf16.msra.mxu0 0
        %1333 = vmatprep.subr.bf16.mxu0 0
        %1334 = vmatpush1.bf16.msra.mxu0 0
        %1335 = vmatprep.subr.bf16.mxu0 0
        %1336 = vmatpush1.bf16.msra.mxu0 0
        %1337 = vmatprep.subr.bf16.mxu0 0
        %1338 = vmatpush1.bf16.msra.mxu0 0
        %1339 = vmatprep.subr.bf16.mxu0 0
        %1340 = vmatpush1.bf16.msra.mxu0 0
        %1341 = vmatprep.subr.bf16.mxu0 0
        %1342 = vmatpush1.bf16.msra.mxu0 0
        %1343 = vmatprep.subr.bf16.mxu0 0
        %1344 = vmatpush1.bf16.msra.mxu0 %v1327
        %1345 = vmatprep.subr.bf16.mxu0 0
        %1346 = vmatpush2.bf16.msra.mxu0 0
        %1347 = vmatprep.subr.bf16.mxu0 0
        %1348 = vmatpush2.bf16.msra.mxu0 0
        %1349 = vmatprep.subr.bf16.mxu0 0
        %1350 = vmatpush2.bf16.msra.mxu0 0
        %1351 = vmatprep.subr.bf16.mxu0 0
        %1352 = vmatpush2.bf16.msra.mxu0 0
        %1353 = vmatprep.subr.bf16.mxu0 0
        %1354 = vmatpush2.bf16.msra.mxu0 0
        %1355 = vmatprep.subr.bf16.mxu0 0
        %1356 = vmatpush2.bf16.msra.mxu0 0
        %1357 = vmatprep.subr.bf16.mxu0 0
        %1358 = vmatpush2.bf16.msra.mxu0 0
        %1359 = vmatprep.subr.bf16.mxu0 0
        %1360 = vmatpush2.bf16.msra.mxu0 0
        %1361 = vmatprep.mubr.bf16.mxu0 0
        %1362 = vmatmul.mubr.bf16.gmra.mxu0 %v1305
        %v1363 = vpop.f32.mrf.mxu0
        %v1364 = vadd.f32 0.0, %v1363
        %v1365 = vpop.f32.mrf.mxu0
        %v1366 = vpop.f32.mrf.mxu0
        %v1367 = vadd.f32 0.0, %v1366
        %v1368 = vpop.f32.mrf.mxu0
        %1369 = vmatprep.mubr.bf16.mxu0 0
        %1370 = vmatmul.mubr.bf16.gmra.mxu0 %v1308
        %v1371 = vpop.f32.mrf.mxu0
        %v1372 = vadd.f32 0.0, %v1371
        %v1373 = vpop.f32.mrf.mxu0
        %v1374 = vpop.f32.mrf.mxu0
        %v1375 = vadd.f32 0.0, %v1374
        %v1376 = vpop.f32.mrf.mxu0
        %1377 = vmatprep.mubr.bf16.mxu0 0
        %1378 = vmatmul.mubr.bf16.gmra.mxu0 %v1311
        %v1379 = vpop.f32.mrf.mxu0
        %v1380 = vadd.f32 0.0, %v1379
        %v1381 = vpop.f32.mrf.mxu0
        %v1382 = vpop.f32.mrf.mxu0
        %v1383 = vadd.f32 0.0, %v1382
        %v1384 = vpop.f32.mrf.mxu0
        %1385 = vmatprep.mubr.bf16.mxu0 0
        %1386 = vmatmul.mubr.bf16.gmra.mxu0 %v1314
        %v1387 = vpop.f32.mrf.mxu0
        %v1388 = vadd.f32 0.0, %v1387
        %v1389 = vpop.f32.mrf.mxu0
        %v1390 = vpop.f32.mrf.mxu0
        %v1391 = vadd.f32 0.0, %v1390
        %v1392 = vpop.f32.mrf.mxu0
        %1393 = vmatprep.mubr.bf16.mxu0 0
        %1394 = vmatmul.mubr.bf16.gmra.mxu0 %v1317
        %v1395 = vpop.f32.mrf.mxu0
        %v1396 = vadd.f32 0.0, %v1395
        %v1397 = vpop.f32.mrf.mxu0
        %v1398 = vpop.f32.mrf.mxu0
        %v1399 = vadd.f32 0.0, %v1398
        %v1400 = vpop.f32.mrf.mxu0
        %1401 = vmatprep.mubr.bf16.mxu0 0
        %1402 = vmatmul.mubr.bf16.gmra.mxu0 %v1320
        %v1403 = vpop.f32.mrf.mxu0
        %v1404 = vadd.f32 0.0, %v1403
        %v1405 = vpop.f32.mrf.mxu0
        %v1406 = vpop.f32.mrf.mxu0
        %v1407 = vadd.f32 0.0, %v1406
        %v1408 = vpop.f32.mrf.mxu0
        %1409 = vmatprep.mubr.bf16.mxu0 0
        %1410 = vmatmul.mubr.bf16.gmra.mxu0 %v1323
        %v1411 = vpop.f32.mrf.mxu0
        %v1412 = vadd.f32 0.0, %v1411
        %v1413 = vpop.f32.mrf.mxu0
        %v1414 = vpop.f32.mrf.mxu0
        %v1415 = vpop.f32.mrf.mxu0
        %1416 = vdwg.mxu0
        %v1417 = vcombine.low %v256, %v263
        %v1418 = vcombine.low %v264, %v265
        %v1419 = vcombine.low %v280, %v287
        %v1420 = vcombine.low %v288, %v303
        %v1422 = vunpack.c.l.s4 1966171168
        %v1423 = vunpack.c.0.s8 %v1422
        %v1424 = vlaneseq
        %v1425 = vshrl.u32 %v1424, 7
        %v1426 = vsub.s32 %v1423, %v1425
        %v1427 = vrot.slane %v1417, %v1426
        %v1429 = vunpack.c.l.s4 1966171168
        %v1430 = vunpack.c.0.s8 %v1429
        %v1431 = vlaneseq
        %v1432 = vshrl.u32 %v1431, 7
        %v1433 = vsub.s32 %v1430, %v1432
        %v1434 = vrot.slane %v1418, %v1433
        %v1436 = vunpack.c.l.s4 1966171168
        %v1437 = vunpack.c.0.s8 %v1436
        %v1438 = vlaneseq
        %v1439 = vshrl.u32 %v1438, 7
        %v1440 = vsub.s32 %v1437, %v1439
        %v1441 = vrot.slane %v1419, %v1440
        %v1443 = vunpack.c.l.s4 1966171168
        %v1444 = vunpack.c.0.s8 %v1443
        %v1445 = vlaneseq
        %v1446 = vshrl.u32 %v1445, 7
        %v1447 = vsub.s32 %v1444, %v1446
        %v1448 = vrot.slane %v1420, %v1447
        %v1449 = vcombine.low %v1427, %v1434
        %v1450 = vcombine.low %v1441, %v1448
        %v1452 = vunpack.c.l.s4 1966171168
        %v1453 = vunpack.c.0.s8 %v1452
        %v1454 = vlaneseq
        %v1455 = vshrl.u32 %v1454, 7
        %v1456 = vsub.s32 %v1453, %v1455
        %v1457 = vrot.slane %v1449, %v1456
        %v1459 = vunpack.c.l.s4 1966171168
        %v1460 = vunpack.c.0.s8 %v1459
        %v1461 = vlaneseq
        %v1462 = vshrl.u32 %v1461, 7
        %v1463 = vsub.s32 %v1460, %v1462
        %v1464 = vrot.slane %v1450, %v1463
        %v1465 = vcombine.low %v1457, %v1464
        %v1466 = vcombine.low %v310, %v311
        %v1467 = vcombine.low %v312, %v327
        %v1468 = vcombine.low %v334, %v335
        %v1469 = vcombine.low %v350, %v357
        %v1471 = vunpack.c.l.s4 1966171168
        %v1472 = vunpack.c.0.s8 %v1471
        %v1473 = vlaneseq
        %v1474 = vshrl.u32 %v1473, 7
        %v1475 = vsub.s32 %v1472, %v1474
        %v1476 = vrot.slane %v1466, %v1475
        %v1478 = vunpack.c.l.s4 1966171168
        %v1479 = vunpack.c.0.s8 %v1478
        %v1480 = vlaneseq
        %v1481 = vshrl.u32 %v1480, 7
        %v1482 = vsub.s32 %v1479, %v1481
        %v1483 = vrot.slane %v1467, %v1482
        %v1485 = vunpack.c.l.s4 1966171168
        %v1486 = vunpack.c.0.s8 %v1485
        %v1487 = vlaneseq
        %v1488 = vshrl.u32 %v1487, 7
        %v1489 = vsub.s32 %v1486, %v1488
        %v1490 = vrot.slane %v1468, %v1489
        %v1492 = vunpack.c.l.s4 1966171168
        %v1493 = vunpack.c.0.s8 %v1492
        %v1494 = vlaneseq
        %v1495 = vshrl.u32 %v1494, 7
        %v1496 = vsub.s32 %v1493, %v1495
        %v1497 = vrot.slane %v1469, %v1496
        %v1498 = vcombine.low %v1476, %v1483
        %v1499 = vcombine.low %v1490, %v1497
        %v1501 = vunpack.c.l.s4 1966171168
        %v1502 = vunpack.c.0.s8 %v1501
        %v1503 = vlaneseq
        %v1504 = vshrl.u32 %v1503, 7
        %v1505 = vsub.s32 %v1502, %v1504
        %v1506 = vrot.slane %v1498, %v1505
        %v1508 = vunpack.c.l.s4 1966171168
        %v1509 = vunpack.c.0.s8 %v1508
        %v1510 = vlaneseq
        %v1511 = vshrl.u32 %v1510, 7
        %v1512 = vsub.s32 %v1509, %v1511
        %v1513 = vrot.slane %v1499, %v1512
        %v1514 = vcombine.low %v1506, %v1513
        %v1515 = vcombine.low %v358, %v359
        %v1516 = vcombine.low %v374, %v381
        %v1517 = vcombine.low %v382, %v397
        %v1518 = vcombine.low %v404, %v405
        %v1520 = vunpack.c.l.s4 1966171168
        %v1521 = vunpack.c.0.s8 %v1520
        %v1522 = vlaneseq
        %v1523 = vshrl.u32 %v1522, 7
        %v1524 = vsub.s32 %v1521, %v1523
        %v1525 = vrot.slane %v1515, %v1524
        %v1527 = vunpack.c.l.s4 1966171168
        %v1528 = vunpack.c.0.s8 %v1527
        %v1529 = vlaneseq
        %v1530 = vshrl.u32 %v1529, 7
        %v1531 = vsub.s32 %v1528, %v1530
        %v1532 = vrot.slane %v1516, %v1531
        %v1534 = vunpack.c.l.s4 1966171168
        %v1535 = vunpack.c.0.s8 %v1534
        %v1536 = vlaneseq
        %v1537 = vshrl.u32 %v1536, 7
        %v1538 = vsub.s32 %v1535, %v1537
        %v1539 = vrot.slane %v1517, %v1538
        %v1541 = vunpack.c.l.s4 1966171168
        %v1542 = vunpack.c.0.s8 %v1541
        %v1543 = vlaneseq
        %v1544 = vshrl.u32 %v1543, 7
        %v1545 = vsub.s32 %v1542, %v1544
        %v1546 = vrot.slane %v1518, %v1545
        %v1547 = vcombine.low %v1525, %v1532
        %v1548 = vcombine.low %v1539, %v1546
        %v1550 = vunpack.c.l.s4 1966171168
        %v1551 = vunpack.c.0.s8 %v1550
        %v1552 = vlaneseq
        %v1553 = vshrl.u32 %v1552, 7
        %v1554 = vsub.s32 %v1551, %v1553
        %v1555 = vrot.slane %v1547, %v1554
        %v1557 = vunpack.c.l.s4 1966171168
        %v1558 = vunpack.c.0.s8 %v1557
        %v1559 = vlaneseq
        %v1560 = vshrl.u32 %v1559, 7
        %v1561 = vsub.s32 %v1558, %v1560
        %v1562 = vrot.slane %v1548, %v1561
        %v1563 = vcombine.low %v1555, %v1562
        %v1564 = vcombine.low %v406, %v421
        %v1565 = vcombine.low %v428, %v429
        %v1566 = vcombine.low %v444, %v451
        %v1567 = vcombine.low %v452, %v453
        %v1569 = vunpack.c.l.s4 1966171168
        %v1570 = vunpack.c.0.s8 %v1569
        %v1571 = vlaneseq
        %v1572 = vshrl.u32 %v1571, 7
        %v1573 = vsub.s32 %v1570, %v1572
        %v1574 = vrot.slane %v1564, %v1573
        %v1576 = vunpack.c.l.s4 1966171168
        %v1577 = vunpack.c.0.s8 %v1576
        %v1578 = vlaneseq
        %v1579 = vshrl.u32 %v1578, 7
        %v1580 = vsub.s32 %v1577, %v1579
        %v1581 = vrot.slane %v1565, %v1580
        %v1583 = vunpack.c.l.s4 1966171168
        %v1584 = vunpack.c.0.s8 %v1583
        %v1585 = vlaneseq
        %v1586 = vshrl.u32 %v1585, 7
        %v1587 = vsub.s32 %v1584, %v1586
        %v1588 = vrot.slane %v1566, %v1587
        %v1590 = vunpack.c.l.s4 1966171168
        %v1591 = vunpack.c.0.s8 %v1590
        %v1592 = vlaneseq
        %v1593 = vshrl.u32 %v1592, 7
        %v1594 = vsub.s32 %v1591, %v1593
        %v1595 = vrot.slane %v1567, %v1594
        %v1596 = vcombine.low %v1574, %v1581
        %v1597 = vcombine.low %v1588, %v1595
        %v1599 = vunpack.c.l.s4 1966171168
        %v1600 = vunpack.c.0.s8 %v1599
        %v1601 = vlaneseq
        %v1602 = vshrl.u32 %v1601, 7
        %v1603 = vsub.s32 %v1600, %v1602
        %v1604 = vrot.slane %v1596, %v1603
        %v1606 = vunpack.c.l.s4 1966171168
        %v1607 = vunpack.c.0.s8 %v1606
        %v1608 = vlaneseq
        %v1609 = vshrl.u32 %v1608, 7
        %v1610 = vsub.s32 %v1607, %v1609
        %v1611 = vrot.slane %v1597, %v1610
        %v1612 = vcombine.low %v1604, %v1611
        %v1613 = vcombine.low %v468, %v475
        %v1614 = vcombine.low %v476, %v491
        %v1615 = vcombine.low %v498, %v499
        %v1616 = vcombine.low %v500, %v515
        %v1618 = vunpack.c.l.s4 1966171168
        %v1619 = vunpack.c.0.s8 %v1618
        %v1620 = vlaneseq
        %v1621 = vshrl.u32 %v1620, 7
        %v1622 = vsub.s32 %v1619, %v1621
        %v1623 = vrot.slane %v1613, %v1622
        %v1625 = vunpack.c.l.s4 1966171168
        %v1626 = vunpack.c.0.s8 %v1625
        %v1627 = vlaneseq
        %v1628 = vshrl.u32 %v1627, 7
        %v1629 = vsub.s32 %v1626, %v1628
        %v1630 = vrot.slane %v1614, %v1629
        %v1632 = vunpack.c.l.s4 1966171168
        %v1633 = vunpack.c.0.s8 %v1632
        %v1634 = vlaneseq
        %v1635 = vshrl.u32 %v1634, 7
        %v1636 = vsub.s32 %v1633, %v1635
        %v1637 = vrot.slane %v1615, %v1636
        %v1639 = vunpack.c.l.s4 1966171168
        %v1640 = vunpack.c.0.s8 %v1639
        %v1641 = vlaneseq
        %v1642 = vshrl.u32 %v1641, 7
        %v1643 = vsub.s32 %v1640, %v1642
        %v1644 = vrot.slane %v1616, %v1643
        %v1645 = vcombine.low %v1623, %v1630
        %v1646 = vcombine.low %v1637, %v1644
        %v1648 = vunpack.c.l.s4 1966171168
        %v1649 = vunpack.c.0.s8 %v1648
        %v1650 = vlaneseq
        %v1651 = vshrl.u32 %v1650, 7
        %v1652 = vsub.s32 %v1649, %v1651
        %v1653 = vrot.slane %v1645, %v1652
        %v1655 = vunpack.c.l.s4 1966171168
        %v1656 = vunpack.c.0.s8 %v1655
        %v1657 = vlaneseq
        %v1658 = vshrl.u32 %v1657, 7
        %v1659 = vsub.s32 %v1656, %v1658
        %v1660 = vrot.slane %v1646, %v1659
        %v1661 = vcombine.low %v1653, %v1660
        %v1662 = vcombine.low %v522, %v523
        %v1663 = vcombine.low %v538, %v545
        %v1664 = vcombine.low %v546, %v547
        %v1665 = vcombine.low %v562, %v569
        %v1667 = vunpack.c.l.s4 1966171168
        %v1668 = vunpack.c.0.s8 %v1667
        %v1669 = vlaneseq
        %v1670 = vshrl.u32 %v1669, 7
        %v1671 = vsub.s32 %v1668, %v1670
        %v1672 = vrot.slane %v1662, %v1671
        %v1674 = vunpack.c.l.s4 1966171168
        %v1675 = vunpack.c.0.s8 %v1674
        %v1676 = vlaneseq
        %v1677 = vshrl.u32 %v1676, 7
        %v1678 = vsub.s32 %v1675, %v1677
        %v1679 = vrot.slane %v1663, %v1678
        %v1681 = vunpack.c.l.s4 1966171168
        %v1682 = vunpack.c.0.s8 %v1681
        %v1683 = vlaneseq
        %v1684 = vshrl.u32 %v1683, 7
        %v1685 = vsub.s32 %v1682, %v1684
        %v1686 = vrot.slane %v1664, %v1685
        %v1688 = vunpack.c.l.s4 1966171168
        %v1689 = vunpack.c.0.s8 %v1688
        %v1690 = vlaneseq
        %v1691 = vshrl.u32 %v1690, 7
        %v1692 = vsub.s32 %v1689, %v1691
        %v1693 = vrot.slane %v1665, %v1692
        %v1694 = vcombine.low %v1672, %v1679
        %v1695 = vcombine.low %v1686, %v1693
        %v1697 = vunpack.c.l.s4 1966171168
        %v1698 = vunpack.c.0.s8 %v1697
        %v1699 = vlaneseq
        %v1700 = vshrl.u32 %v1699, 7
        %v1701 = vsub.s32 %v1698, %v1700
        %v1702 = vrot.slane %v1694, %v1701
        %v1704 = vunpack.c.l.s4 1966171168
        %v1705 = vunpack.c.0.s8 %v1704
        %v1706 = vlaneseq
        %v1707 = vshrl.u32 %v1706, 7
        %v1708 = vsub.s32 %v1705, %v1707
        %v1709 = vrot.slane %v1695, %v1708
        %v1710 = vcombine.low %v1702, %v1709
        %v1712 = vunpack.c.l.s4 1966171168
        %v1713 = vunpack.c.0.s8 %v1712
        %v1714 = vlaneseq
        %v1715 = vshrl.u32 %v1714, 7
        %v1716 = vsub.s32 %v1713, %v1715
        %v1717 = vrot.slane %v570, %v1716
        %v1719 = vunpack.c.l.s4 1966171168
        %v1720 = vunpack.c.0.s8 %v1719
        %v1721 = vlaneseq
        %v1722 = vshrl.u32 %v1721, 7
        %v1723 = vsub.s32 %v1720, %v1722
        %v1724 = vrot.slane %v1717, %v1723
        %v1726 = vsel %vm1303, %v1465, 0
        %v1729 = vsel %vm1303, %v1514, 0
        %v1732 = vsel %vm1303, %v1563, 0
        %v1735 = vsel %vm1303, %v1612, 0
        %v1738 = vsel %vm1303, %v1661, 0
        %v1741 = vsel %vm1303, %v1710, 0
        %v1744 = vsel %vm1303, %v1724, 0
        %v1747 = vsel %vm1325, %v571, 0
        %1749 = vmatprep.subr.bf16.mxu0 0
        %1750 = vmatpush1.bf16.msra.mxu0 0
        %1751 = vmatprep.subr.bf16.mxu0 0
        %1752 = vmatpush1.bf16.msra.mxu0 0
        %1753 = vmatprep.subr.bf16.mxu0 0
        %1754 = vmatpush1.bf16.msra.mxu0 0
        %1755 = vmatprep.subr.bf16.mxu0 0
        %1756 = vmatpush1.bf16.msra.mxu0 0
        %1757 = vmatprep.subr.bf16.mxu0 0
        %1758 = vmatpush1.bf16.msra.mxu0 0
        %1759 = vmatprep.subr.bf16.mxu0 0
        %1760 = vmatpush1.bf16.msra.mxu0 0
        %1761 = vmatprep.subr.bf16.mxu0 0
        %1762 = vmatpush1.bf16.msra.mxu0 0
        %1763 = vmatprep.subr.bf16.mxu0 0
        %1764 = vmatpush1.bf16.msra.mxu0 %v1747
        %1765 = vmatprep.subr.bf16.mxu0 0
        %1766 = vmatpush2.bf16.msra.mxu0 0
        %1767 = vmatprep.subr.bf16.mxu0 0
        %1768 = vmatpush2.bf16.msra.mxu0 0
        %1769 = vmatprep.subr.bf16.mxu0 0
        %1770 = vmatpush2.bf16.msra.mxu0 0
        %1771 = vmatprep.subr.bf16.mxu0 0
        %1772 = vmatpush2.bf16.msra.mxu0 0
        %1773 = vmatprep.subr.bf16.mxu0 0
        %1774 = vmatpush2.bf16.msra.mxu0 0
        %1775 = vmatprep.subr.bf16.mxu0 0
        %1776 = vmatpush2.bf16.msra.mxu0 0
        %1777 = vmatprep.subr.bf16.mxu0 0
        %1778 = vmatpush2.bf16.msra.mxu0 0
        %1779 = vmatprep.subr.bf16.mxu0 0
        %1780 = vmatpush2.bf16.msra.mxu0 0
        %1781 = vmatprep.mubr.bf16.mxu0 0
        %1782 = vmatmul.mubr.bf16.gmra.mxu0 %v1726
        %v1783 = vpop.f32.mrf.mxu0
        %v1784 = vadd.f32 %v1364, %v1783
        %v1785 = vpop.f32.mrf.mxu0
        %v1786 = vpop.f32.mrf.mxu0
        %v1787 = vadd.f32 %v1367, %v1786
        %v1788 = vpop.f32.mrf.mxu0
        %1789 = vmatprep.mubr.bf16.mxu0 0
        %1790 = vmatmul.mubr.bf16.gmra.mxu0 %v1729
        %v1791 = vpop.f32.mrf.mxu0
        %v1792 = vadd.f32 %v1372, %v1791
        %v1793 = vpop.f32.mrf.mxu0
        %v1794 = vpop.f32.mrf.mxu0
        %v1795 = vadd.f32 %v1375, %v1794
        %v1796 = vpop.f32.mrf.mxu0
        %1797 = vmatprep.mubr.bf16.mxu0 0
        %1798 = vmatmul.mubr.bf16.gmra.mxu0 %v1732
        %v1799 = vpop.f32.mrf.mxu0
        %v1800 = vadd.f32 %v1380, %v1799
        %v1801 = vpop.f32.mrf.mxu0
        %v1802 = vpop.f32.mrf.mxu0
        %v1803 = vadd.f32 %v1383, %v1802
        %v1804 = vpop.f32.mrf.mxu0
        %1805 = vmatprep.mubr.bf16.mxu0 0
        %1806 = vmatmul.mubr.bf16.gmra.mxu0 %v1735
        %v1807 = vpop.f32.mrf.mxu0
        %v1808 = vadd.f32 %v1388, %v1807
        %v1809 = vpop.f32.mrf.mxu0
        %v1810 = vpop.f32.mrf.mxu0
        %v1811 = vadd.f32 %v1391, %v1810
        %v1812 = vpop.f32.mrf.mxu0
        %1813 = vmatprep.mubr.bf16.mxu0 0
        %1814 = vmatmul.mubr.bf16.gmra.mxu0 %v1738
        %v1815 = vpop.f32.mrf.mxu0
        %v1816 = vadd.f32 %v1396, %v1815
        %v1817 = vpop.f32.mrf.mxu0
        %v1818 = vpop.f32.mrf.mxu0
        %v1819 = vadd.f32 %v1399, %v1818
        %v1820 = vpop.f32.mrf.mxu0
        %1821 = vmatprep.mubr.bf16.mxu0 0
        %1822 = vmatmul.mubr.bf16.gmra.mxu0 %v1741
        %v1823 = vpop.f32.mrf.mxu0
        %v1824 = vadd.f32 %v1404, %v1823
        %v1825 = vpop.f32.mrf.mxu0
        %v1826 = vpop.f32.mrf.mxu0
        %v1827 = vadd.f32 %v1407, %v1826
        %v1828 = vpop.f32.mrf.mxu0
        %1829 = vmatprep.mubr.bf16.mxu0 0
        %1830 = vmatmul.mubr.bf16.gmra.mxu0 %v1744
        %v1831 = vpop.f32.mrf.mxu0
        %v1832 = vadd.f32 %v1412, %v1831
        %v1833 = vpop.f32.mrf.mxu0
        %v1834 = vpop.f32.mrf.mxu0
        %v1835 = vpop.f32.mrf.mxu0
        %1836 = vdwg.mxu0
        %s1837 = scalar_lea.vmem %s1, 4
        %v1838 = vld [vmem:[%s1837] sm:$0x3]
        %v1839 = vcombine.low %v263, %v264
        %v1840 = vcombine.low %v265, %v280
        %v1841 = vcombine.low %v287, %v288
        %v1842 = vcombine.low %v572, %v310
        %v1844 = vunpack.c.l.s4 1966171168
        %v1845 = vunpack.c.0.s8 %v1844
        %v1846 = vlaneseq
        %v1847 = vshrl.u32 %v1846, 7
        %v1848 = vsub.s32 %v1845, %v1847
        %v1849 = vrot.slane %v1839, %v1848
        %v1851 = vunpack.c.l.s4 1966171168
        %v1852 = vunpack.c.0.s8 %v1851
        %v1853 = vlaneseq
        %v1854 = vshrl.u32 %v1853, 7
        %v1855 = vsub.s32 %v1852, %v1854
        %v1856 = vrot.slane %v1840, %v1855
        %v1858 = vunpack.c.l.s4 1966171168
        %v1859 = vunpack.c.0.s8 %v1858
        %v1860 = vlaneseq
        %v1861 = vshrl.u32 %v1860, 7
        %v1862 = vsub.s32 %v1859, %v1861
        %v1863 = vrot.slane %v1841, %v1862
        %v1865 = vunpack.c.l.s4 1966171168
        %v1866 = vunpack.c.0.s8 %v1865
        %v1867 = vlaneseq
        %v1868 = vshrl.u32 %v1867, 7
        %v1869 = vsub.s32 %v1866, %v1868
        %v1870 = vrot.slane %v1842, %v1869
        %v1871 = vcombine.low %v1849, %v1856
        %v1872 = vcombine.low %v1863, %v1870
        %v1874 = vunpack.c.l.s4 1966171168
        %v1875 = vunpack.c.0.s8 %v1874
        %v1876 = vlaneseq
        %v1877 = vshrl.u32 %v1876, 7
        %v1878 = vsub.s32 %v1875, %v1877
        %v1879 = vrot.slane %v1871, %v1878
        %v1881 = vunpack.c.l.s4 1966171168
        %v1882 = vunpack.c.0.s8 %v1881
        %v1883 = vlaneseq
        %v1884 = vshrl.u32 %v1883, 7
        %v1885 = vsub.s32 %v1882, %v1884
        %v1886 = vrot.slane %v1872, %v1885
        %v1887 = vcombine.low %v1879, %v1886
        %v1888 = vcombine.low %v311, %v312
        %v1889 = vcombine.low %v327, %v334
        %v1890 = vcombine.low %v335, %v573
        %v1891 = vcombine.low %v357, %v358
        %v1893 = vunpack.c.l.s4 1966171168
        %v1894 = vunpack.c.0.s8 %v1893
        %v1895 = vlaneseq
        %v1896 = vshrl.u32 %v1895, 7
        %v1897 = vsub.s32 %v1894, %v1896
        %v1898 = vrot.slane %v1888, %v1897
        %v1900 = vunpack.c.l.s4 1966171168
        %v1901 = vunpack.c.0.s8 %v1900
        %v1902 = vlaneseq
        %v1903 = vshrl.u32 %v1902, 7
        %v1904 = vsub.s32 %v1901, %v1903
        %v1905 = vrot.slane %v1889, %v1904
        %v1907 = vunpack.c.l.s4 1966171168
        %v1908 = vunpack.c.0.s8 %v1907
        %v1909 = vlaneseq
        %v1910 = vshrl.u32 %v1909, 7
        %v1911 = vsub.s32 %v1908, %v1910
        %v1912 = vrot.slane %v1890, %v1911
        %v1914 = vunpack.c.l.s4 1966171168
        %v1915 = vunpack.c.0.s8 %v1914
        %v1916 = vlaneseq
        %v1917 = vshrl.u32 %v1916, 7
        %v1918 = vsub.s32 %v1915, %v1917
        %v1919 = vrot.slane %v1891, %v1918
        %v1920 = vcombine.low %v1898, %v1905
        %v1921 = vcombine.low %v1912, %v1919
        %v1923 = vunpack.c.l.s4 1966171168
        %v1924 = vunpack.c.0.s8 %v1923
        %v1925 = vlaneseq
        %v1926 = vshrl.u32 %v1925, 7
        %v1927 = vsub.s32 %v1924, %v1926
        %v1928 = vrot.slane %v1920, %v1927
        %v1930 = vunpack.c.l.s4 1966171168
        %v1931 = vunpack.c.0.s8 %v1930
        %v1932 = vlaneseq
        %v1933 = vshrl.u32 %v1932, 7
        %v1934 = vsub.s32 %v1931, %v1933
        %v1935 = vrot.slane %v1921, %v1934
        %v1936 = vcombine.low %v1928, %v1935
        %v1937 = vcombine.low %v359, %v374
        %v1938 = vcombine.low %v381, %v382
        %v1939 = vcombine.low %v574, %v404
        %v1940 = vcombine.low %v405, %v406
        %v1942 = vunpack.c.l.s4 1966171168
        %v1943 = vunpack.c.0.s8 %v1942
        %v1944 = vlaneseq
        %v1945 = vshrl.u32 %v1944, 7
        %v1946 = vsub.s32 %v1943, %v1945
        %v1947 = vrot.slane %v1937, %v1946
        %v1949 = vunpack.c.l.s4 1966171168
        %v1950 = vunpack.c.0.s8 %v1949
        %v1951 = vlaneseq
        %v1952 = vshrl.u32 %v1951, 7
        %v1953 = vsub.s32 %v1950, %v1952
        %v1954 = vrot.slane %v1938, %v1953
        %v1956 = vunpack.c.l.s4 1966171168
        %v1957 = vunpack.c.0.s8 %v1956
        %v1958 = vlaneseq
        %v1959 = vshrl.u32 %v1958, 7
        %v1960 = vsub.s32 %v1957, %v1959
        %v1961 = vrot.slane %v1939, %v1960
        %v1963 = vunpack.c.l.s4 1966171168
        %v1964 = vunpack.c.0.s8 %v1963
        %v1965 = vlaneseq
        %v1966 = vshrl.u32 %v1965, 7
        %v1967 = vsub.s32 %v1964, %v1966
        %v1968 = vrot.slane %v1940, %v1967
        %v1969 = vcombine.low %v1947, %v1954
        %v1970 = vcombine.low %v1961, %v1968
        %v1972 = vunpack.c.l.s4 1966171168
        %v1973 = vunpack.c.0.s8 %v1972
        %v1974 = vlaneseq
        %v1975 = vshrl.u32 %v1974, 7
        %v1976 = vsub.s32 %v1973, %v1975
        %v1977 = vrot.slane %v1969, %v1976
        %v1979 = vunpack.c.l.s4 1966171168
        %v1980 = vunpack.c.0.s8 %v1979
        %v1981 = vlaneseq
        %v1982 = vshrl.u32 %v1981, 7
        %v1983 = vsub.s32 %v1980, %v1982
        %v1984 = vrot.slane %v1970, %v1983
        %v1985 = vcombine.low %v1977, %v1984
        %v1986 = vcombine.low %v421, %v428
        %v1987 = vcombine.low %v429, %v575
        %v1988 = vcombine.low %v451, %v452
        %v1989 = vcombine.low %v453, %v468
        %v1991 = vunpack.c.l.s4 1966171168
        %v1992 = vunpack.c.0.s8 %v1991
        %v1993 = vlaneseq
        %v1994 = vshrl.u32 %v1993, 7
        %v1995 = vsub.s32 %v1992, %v1994
        %v1996 = vrot.slane %v1986, %v1995
        %v1998 = vunpack.c.l.s4 1966171168
        %v1999 = vunpack.c.0.s8 %v1998
        %v2000 = vlaneseq
        %v2001 = vshrl.u32 %v2000, 7
        %v2002 = vsub.s32 %v1999, %v2001
        %v2003 = vrot.slane %v1987, %v2002
        %v2005 = vunpack.c.l.s4 1966171168
        %v2006 = vunpack.c.0.s8 %v2005
        %v2007 = vlaneseq
        %v2008 = vshrl.u32 %v2007, 7
        %v2009 = vsub.s32 %v2006, %v2008
        %v2010 = vrot.slane %v1988, %v2009
        %v2012 = vunpack.c.l.s4 1966171168
        %v2013 = vunpack.c.0.s8 %v2012
        %v2014 = vlaneseq
        %v2015 = vshrl.u32 %v2014, 7
        %v2016 = vsub.s32 %v2013, %v2015
        %v2017 = vrot.slane %v1989, %v2016
        %v2018 = vcombine.low %v1996, %v2003
        %v2019 = vcombine.low %v2010, %v2017
        %v2021 = vunpack.c.l.s4 1966171168
        %v2022 = vunpack.c.0.s8 %v2021
        %v2023 = vlaneseq
        %v2024 = vshrl.u32 %v2023, 7
        %v2025 = vsub.s32 %v2022, %v2024
        %v2026 = vrot.slane %v2018, %v2025
        %v2028 = vunpack.c.l.s4 1966171168
        %v2029 = vunpack.c.0.s8 %v2028
        %v2030 = vlaneseq
        %v2031 = vshrl.u32 %v2030, 7
        %v2032 = vsub.s32 %v2029, %v2031
        %v2033 = vrot.slane %v2019, %v2032
        %v2034 = vcombine.low %v2026, %v2033
        %v2035 = vcombine.low %v475, %v476
        %v2036 = vcombine.low %v576, %v498
        %v2037 = vcombine.low %v499, %v500
        %v2038 = vcombine.low %v515, %v522
        %v2040 = vunpack.c.l.s4 1966171168
        %v2041 = vunpack.c.0.s8 %v2040
        %v2042 = vlaneseq
        %v2043 = vshrl.u32 %v2042, 7
        %v2044 = vsub.s32 %v2041, %v2043
        %v2045 = vrot.slane %v2035, %v2044
        %v2047 = vunpack.c.l.s4 1966171168
        %v2048 = vunpack.c.0.s8 %v2047
        %v2049 = vlaneseq
        %v2050 = vshrl.u32 %v2049, 7
        %v2051 = vsub.s32 %v2048, %v2050
        %v2052 = vrot.slane %v2036, %v2051
        %v2054 = vunpack.c.l.s4 1966171168
        %v2055 = vunpack.c.0.s8 %v2054
        %v2056 = vlaneseq
        %v2057 = vshrl.u32 %v2056, 7
        %v2058 = vsub.s32 %v2055, %v2057
        %v2059 = vrot.slane %v2037, %v2058
        %v2061 = vunpack.c.l.s4 1966171168
        %v2062 = vunpack.c.0.s8 %v2061
        %v2063 = vlaneseq
        %v2064 = vshrl.u32 %v2063, 7
        %v2065 = vsub.s32 %v2062, %v2064
        %v2066 = vrot.slane %v2038, %v2065
        %v2067 = vcombine.low %v2045, %v2052
        %v2068 = vcombine.low %v2059, %v2066
        %v2070 = vunpack.c.l.s4 1966171168
        %v2071 = vunpack.c.0.s8 %v2070
        %v2072 = vlaneseq
        %v2073 = vshrl.u32 %v2072, 7
        %v2074 = vsub.s32 %v2071, %v2073
        %v2075 = vrot.slane %v2067, %v2074
        %v2077 = vunpack.c.l.s4 1966171168
        %v2078 = vunpack.c.0.s8 %v2077
        %v2079 = vlaneseq
        %v2080 = vshrl.u32 %v2079, 7
        %v2081 = vsub.s32 %v2078, %v2080
        %v2082 = vrot.slane %v2068, %v2081
        %v2083 = vcombine.low %v2075, %v2082
        %v2084 = vcombine.low %v523, %v577
        %v2085 = vcombine.low %v545, %v546
        %v2086 = vcombine.low %v547, %v562
        %v2087 = vcombine.low %v569, %v570
        %v2089 = vunpack.c.l.s4 1966171168
        %v2090 = vunpack.c.0.s8 %v2089
        %v2091 = vlaneseq
        %v2092 = vshrl.u32 %v2091, 7
        %v2093 = vsub.s32 %v2090, %v2092
        %v2094 = vrot.slane %v2084, %v2093
        %v2096 = vunpack.c.l.s4 1966171168
        %v2097 = vunpack.c.0.s8 %v2096
        %v2098 = vlaneseq
        %v2099 = vshrl.u32 %v2098, 7
        %v2100 = vsub.s32 %v2097, %v2099
        %v2101 = vrot.slane %v2085, %v2100
        %v2103 = vunpack.c.l.s4 1966171168
        %v2104 = vunpack.c.0.s8 %v2103
        %v2105 = vlaneseq
        %v2106 = vshrl.u32 %v2105, 7
        %v2107 = vsub.s32 %v2104, %v2106
        %v2108 = vrot.slane %v2086, %v2107
        %v2110 = vunpack.c.l.s4 1966171168
        %v2111 = vunpack.c.0.s8 %v2110
        %v2112 = vlaneseq
        %v2113 = vshrl.u32 %v2112, 7
        %v2114 = vsub.s32 %v2111, %v2113
        %v2115 = vrot.slane %v2087, %v2114
        %v2116 = vcombine.low %v2094, %v2101
        %v2117 = vcombine.low %v2108, %v2115
        %v2119 = vunpack.c.l.s4 1966171168
        %v2120 = vunpack.c.0.s8 %v2119
        %v2121 = vlaneseq
        %v2122 = vshrl.u32 %v2121, 7
        %v2123 = vsub.s32 %v2120, %v2122
        %v2124 = vrot.slane %v2116, %v2123
        %v2126 = vunpack.c.l.s4 1966171168
        %v2127 = vunpack.c.0.s8 %v2126
        %v2128 = vlaneseq
        %v2129 = vshrl.u32 %v2128, 7
        %v2130 = vsub.s32 %v2127, %v2129
        %v2131 = vrot.slane %v2117, %v2130
        %v2132 = vcombine.low %v2124, %v2131
        %v2134 = vunpack.c.l.s4 1966171168
        %v2135 = vunpack.c.0.s8 %v2134
        %v2136 = vlaneseq
        %v2137 = vshrl.u32 %v2136, 7
        %v2138 = vsub.s32 %v2135, %v2137
        %v2139 = vrot.slane %v578, %v2138
        %v2141 = vunpack.c.l.s4 1966171168
        %v2142 = vunpack.c.0.s8 %v2141
        %v2143 = vlaneseq
        %v2144 = vshrl.u32 %v2143, 7
        %v2145 = vsub.s32 %v2142, %v2144
        %v2146 = vrot.slane %v2139, %v2145
        %v2148 = vsel %vm1303, %v1887, 0
        %v2151 = vsel %vm1303, %v1936, 0
        %v2154 = vsel %vm1303, %v1985, 0
        %v2157 = vsel %vm1303, %v2034, 0
        %v2160 = vsel %vm1303, %v2083, 0
        %v2163 = vsel %vm1303, %v2132, 0
        %v2166 = vsel %vm1303, %v2146, 0
        %v2169 = vsel %vm1325, %v1838, 0
        %2171 = vmatprep.subr.bf16.mxu0 0
        %2172 = vmatpush1.bf16.msra.mxu0 0
        %2173 = vmatprep.subr.bf16.mxu0 0
        %2174 = vmatpush1.bf16.msra.mxu0 0
        %2175 = vmatprep.subr.bf16.mxu0 0
        %2176 = vmatpush1.bf16.msra.mxu0 0
        %2177 = vmatprep.subr.bf16.mxu0 0
        %2178 = vmatpush1.bf16.msra.mxu0 0
        %2179 = vmatprep.subr.bf16.mxu0 0
        %2180 = vmatpush1.bf16.msra.mxu0 0
        %2181 = vmatprep.subr.bf16.mxu0 0
        %2182 = vmatpush1.bf16.msra.mxu0 0
        %2183 = vmatprep.subr.bf16.mxu0 0
        %2184 = vmatpush1.bf16.msra.mxu0 0
        %2185 = vmatprep.subr.bf16.mxu0 0
        %2186 = vmatpush1.bf16.msra.mxu0 %v2169
        %2187 = vmatprep.subr.bf16.mxu0 0
        %2188 = vmatpush2.bf16.msra.mxu0 0
        %2189 = vmatprep.subr.bf16.mxu0 0
        %2190 = vmatpush2.bf16.msra.mxu0 0
        %2191 = vmatprep.subr.bf16.mxu0 0
        %2192 = vmatpush2.bf16.msra.mxu0 0
        %2193 = vmatprep.subr.bf16.mxu0 0
        %2194 = vmatpush2.bf16.msra.mxu0 0
        %2195 = vmatprep.subr.bf16.mxu0 0
        %2196 = vmatpush2.bf16.msra.mxu0 0
        %2197 = vmatprep.subr.bf16.mxu0 0
        %2198 = vmatpush2.bf16.msra.mxu0 0
        %2199 = vmatprep.subr.bf16.mxu0 0
        %2200 = vmatpush2.bf16.msra.mxu0 0
        %2201 = vmatprep.subr.bf16.mxu0 0
        %2202 = vmatpush2.bf16.msra.mxu0 0
        %2203 = vmatprep.mubr.bf16.mxu0 0
        %2204 = vmatmul.mubr.bf16.gmra.mxu0 %v2148
        %v2205 = vpop.f32.mrf.mxu0
        %v2206 = vadd.f32 0.0, %v2205
        %v2207 = vpop.f32.mrf.mxu0
        %v2208 = vpop.f32.mrf.mxu0
        %v2209 = vadd.f32 0.0, %v2208
        %v2210 = vpop.f32.mrf.mxu0
        %2211 = vmatprep.mubr.bf16.mxu0 0
        %2212 = vmatmul.mubr.bf16.gmra.mxu0 %v2151
        %v2213 = vpop.f32.mrf.mxu0
        %v2214 = vadd.f32 0.0, %v2213
        %v2215 = vpop.f32.mrf.mxu0
        %v2216 = vpop.f32.mrf.mxu0
        %v2217 = vadd.f32 0.0, %v2216
        %v2218 = vpop.f32.mrf.mxu0
        %2219 = vmatprep.mubr.bf16.mxu0 0
        %2220 = vmatmul.mubr.bf16.gmra.mxu0 %v2154
        %v2221 = vpop.f32.mrf.mxu0
        %v2222 = vadd.f32 0.0, %v2221
        %v2223 = vpop.f32.mrf.mxu0
        %v2224 = vpop.f32.mrf.mxu0
        %v2225 = vadd.f32 0.0, %v2224
        %v2226 = vpop.f32.mrf.mxu0
        %2227 = vmatprep.mubr.bf16.mxu0 0
        %2228 = vmatmul.mubr.bf16.gmra.mxu0 %v2157
        %v2229 = vpop.f32.mrf.mxu0
        %v2230 = vadd.f32 0.0, %v2229
        %v2231 = vpop.f32.mrf.mxu0
        %v2232 = vpop.f32.mrf.mxu0
        %v2233 = vadd.f32 0.0, %v2232
        %v2234 = vpop.f32.mrf.mxu0
        %2235 = vmatprep.mubr.bf16.mxu0 0
        %2236 = vmatmul.mubr.bf16.gmra.mxu0 %v2160
        %v2237 = vpop.f32.mrf.mxu0
        %v2238 = vadd.f32 0.0, %v2237
        %v2239 = vpop.f32.mrf.mxu0
        %v2240 = vpop.f32.mrf.mxu0
        %v2241 = vadd.f32 0.0, %v2240
        %v2242 = vpop.f32.mrf.mxu0
        %2243 = vmatprep.mubr.bf16.mxu0 0
        %2244 = vmatmul.mubr.bf16.gmra.mxu0 %v2163
        %v2245 = vpop.f32.mrf.mxu0
        %v2246 = vadd.f32 0.0, %v2245
        %v2247 = vpop.f32.mrf.mxu0
        %v2248 = vpop.f32.mrf.mxu0
        %v2249 = vadd.f32 0.0, %v2248
        %v2250 = vpop.f32.mrf.mxu0
        %2251 = vmatprep.mubr.bf16.mxu0 0
        %2252 = vmatmul.mubr.bf16.gmra.mxu0 %v2166
        %v2253 = vpop.f32.mrf.mxu0
        %v2254 = vadd.f32 0.0, %v2253
        %v2255 = vpop.f32.mrf.mxu0
        %v2256 = vpop.f32.mrf.mxu0
        %v2257 = vpop.f32.mrf.mxu0
        %2258 = vdwg.mxu0
        %v2259 = vadd.f32 %v1784, %v2206
        %v2260 = vadd.f32 %v1787, %v2209
        %v2261 = vadd.f32 %v1792, %v2214
        %v2262 = vadd.f32 %v1795, %v2217
        %v2263 = vadd.f32 %v1800, %v2222
        %v2264 = vadd.f32 %v1803, %v2225
        %v2265 = vadd.f32 %v1808, %v2230
        %v2266 = vadd.f32 %v1811, %v2233
        %v2267 = vadd.f32 %v1816, %v2238
        %v2268 = vadd.f32 %v1819, %v2241
        %v2269 = vadd.f32 %v1824, %v2246
        %v2270 = vadd.f32 %v1827, %v2249
        %v2271 = vadd.f32 %v1832, %v2254
        %s2272 = sadd.s32 %s210, 1
        %s2273 = smul.u32 %s2272, 2
        %s2274 = smul.addr %s2273, 4
        %s2275 = scalar_lea.vmem %s197, %s2274
        %v2276 = vld [vmem:[%s2275] sm:$0xf]
        %v2277 = vld [vmem:[%s2275 + $0x4] sm:$0xf]
        %v2278 = vld [vmem:[%s2275 + $0x8] sm:$0xf]
        %v2279 = vld [vmem:[%s2275 + $0xc] sm:$0xf]
        %v2280 = vld [vmem:[%s2275 + $0x10] sm:$0xf]
        %v2281 = vld [vmem:[%s2275 + $0x14] sm:$0xf]
        %v2282 = vld [vmem:[%s2275 + $0x18] sm:$0xf]
        %v2283 = vld [vmem:[%s2275 + $0x1c] sm:$0xf]
        %v2284 = vld [vmem:[%s2275 + $0x20] sm:$0xf]
        %v2285 = vld [vmem:[%s2275 + $0x24] sm:$0xf]
        %v2286 = vld [vmem:[%s2275 + $0x28] sm:$0xf]
        %v2287 = vld [vmem:[%s2275 + $0x2c] sm:$0xf]
        %v2288 = vld [vmem:[%s2275 + $0x30] sm:$0xf]
        %v2289 = vld [vmem:[%s2275 + $0x34] sm:$0xf]
        %v2305 = vunpack.c.l.s4 1966171168
        %v2306 = vunpack.c.0.s8 %v2305
        %v2307 = vlaneseq
        %v2308 = vshrl.u32 %v2307, 7
        %v2309 = vsub.s32 %v2306, %v2308
        %v2310 = vrot.slane %v2276, %v2309
        %v2311 = vcombine.high %v2310, %v2310
        %v2313 = vunpack.c.l.s4 1966171168
        %v2314 = vunpack.c.0.s8 %v2313
        %v2315 = vlaneseq
        %v2316 = vshrl.u32 %v2315, 7
        %v2317 = vsub.s32 %v2314, %v2316
        %v2318 = vrot.slane %v2310, %v2317
        %v2320 = vunpack.c.l.s4 1966171168
        %v2321 = vunpack.c.0.s8 %v2320
        %v2322 = vlaneseq
        %v2323 = vshrl.u32 %v2322, 7
        %v2324 = vsub.s32 %v2321, %v2323
        %v2325 = vrot.slane %v2311, %v2324
        %v2326 = vcombine.high %v2318, %v2318
        %v2327 = vcombine.high %v2325, %v2325
        %v2329 = vunpack.c.l.s4 1966171168
        %v2330 = vunpack.c.0.s8 %v2329
        %v2331 = vlaneseq
        %v2332 = vshrl.u32 %v2331, 7
        %v2333 = vsub.s32 %v2330, %v2332
        %v2334 = vrot.slane %v2277, %v2333
        %v2335 = vcombine.high %v2334, %v2334
        %v2337 = vunpack.c.l.s4 1966171168
        %v2338 = vunpack.c.0.s8 %v2337
        %v2339 = vlaneseq
        %v2340 = vshrl.u32 %v2339, 7
        %v2341 = vsub.s32 %v2338, %v2340
        %v2342 = vrot.slane %v2334, %v2341
        %v2344 = vunpack.c.l.s4 1966171168
        %v2345 = vunpack.c.0.s8 %v2344
        %v2346 = vlaneseq
        %v2347 = vshrl.u32 %v2346, 7
        %v2348 = vsub.s32 %v2345, %v2347
        %v2349 = vrot.slane %v2335, %v2348
        %v2350 = vcombine.high %v2342, %v2342
        %v2352 = vunpack.c.l.s4 1966171168
        %v2353 = vunpack.c.0.s8 %v2352
        %v2354 = vlaneseq
        %v2355 = vshrl.u32 %v2354, 7
        %v2356 = vsub.s32 %v2353, %v2355
        %v2357 = vrot.slane %v2278, %v2356
        %v2358 = vcombine.high %v2357, %v2357
        %v2360 = vunpack.c.l.s4 1966171168
        %v2361 = vunpack.c.0.s8 %v2360
        %v2362 = vlaneseq
        %v2363 = vshrl.u32 %v2362, 7
        %v2364 = vsub.s32 %v2361, %v2363
        %v2365 = vrot.slane %v2357, %v2364
        %v2367 = vunpack.c.l.s4 1966171168
        %v2368 = vunpack.c.0.s8 %v2367
        %v2369 = vlaneseq
        %v2370 = vshrl.u32 %v2369, 7
        %v2371 = vsub.s32 %v2368, %v2370
        %v2372 = vrot.slane %v2358, %v2371
        %v2373 = vcombine.high %v2365, %v2365
        %v2374 = vcombine.high %v2372, %v2372
        %v2376 = vunpack.c.l.s4 1966171168
        %v2377 = vunpack.c.0.s8 %v2376
        %v2378 = vlaneseq
        %v2379 = vshrl.u32 %v2378, 7
        %v2380 = vsub.s32 %v2377, %v2379
        %v2381 = vrot.slane %v2279, %v2380
        %v2382 = vcombine.high %v2381, %v2381
        %v2384 = vunpack.c.l.s4 1966171168
        %v2385 = vunpack.c.0.s8 %v2384
        %v2386 = vlaneseq
        %v2387 = vshrl.u32 %v2386, 7
        %v2388 = vsub.s32 %v2385, %v2387
        %v2389 = vrot.slane %v2381, %v2388
        %v2391 = vunpack.c.l.s4 1966171168
        %v2392 = vunpack.c.0.s8 %v2391
        %v2393 = vlaneseq
        %v2394 = vshrl.u32 %v2393, 7
        %v2395 = vsub.s32 %v2392, %v2394
        %v2396 = vrot.slane %v2382, %v2395
        %v2397 = vcombine.high %v2389, %v2389
        %v2399 = vunpack.c.l.s4 1966171168
        %v2400 = vunpack.c.0.s8 %v2399
        %v2401 = vlaneseq
        %v2402 = vshrl.u32 %v2401, 7
        %v2403 = vsub.s32 %v2400, %v2402
        %v2404 = vrot.slane %v2280, %v2403
        %v2405 = vcombine.high %v2404, %v2404
        %v2407 = vunpack.c.l.s4 1966171168
        %v2408 = vunpack.c.0.s8 %v2407
        %v2409 = vlaneseq
        %v2410 = vshrl.u32 %v2409, 7
        %v2411 = vsub.s32 %v2408, %v2410
        %v2412 = vrot.slane %v2404, %v2411
        %v2414 = vunpack.c.l.s4 1966171168
        %v2415 = vunpack.c.0.s8 %v2414
        %v2416 = vlaneseq
        %v2417 = vshrl.u32 %v2416, 7
        %v2418 = vsub.s32 %v2415, %v2417
        %v2419 = vrot.slane %v2405, %v2418
        %v2420 = vcombine.high %v2412, %v2412
        %v2421 = vcombine.high %v2419, %v2419
        %v2423 = vunpack.c.l.s4 1966171168
        %v2424 = vunpack.c.0.s8 %v2423
        %v2425 = vlaneseq
        %v2426 = vshrl.u32 %v2425, 7
        %v2427 = vsub.s32 %v2424, %v2426
        %v2428 = vrot.slane %v2281, %v2427
        %v2429 = vcombine.high %v2428, %v2428
        %v2431 = vunpack.c.l.s4 1966171168
        %v2432 = vunpack.c.0.s8 %v2431
        %v2433 = vlaneseq
        %v2434 = vshrl.u32 %v2433, 7
        %v2435 = vsub.s32 %v2432, %v2434
        %v2436 = vrot.slane %v2428, %v2435
        %v2438 = vunpack.c.l.s4 1966171168
        %v2439 = vunpack.c.0.s8 %v2438
        %v2440 = vlaneseq
        %v2441 = vshrl.u32 %v2440, 7
        %v2442 = vsub.s32 %v2439, %v2441
        %v2443 = vrot.slane %v2429, %v2442
        %v2444 = vcombine.high %v2436, %v2436
        %v2446 = vunpack.c.l.s4 1966171168
        %v2447 = vunpack.c.0.s8 %v2446
        %v2448 = vlaneseq
        %v2449 = vshrl.u32 %v2448, 7
        %v2450 = vsub.s32 %v2447, %v2449
        %v2451 = vrot.slane %v2282, %v2450
        %v2452 = vcombine.high %v2451, %v2451
        %v2454 = vunpack.c.l.s4 1966171168
        %v2455 = vunpack.c.0.s8 %v2454
        %v2456 = vlaneseq
        %v2457 = vshrl.u32 %v2456, 7
        %v2458 = vsub.s32 %v2455, %v2457
        %v2459 = vrot.slane %v2451, %v2458
        %v2461 = vunpack.c.l.s4 1966171168
        %v2462 = vunpack.c.0.s8 %v2461
        %v2463 = vlaneseq
        %v2464 = vshrl.u32 %v2463, 7
        %v2465 = vsub.s32 %v2462, %v2464
        %v2466 = vrot.slane %v2452, %v2465
        %v2467 = vcombine.high %v2459, %v2459
        %v2468 = vcombine.high %v2466, %v2466
        %v2470 = vunpack.c.l.s4 1966171168
        %v2471 = vunpack.c.0.s8 %v2470
        %v2472 = vlaneseq
        %v2473 = vshrl.u32 %v2472, 7
        %v2474 = vsub.s32 %v2471, %v2473
        %v2475 = vrot.slane %v2283, %v2474
        %v2476 = vcombine.high %v2475, %v2475
        %v2478 = vunpack.c.l.s4 1966171168
        %v2479 = vunpack.c.0.s8 %v2478
        %v2480 = vlaneseq
        %v2481 = vshrl.u32 %v2480, 7
        %v2482 = vsub.s32 %v2479, %v2481
        %v2483 = vrot.slane %v2475, %v2482
        %v2485 = vunpack.c.l.s4 1966171168
        %v2486 = vunpack.c.0.s8 %v2485
        %v2487 = vlaneseq
        %v2488 = vshrl.u32 %v2487, 7
        %v2489 = vsub.s32 %v2486, %v2488
        %v2490 = vrot.slane %v2476, %v2489
        %v2491 = vcombine.high %v2483, %v2483
        %v2493 = vunpack.c.l.s4 1966171168
        %v2494 = vunpack.c.0.s8 %v2493
        %v2495 = vlaneseq
        %v2496 = vshrl.u32 %v2495, 7
        %v2497 = vsub.s32 %v2494, %v2496
        %v2498 = vrot.slane %v2284, %v2497
        %v2499 = vcombine.high %v2498, %v2498
        %v2501 = vunpack.c.l.s4 1966171168
        %v2502 = vunpack.c.0.s8 %v2501
        %v2503 = vlaneseq
        %v2504 = vshrl.u32 %v2503, 7
        %v2505 = vsub.s32 %v2502, %v2504
        %v2506 = vrot.slane %v2498, %v2505
        %v2508 = vunpack.c.l.s4 1966171168
        %v2509 = vunpack.c.0.s8 %v2508
        %v2510 = vlaneseq
        %v2511 = vshrl.u32 %v2510, 7
        %v2512 = vsub.s32 %v2509, %v2511
        %v2513 = vrot.slane %v2499, %v2512
        %v2514 = vcombine.high %v2506, %v2506
        %v2515 = vcombine.high %v2513, %v2513
        %v2517 = vunpack.c.l.s4 1966171168
        %v2518 = vunpack.c.0.s8 %v2517
        %v2519 = vlaneseq
        %v2520 = vshrl.u32 %v2519, 7
        %v2521 = vsub.s32 %v2518, %v2520
        %v2522 = vrot.slane %v2285, %v2521
        %v2523 = vcombine.high %v2522, %v2522
        %v2525 = vunpack.c.l.s4 1966171168
        %v2526 = vunpack.c.0.s8 %v2525
        %v2527 = vlaneseq
        %v2528 = vshrl.u32 %v2527, 7
        %v2529 = vsub.s32 %v2526, %v2528
        %v2530 = vrot.slane %v2522, %v2529
        %v2532 = vunpack.c.l.s4 1966171168
        %v2533 = vunpack.c.0.s8 %v2532
        %v2534 = vlaneseq
        %v2535 = vshrl.u32 %v2534, 7
        %v2536 = vsub.s32 %v2533, %v2535
        %v2537 = vrot.slane %v2523, %v2536
        %v2538 = vcombine.high %v2530, %v2530
        %v2540 = vunpack.c.l.s4 1966171168
        %v2541 = vunpack.c.0.s8 %v2540
        %v2542 = vlaneseq
        %v2543 = vshrl.u32 %v2542, 7
        %v2544 = vsub.s32 %v2541, %v2543
        %v2545 = vrot.slane %v2286, %v2544
        %v2546 = vcombine.high %v2545, %v2545
        %v2548 = vunpack.c.l.s4 1966171168
        %v2549 = vunpack.c.0.s8 %v2548
        %v2550 = vlaneseq
        %v2551 = vshrl.u32 %v2550, 7
        %v2552 = vsub.s32 %v2549, %v2551
        %v2553 = vrot.slane %v2545, %v2552
        %v2555 = vunpack.c.l.s4 1966171168
        %v2556 = vunpack.c.0.s8 %v2555
        %v2557 = vlaneseq
        %v2558 = vshrl.u32 %v2557, 7
        %v2559 = vsub.s32 %v2556, %v2558
        %v2560 = vrot.slane %v2546, %v2559
        %v2561 = vcombine.high %v2553, %v2553
        %v2562 = vcombine.high %v2560, %v2560
        %v2564 = vunpack.c.l.s4 1966171168
        %v2565 = vunpack.c.0.s8 %v2564
        %v2566 = vlaneseq
        %v2567 = vshrl.u32 %v2566, 7
        %v2568 = vsub.s32 %v2565, %v2567
        %v2569 = vrot.slane %v2287, %v2568
        %v2570 = vcombine.high %v2569, %v2569
        %v2572 = vunpack.c.l.s4 1966171168
        %v2573 = vunpack.c.0.s8 %v2572
        %v2574 = vlaneseq
        %v2575 = vshrl.u32 %v2574, 7
        %v2576 = vsub.s32 %v2573, %v2575
        %v2577 = vrot.slane %v2569, %v2576
        %v2579 = vunpack.c.l.s4 1966171168
        %v2580 = vunpack.c.0.s8 %v2579
        %v2581 = vlaneseq
        %v2582 = vshrl.u32 %v2581, 7
        %v2583 = vsub.s32 %v2580, %v2582
        %v2584 = vrot.slane %v2570, %v2583
        %v2585 = vcombine.high %v2577, %v2577
        %v2587 = vunpack.c.l.s4 1966171168
        %v2588 = vunpack.c.0.s8 %v2587
        %v2589 = vlaneseq
        %v2590 = vshrl.u32 %v2589, 7
        %v2591 = vsub.s32 %v2588, %v2590
        %v2592 = vrot.slane %v2288, %v2591
        %v2593 = vcombine.high %v2592, %v2592
        %v2595 = vunpack.c.l.s4 1966171168
        %v2596 = vunpack.c.0.s8 %v2595
        %v2597 = vlaneseq
        %v2598 = vshrl.u32 %v2597, 7
        %v2599 = vsub.s32 %v2596, %v2598
        %v2600 = vrot.slane %v2592, %v2599
        %v2602 = vunpack.c.l.s4 1966171168
        %v2603 = vunpack.c.0.s8 %v2602
        %v2604 = vlaneseq
        %v2605 = vshrl.u32 %v2604, 7
        %v2606 = vsub.s32 %v2603, %v2605
        %v2607 = vrot.slane %v2593, %v2606
        %v2608 = vcombine.high %v2600, %v2600
        %v2609 = vcombine.high %v2607, %v2607
        %v2611 = vunpack.c.l.s4 1966171168
        %v2612 = vunpack.c.0.s8 %v2611
        %v2613 = vlaneseq
        %v2614 = vshrl.u32 %v2613, 7
        %v2615 = vsub.s32 %v2612, %v2614
        %v2616 = vrot.slane %v2289, %v2615
        %v2617 = vcombine.high %v2616, %v2616
        %v2619 = vunpack.c.l.s4 1966171168
        %v2620 = vunpack.c.0.s8 %v2619
        %v2621 = vlaneseq
        %v2622 = vshrl.u32 %v2621, 7
        %v2623 = vsub.s32 %v2620, %v2622
        %v2624 = vrot.slane %v2616, %v2623
        %v2626 = vunpack.c.l.s4 1966171168
        %v2627 = vunpack.c.0.s8 %v2626
        %v2628 = vlaneseq
        %v2629 = vshrl.u32 %v2628, 7
        %v2630 = vsub.s32 %v2627, %v2629
        %v2631 = vrot.slane %v2617, %v2630
        %v2632 = vcombine.high %v2624, %v2624
        %s2633 = scalar_lea.vmem %s1, 6
        %v2634 = vld [vmem:[%s2633] sm:$0x3]
        %v2635 = vcombine.low %v2318, %v2325
        %v2636 = vcombine.low %v2326, %v2327
        %v2637 = vcombine.low %v2342, %v2349
        %v2638 = vcombine.low %v2350, %v2365
        %v2640 = vunpack.c.l.s4 1966171168
        %v2641 = vunpack.c.0.s8 %v2640
        %v2642 = vlaneseq
        %v2643 = vshrl.u32 %v2642, 7
        %v2644 = vsub.s32 %v2641, %v2643
        %v2645 = vrot.slane %v2635, %v2644
        %v2647 = vunpack.c.l.s4 1966171168
        %v2648 = vunpack.c.0.s8 %v2647
        %v2649 = vlaneseq
        %v2650 = vshrl.u32 %v2649, 7
        %v2651 = vsub.s32 %v2648, %v2650
        %v2652 = vrot.slane %v2636, %v2651
        %v2654 = vunpack.c.l.s4 1966171168
        %v2655 = vunpack.c.0.s8 %v2654
        %v2656 = vlaneseq
        %v2657 = vshrl.u32 %v2656, 7
        %v2658 = vsub.s32 %v2655, %v2657
        %v2659 = vrot.slane %v2637, %v2658
        %v2661 = vunpack.c.l.s4 1966171168
        %v2662 = vunpack.c.0.s8 %v2661
        %v2663 = vlaneseq
        %v2664 = vshrl.u32 %v2663, 7
        %v2665 = vsub.s32 %v2662, %v2664
        %v2666 = vrot.slane %v2638, %v2665
        %v2667 = vcombine.low %v2645, %v2652
        %v2668 = vcombine.low %v2659, %v2666
        %v2670 = vunpack.c.l.s4 1966171168
        %v2671 = vunpack.c.0.s8 %v2670
        %v2672 = vlaneseq
        %v2673 = vshrl.u32 %v2672, 7
        %v2674 = vsub.s32 %v2671, %v2673
        %v2675 = vrot.slane %v2667, %v2674
        %v2677 = vunpack.c.l.s4 1966171168
        %v2678 = vunpack.c.0.s8 %v2677
        %v2679 = vlaneseq
        %v2680 = vshrl.u32 %v2679, 7
        %v2681 = vsub.s32 %v2678, %v2680
        %v2682 = vrot.slane %v2668, %v2681
        %v2683 = vcombine.low %v2675, %v2682
        %v2684 = vcombine.low %v2372, %v2373
        %v2685 = vcombine.low %v2374, %v2389
        %v2686 = vcombine.low %v2396, %v2397
        %v2687 = vcombine.low %v2412, %v2419
        %v2689 = vunpack.c.l.s4 1966171168
        %v2690 = vunpack.c.0.s8 %v2689
        %v2691 = vlaneseq
        %v2692 = vshrl.u32 %v2691, 7
        %v2693 = vsub.s32 %v2690, %v2692
        %v2694 = vrot.slane %v2684, %v2693
        %v2696 = vunpack.c.l.s4 1966171168
        %v2697 = vunpack.c.0.s8 %v2696
        %v2698 = vlaneseq
        %v2699 = vshrl.u32 %v2698, 7
        %v2700 = vsub.s32 %v2697, %v2699
        %v2701 = vrot.slane %v2685, %v2700
        %v2703 = vunpack.c.l.s4 1966171168
        %v2704 = vunpack.c.0.s8 %v2703
        %v2705 = vlaneseq
        %v2706 = vshrl.u32 %v2705, 7
        %v2707 = vsub.s32 %v2704, %v2706
        %v2708 = vrot.slane %v2686, %v2707
        %v2710 = vunpack.c.l.s4 1966171168
        %v2711 = vunpack.c.0.s8 %v2710
        %v2712 = vlaneseq
        %v2713 = vshrl.u32 %v2712, 7
        %v2714 = vsub.s32 %v2711, %v2713
        %v2715 = vrot.slane %v2687, %v2714
        %v2716 = vcombine.low %v2694, %v2701
        %v2717 = vcombine.low %v2708, %v2715
        %v2719 = vunpack.c.l.s4 1966171168
        %v2720 = vunpack.c.0.s8 %v2719
        %v2721 = vlaneseq
        %v2722 = vshrl.u32 %v2721, 7
        %v2723 = vsub.s32 %v2720, %v2722
        %v2724 = vrot.slane %v2716, %v2723
        %v2726 = vunpack.c.l.s4 1966171168
        %v2727 = vunpack.c.0.s8 %v2726
        %v2728 = vlaneseq
        %v2729 = vshrl.u32 %v2728, 7
        %v2730 = vsub.s32 %v2727, %v2729
        %v2731 = vrot.slane %v2717, %v2730
        %v2732 = vcombine.low %v2724, %v2731
        %v2733 = vcombine.low %v2420, %v2421
        %v2734 = vcombine.low %v2436, %v2443
        %v2735 = vcombine.low %v2444, %v2459
        %v2736 = vcombine.low %v2466, %v2467
        %v2738 = vunpack.c.l.s4 1966171168
        %v2739 = vunpack.c.0.s8 %v2738
        %v2740 = vlaneseq
        %v2741 = vshrl.u32 %v2740, 7
        %v2742 = vsub.s32 %v2739, %v2741
        %v2743 = vrot.slane %v2733, %v2742
        %v2745 = vunpack.c.l.s4 1966171168
        %v2746 = vunpack.c.0.s8 %v2745
        %v2747 = vlaneseq
        %v2748 = vshrl.u32 %v2747, 7
        %v2749 = vsub.s32 %v2746, %v2748
        %v2750 = vrot.slane %v2734, %v2749
        %v2752 = vunpack.c.l.s4 1966171168
        %v2753 = vunpack.c.0.s8 %v2752
        %v2754 = vlaneseq
        %v2755 = vshrl.u32 %v2754, 7
        %v2756 = vsub.s32 %v2753, %v2755
        %v2757 = vrot.slane %v2735, %v2756
        %v2759 = vunpack.c.l.s4 1966171168
        %v2760 = vunpack.c.0.s8 %v2759
        %v2761 = vlaneseq
        %v2762 = vshrl.u32 %v2761, 7
        %v2763 = vsub.s32 %v2760, %v2762
        %v2764 = vrot.slane %v2736, %v2763
        %v2765 = vcombine.low %v2743, %v2750
        %v2766 = vcombine.low %v2757, %v2764
        %v2768 = vunpack.c.l.s4 1966171168
        %v2769 = vunpack.c.0.s8 %v2768
        %v2770 = vlaneseq
        %v2771 = vshrl.u32 %v2770, 7
        %v2772 = vsub.s32 %v2769, %v2771
        %v2773 = vrot.slane %v2765, %v2772
        %v2775 = vunpack.c.l.s4 1966171168
        %v2776 = vunpack.c.0.s8 %v2775
        %v2777 = vlaneseq
        %v2778 = vshrl.u32 %v2777, 7
        %v2779 = vsub.s32 %v2776, %v2778
        %v2780 = vrot.slane %v2766, %v2779
        %v2781 = vcombine.low %v2773, %v2780
        %v2782 = vcombine.low %v2468, %v2483
        %v2783 = vcombine.low %v2490, %v2491
        %v2784 = vcombine.low %v2506, %v2513
        %v2785 = vcombine.low %v2514, %v2515
        %v2787 = vunpack.c.l.s4 1966171168
        %v2788 = vunpack.c.0.s8 %v2787
        %v2789 = vlaneseq
        %v2790 = vshrl.u32 %v2789, 7
        %v2791 = vsub.s32 %v2788, %v2790
        %v2792 = vrot.slane %v2782, %v2791
        %v2794 = vunpack.c.l.s4 1966171168
        %v2795 = vunpack.c.0.s8 %v2794
        %v2796 = vlaneseq
        %v2797 = vshrl.u32 %v2796, 7
        %v2798 = vsub.s32 %v2795, %v2797
        %v2799 = vrot.slane %v2783, %v2798
        %v2801 = vunpack.c.l.s4 1966171168
        %v2802 = vunpack.c.0.s8 %v2801
        %v2803 = vlaneseq
        %v2804 = vshrl.u32 %v2803, 7
        %v2805 = vsub.s32 %v2802, %v2804
        %v2806 = vrot.slane %v2784, %v2805
        %v2808 = vunpack.c.l.s4 1966171168
        %v2809 = vunpack.c.0.s8 %v2808
        %v2810 = vlaneseq
        %v2811 = vshrl.u32 %v2810, 7
        %v2812 = vsub.s32 %v2809, %v2811
        %v2813 = vrot.slane %v2785, %v2812
        %v2814 = vcombine.low %v2792, %v2799
        %v2815 = vcombine.low %v2806, %v2813
        %v2817 = vunpack.c.l.s4 1966171168
        %v2818 = vunpack.c.0.s8 %v2817
        %v2819 = vlaneseq
        %v2820 = vshrl.u32 %v2819, 7
        %v2821 = vsub.s32 %v2818, %v2820
        %v2822 = vrot.slane %v2814, %v2821
        %v2824 = vunpack.c.l.s4 1966171168
        %v2825 = vunpack.c.0.s8 %v2824
        %v2826 = vlaneseq
        %v2827 = vshrl.u32 %v2826, 7
        %v2828 = vsub.s32 %v2825, %v2827
        %v2829 = vrot.slane %v2815, %v2828
        %v2830 = vcombine.low %v2822, %v2829
        %v2831 = vcombine.low %v2530, %v2537
        %v2832 = vcombine.low %v2538, %v2553
        %v2833 = vcombine.low %v2560, %v2561
        %v2834 = vcombine.low %v2562, %v2577
        %v2836 = vunpack.c.l.s4 1966171168
        %v2837 = vunpack.c.0.s8 %v2836
        %v2838 = vlaneseq
        %v2839 = vshrl.u32 %v2838, 7
        %v2840 = vsub.s32 %v2837, %v2839
        %v2841 = vrot.slane %v2831, %v2840
        %v2843 = vunpack.c.l.s4 1966171168
        %v2844 = vunpack.c.0.s8 %v2843
        %v2845 = vlaneseq
        %v2846 = vshrl.u32 %v2845, 7
        %v2847 = vsub.s32 %v2844, %v2846
        %v2848 = vrot.slane %v2832, %v2847
        %v2850 = vunpack.c.l.s4 1966171168
        %v2851 = vunpack.c.0.s8 %v2850
        %v2852 = vlaneseq
        %v2853 = vshrl.u32 %v2852, 7
        %v2854 = vsub.s32 %v2851, %v2853
        %v2855 = vrot.slane %v2833, %v2854
        %v2857 = vunpack.c.l.s4 1966171168
        %v2858 = vunpack.c.0.s8 %v2857
        %v2859 = vlaneseq
        %v2860 = vshrl.u32 %v2859, 7
        %v2861 = vsub.s32 %v2858, %v2860
        %v2862 = vrot.slane %v2834, %v2861
        %v2863 = vcombine.low %v2841, %v2848
        %v2864 = vcombine.low %v2855, %v2862
        %v2866 = vunpack.c.l.s4 1966171168
        %v2867 = vunpack.c.0.s8 %v2866
        %v2868 = vlaneseq
        %v2869 = vshrl.u32 %v2868, 7
        %v2870 = vsub.s32 %v2867, %v2869
        %v2871 = vrot.slane %v2863, %v2870
        %v2873 = vunpack.c.l.s4 1966171168
        %v2874 = vunpack.c.0.s8 %v2873
        %v2875 = vlaneseq
        %v2876 = vshrl.u32 %v2875, 7
        %v2877 = vsub.s32 %v2874, %v2876
        %v2878 = vrot.slane %v2864, %v2877
        %v2879 = vcombine.low %v2871, %v2878
        %v2880 = vcombine.low %v2584, %v2585
        %v2881 = vcombine.low %v2600, %v2607
        %v2882 = vcombine.low %v2608, %v2609
        %v2883 = vcombine.low %v2624, %v2631
        %v2885 = vunpack.c.l.s4 1966171168
        %v2886 = vunpack.c.0.s8 %v2885
        %v2887 = vlaneseq
        %v2888 = vshrl.u32 %v2887, 7
        %v2889 = vsub.s32 %v2886, %v2888
        %v2890 = vrot.slane %v2880, %v2889
        %v2892 = vunpack.c.l.s4 1966171168
        %v2893 = vunpack.c.0.s8 %v2892
        %v2894 = vlaneseq
        %v2895 = vshrl.u32 %v2894, 7
        %v2896 = vsub.s32 %v2893, %v2895
        %v2897 = vrot.slane %v2881, %v2896
        %v2899 = vunpack.c.l.s4 1966171168
        %v2900 = vunpack.c.0.s8 %v2899
        %v2901 = vlaneseq
        %v2902 = vshrl.u32 %v2901, 7
        %v2903 = vsub.s32 %v2900, %v2902
        %v2904 = vrot.slane %v2882, %v2903
        %v2906 = vunpack.c.l.s4 1966171168
        %v2907 = vunpack.c.0.s8 %v2906
        %v2908 = vlaneseq
        %v2909 = vshrl.u32 %v2908, 7
        %v2910 = vsub.s32 %v2907, %v2909
        %v2911 = vrot.slane %v2883, %v2910
        %v2912 = vcombine.low %v2890, %v2897
        %v2913 = vcombine.low %v2904, %v2911
        %v2915 = vunpack.c.l.s4 1966171168
        %v2916 = vunpack.c.0.s8 %v2915
        %v2917 = vlaneseq
        %v2918 = vshrl.u32 %v2917, 7
        %v2919 = vsub.s32 %v2916, %v2918
        %v2920 = vrot.slane %v2912, %v2919
        %v2922 = vunpack.c.l.s4 1966171168
        %v2923 = vunpack.c.0.s8 %v2922
        %v2924 = vlaneseq
        %v2925 = vshrl.u32 %v2924, 7
        %v2926 = vsub.s32 %v2923, %v2925
        %v2927 = vrot.slane %v2913, %v2926
        %v2928 = vcombine.low %v2920, %v2927
        %v2930 = vunpack.c.l.s4 1966171168
        %v2931 = vunpack.c.0.s8 %v2930
        %v2932 = vlaneseq
        %v2933 = vshrl.u32 %v2932, 7
        %v2934 = vsub.s32 %v2931, %v2933
        %v2935 = vrot.slane %v2632, %v2934
        %v2937 = vunpack.c.l.s4 1966171168
        %v2938 = vunpack.c.0.s8 %v2937
        %v2939 = vlaneseq
        %v2940 = vshrl.u32 %v2939, 7
        %v2941 = vsub.s32 %v2938, %v2940
        %v2942 = vrot.slane %v2935, %v2941
        %v2944 = vsel %vm1303, %v2683, 0
        %v2947 = vsel %vm1303, %v2732, 0
        %v2950 = vsel %vm1303, %v2781, 0
        %v2953 = vsel %vm1303, %v2830, 0
        %v2956 = vsel %vm1303, %v2879, 0
        %v2959 = vsel %vm1303, %v2928, 0
        %v2962 = vsel %vm1303, %v2942, 0
        %v2965 = vsel %vm1325, %v2634, 0
        %2967 = vmatprep.subr.bf16.mxu0 0
        %2968 = vmatpush1.bf16.msra.mxu0 0
        %2969 = vmatprep.subr.bf16.mxu0 0
        %2970 = vmatpush1.bf16.msra.mxu0 0
        %2971 = vmatprep.subr.bf16.mxu0 0
        %2972 = vmatpush1.bf16.msra.mxu0 0
        %2973 = vmatprep.subr.bf16.mxu0 0
        %2974 = vmatpush1.bf16.msra.mxu0 0
        %2975 = vmatprep.subr.bf16.mxu0 0
        %2976 = vmatpush1.bf16.msra.mxu0 0
        %2977 = vmatprep.subr.bf16.mxu0 0
        %2978 = vmatpush1.bf16.msra.mxu0 0
        %2979 = vmatprep.subr.bf16.mxu0 0
        %2980 = vmatpush1.bf16.msra.mxu0 0
        %2981 = vmatprep.subr.bf16.mxu0 0
        %2982 = vmatpush1.bf16.msra.mxu0 %v2965
        %2983 = vmatprep.subr.bf16.mxu0 0
        %2984 = vmatpush2.bf16.msra.mxu0 0
        %2985 = vmatprep.subr.bf16.mxu0 0
        %2986 = vmatpush2.bf16.msra.mxu0 0
        %2987 = vmatprep.subr.bf16.mxu0 0
        %2988 = vmatpush2.bf16.msra.mxu0 0
        %2989 = vmatprep.subr.bf16.mxu0 0
        %2990 = vmatpush2.bf16.msra.mxu0 0
        %2991 = vmatprep.subr.bf16.mxu0 0
        %2992 = vmatpush2.bf16.msra.mxu0 0
        %2993 = vmatprep.subr.bf16.mxu0 0
        %2994 = vmatpush2.bf16.msra.mxu0 0
        %2995 = vmatprep.subr.bf16.mxu0 0
        %2996 = vmatpush2.bf16.msra.mxu0 0
        %2997 = vmatprep.subr.bf16.mxu0 0
        %2998 = vmatpush2.bf16.msra.mxu0 0
        %2999 = vmatprep.mubr.bf16.mxu0 0
        %3000 = vmatmul.mubr.bf16.gmra.mxu0 %v2944
        %v3001 = vpop.f32.mrf.mxu0
        %v3002 = vadd.f32 0.0, %v3001
        %v3003 = vpop.f32.mrf.mxu0
        %v3004 = vpop.f32.mrf.mxu0
        %v3005 = vadd.f32 0.0, %v3004
        %v3006 = vpop.f32.mrf.mxu0
        %3007 = vmatprep.mubr.bf16.mxu0 0
        %3008 = vmatmul.mubr.bf16.gmra.mxu0 %v2947
        %v3009 = vpop.f32.mrf.mxu0
        %v3010 = vadd.f32 0.0, %v3009
        %v3011 = vpop.f32.mrf.mxu0
        %v3012 = vpop.f32.mrf.mxu0
        %v3013 = vadd.f32 0.0, %v3012
        %v3014 = vpop.f32.mrf.mxu0
        %3015 = vmatprep.mubr.bf16.mxu0 0
        %3016 = vmatmul.mubr.bf16.gmra.mxu0 %v2950
        %v3017 = vpop.f32.mrf.mxu0
        %v3018 = vadd.f32 0.0, %v3017
        %v3019 = vpop.f32.mrf.mxu0
        %v3020 = vpop.f32.mrf.mxu0
        %v3021 = vadd.f32 0.0, %v3020
        %v3022 = vpop.f32.mrf.mxu0
        %3023 = vmatprep.mubr.bf16.mxu0 0
        %3024 = vmatmul.mubr.bf16.gmra.mxu0 %v2953
        %v3025 = vpop.f32.mrf.mxu0
        %v3026 = vadd.f32 0.0, %v3025
        %v3027 = vpop.f32.mrf.mxu0
        %v3028 = vpop.f32.mrf.mxu0
        %v3029 = vadd.f32 0.0, %v3028
        %v3030 = vpop.f32.mrf.mxu0
        %3031 = vmatprep.mubr.bf16.mxu0 0
        %3032 = vmatmul.mubr.bf16.gmra.mxu0 %v2956
        %v3033 = vpop.f32.mrf.mxu0
        %v3034 = vadd.f32 0.0, %v3033
        %v3035 = vpop.f32.mrf.mxu0
        %v3036 = vpop.f32.mrf.mxu0
        %v3037 = vadd.f32 0.0, %v3036
        %v3038 = vpop.f32.mrf.mxu0
        %3039 = vmatprep.mubr.bf16.mxu0 0
        %3040 = vmatmul.mubr.bf16.gmra.mxu0 %v2959
        %v3041 = vpop.f32.mrf.mxu0
        %v3042 = vadd.f32 0.0, %v3041
        %v3043 = vpop.f32.mrf.mxu0
        %v3044 = vpop.f32.mrf.mxu0
        %v3045 = vadd.f32 0.0, %v3044
        %v3046 = vpop.f32.mrf.mxu0
        %3047 = vmatprep.mubr.bf16.mxu0 0
        %3048 = vmatmul.mubr.bf16.gmra.mxu0 %v2962
        %v3049 = vpop.f32.mrf.mxu0
        %v3050 = vadd.f32 0.0, %v3049
        %v3051 = vpop.f32.mrf.mxu0
        %v3052 = vpop.f32.mrf.mxu0
        %v3053 = vpop.f32.mrf.mxu0
        %3054 = vdwg.mxu0
        %v3055 = vadd.f32 %v2259, %v3002
        %v3056 = vadd.f32 %v2260, %v3005
        %v3057 = vadd.f32 %v2261, %v3010
        %v3058 = vadd.f32 %v2262, %v3013
        %v3059 = vadd.f32 %v2263, %v3018
        %v3060 = vadd.f32 %v2264, %v3021
        %v3061 = vadd.f32 %v2265, %v3026
        %v3062 = vadd.f32 %v2266, %v3029
        %v3063 = vadd.f32 %v2267, %v3034
        %v3064 = vadd.f32 %v2268, %v3037
        %v3065 = vadd.f32 %v2269, %v3042
        %v3066 = vadd.f32 %v2270, %v3045
        %v3067 = vadd.f32 %v2271, %v3050
        %v3068 = vcombine.high %v2349, %v2349
        %v3069 = vcombine.high %v2396, %v2396
        %v3070 = vcombine.high %v2443, %v2443
        %v3071 = vcombine.high %v2490, %v2490
        %v3072 = vcombine.high %v2537, %v2537
        %v3073 = vcombine.high %v2584, %v2584
        %v3074 = vcombine.high %v2631, %v2631
        %v3076 = vshrl.u32 %v2318, 16
        %v3078 = vrot.slane %v3076, 7
        %v3079 = vrot.slane %v3078, 1
        %v3081 = vshll.u32 %v2325, 16
        %v3083 = vsel %vm593, %v3079, %v3081
        %v3084 = vshrl.u32 %v2325, 16
        %v3086 = vrot.slane %v3084, 7
        %v3087 = vrot.slane %v3086, 1
        %v3089 = vshll.u32 %v2326, 16
        %v3091 = vsel %vm593, %v3087, %v3089
        %v3092 = vshrl.u32 %v2326, 16
        %v3094 = vrot.slane %v3092, 7
        %v3095 = vrot.slane %v3094, 1
        %v3097 = vshll.u32 %v2327, 16
        %v3099 = vsel %vm593, %v3095, %v3097
        %v3100 = vshrl.u32 %v2327, 16
        %v3102 = vrot.slane %v3100, 7
        %v3103 = vrot.slane %v3102, 1
        %v3105 = vshll.u32 %v2342, 16
        %v3107 = vsel %vm593, %v3103, %v3105
        %v3108 = vshrl.u32 %v2342, 16
        %v3110 = vrot.slane %v3108, 7
        %v3111 = vrot.slane %v3110, 1
        %v3113 = vshll.u32 %v2349, 16
        %v3115 = vsel %vm593, %v3111, %v3113
        %v3116 = vshrl.u32 %v2349, 16
        %v3118 = vrot.slane %v3116, 7
        %v3119 = vrot.slane %v3118, 1
        %v3121 = vshll.u32 %v2350, 16
        %v3123 = vsel %vm593, %v3119, %v3121
        %v3124 = vshrl.u32 %v2350, 16
        %v3126 = vrot.slane %v3124, 7
        %v3127 = vrot.slane %v3126, 1
        %v3129 = vshll.u32 %v3068, 16
        %v3131 = vsel %vm593, %v3127, %v3129
        %v3133 = vshrl.u32 %v2365, 16
        %v3135 = vrot.slane %v3133, 7
        %v3136 = vrot.slane %v3135, 1
        %v3138 = vshll.u32 %v2372, 16
        %v3140 = vsel %vm593, %v3136, %v3138
        %v3141 = vshrl.u32 %v2372, 16
        %v3143 = vrot.slane %v3141, 7
        %v3144 = vrot.slane %v3143, 1
        %v3146 = vshll.u32 %v2373, 16
        %v3148 = vsel %vm593, %v3144, %v3146
        %v3149 = vshrl.u32 %v2373, 16
        %v3151 = vrot.slane %v3149, 7
        %v3152 = vrot.slane %v3151, 1
        %v3154 = vshll.u32 %v2374, 16
        %v3156 = vsel %vm593, %v3152, %v3154
        %v3157 = vshrl.u32 %v2374, 16
        %v3159 = vrot.slane %v3157, 7
        %v3160 = vrot.slane %v3159, 1
        %v3162 = vshll.u32 %v2389, 16
        %v3164 = vsel %vm593, %v3160, %v3162
        %v3165 = vshrl.u32 %v2389, 16
        %v3167 = vrot.slane %v3165, 7
        %v3168 = vrot.slane %v3167, 1
        %v3170 = vshll.u32 %v2396, 16
        %v3172 = vsel %vm593, %v3168, %v3170
        %v3173 = vshrl.u32 %v2396, 16
        %v3175 = vrot.slane %v3173, 7
        %v3176 = vrot.slane %v3175, 1
        %v3178 = vshll.u32 %v2397, 16
        %v3180 = vsel %vm593, %v3176, %v3178
        %v3181 = vshrl.u32 %v2397, 16
        %v3183 = vrot.slane %v3181, 7
        %v3184 = vrot.slane %v3183, 1
        %v3186 = vshll.u32 %v3069, 16
        %v3188 = vsel %vm593, %v3184, %v3186
        %v3190 = vshrl.u32 %v2412, 16
        %v3192 = vrot.slane %v3190, 7
        %v3193 = vrot.slane %v3192, 1
        %v3195 = vshll.u32 %v2419, 16
        %v3197 = vsel %vm593, %v3193, %v3195
        %v3198 = vshrl.u32 %v2419, 16
        %v3200 = vrot.slane %v3198, 7
        %v3201 = vrot.slane %v3200, 1
        %v3203 = vshll.u32 %v2420, 16
        %v3205 = vsel %vm593, %v3201, %v3203
        %v3206 = vshrl.u32 %v2420, 16
        %v3208 = vrot.slane %v3206, 7
        %v3209 = vrot.slane %v3208, 1
        %v3211 = vshll.u32 %v2421, 16
        %v3213 = vsel %vm593, %v3209, %v3211
        %v3214 = vshrl.u32 %v2421, 16
        %v3216 = vrot.slane %v3214, 7
        %v3217 = vrot.slane %v3216, 1
        %v3219 = vshll.u32 %v2436, 16
        %v3221 = vsel %vm593, %v3217, %v3219
        %v3222 = vshrl.u32 %v2436, 16
        %v3224 = vrot.slane %v3222, 7
        %v3225 = vrot.slane %v3224, 1
        %v3227 = vshll.u32 %v2443, 16
        %v3229 = vsel %vm593, %v3225, %v3227
        %v3230 = vshrl.u32 %v2443, 16
        %v3232 = vrot.slane %v3230, 7
        %v3233 = vrot.slane %v3232, 1
        %v3235 = vshll.u32 %v2444, 16
        %v3237 = vsel %vm593, %v3233, %v3235
        %v3238 = vshrl.u32 %v2444, 16
        %v3240 = vrot.slane %v3238, 7
        %v3241 = vrot.slane %v3240, 1
        %v3243 = vshll.u32 %v3070, 16
        %v3245 = vsel %vm593, %v3241, %v3243
        %v3247 = vshrl.u32 %v2459, 16
        %v3249 = vrot.slane %v3247, 7
        %v3250 = vrot.slane %v3249, 1
        %v3252 = vshll.u32 %v2466, 16
        %v3254 = vsel %vm593, %v3250, %v3252
        %v3255 = vshrl.u32 %v2466, 16
        %v3257 = vrot.slane %v3255, 7
        %v3258 = vrot.slane %v3257, 1
        %v3260 = vshll.u32 %v2467, 16
        %v3262 = vsel %vm593, %v3258, %v3260
        %v3263 = vshrl.u32 %v2467, 16
        %v3265 = vrot.slane %v3263, 7
        %v3266 = vrot.slane %v3265, 1
        %v3268 = vshll.u32 %v2468, 16
        %v3270 = vsel %vm593, %v3266, %v3268
        %v3271 = vshrl.u32 %v2468, 16
        %v3273 = vrot.slane %v3271, 7
        %v3274 = vrot.slane %v3273, 1
        %v3276 = vshll.u32 %v2483, 16
        %v3278 = vsel %vm593, %v3274, %v3276
        %v3279 = vshrl.u32 %v2483, 16
        %v3281 = vrot.slane %v3279, 7
        %v3282 = vrot.slane %v3281, 1
        %v3284 = vshll.u32 %v2490, 16
        %v3286 = vsel %vm593, %v3282, %v3284
        %v3287 = vshrl.u32 %v2490, 16
        %v3289 = vrot.slane %v3287, 7
        %v3290 = vrot.slane %v3289, 1
        %v3292 = vshll.u32 %v2491, 16
        %v3294 = vsel %vm593, %v3290, %v3292
        %v3295 = vshrl.u32 %v2491, 16
        %v3297 = vrot.slane %v3295, 7
        %v3298 = vrot.slane %v3297, 1
        %v3300 = vshll.u32 %v3071, 16
        %v3302 = vsel %vm593, %v3298, %v3300
        %v3304 = vshrl.u32 %v2506, 16
        %v3306 = vrot.slane %v3304, 7
        %v3307 = vrot.slane %v3306, 1
        %v3309 = vshll.u32 %v2513, 16
        %v3311 = vsel %vm593, %v3307, %v3309
        %v3312 = vshrl.u32 %v2513, 16
        %v3314 = vrot.slane %v3312, 7
        %v3315 = vrot.slane %v3314, 1
        %v3317 = vshll.u32 %v2514, 16
        %v3319 = vsel %vm593, %v3315, %v3317
        %v3320 = vshrl.u32 %v2514, 16
        %v3322 = vrot.slane %v3320, 7
        %v3323 = vrot.slane %v3322, 1
        %v3325 = vshll.u32 %v2515, 16
        %v3327 = vsel %vm593, %v3323, %v3325
        %v3328 = vshrl.u32 %v2515, 16
        %v3330 = vrot.slane %v3328, 7
        %v3331 = vrot.slane %v3330, 1
        %v3333 = vshll.u32 %v2530, 16
        %v3335 = vsel %vm593, %v3331, %v3333
        %v3336 = vshrl.u32 %v2530, 16
        %v3338 = vrot.slane %v3336, 7
        %v3339 = vrot.slane %v3338, 1
        %v3341 = vshll.u32 %v2537, 16
        %v3343 = vsel %vm593, %v3339, %v3341
        %v3344 = vshrl.u32 %v2537, 16
        %v3346 = vrot.slane %v3344, 7
        %v3347 = vrot.slane %v3346, 1
        %v3349 = vshll.u32 %v2538, 16
        %v3351 = vsel %vm593, %v3347, %v3349
        %v3352 = vshrl.u32 %v2538, 16
        %v3354 = vrot.slane %v3352, 7
        %v3355 = vrot.slane %v3354, 1
        %v3357 = vshll.u32 %v3072, 16
        %v3359 = vsel %vm593, %v3355, %v3357
        %v3361 = vshrl.u32 %v2553, 16
        %v3363 = vrot.slane %v3361, 7
        %v3364 = vrot.slane %v3363, 1
        %v3366 = vshll.u32 %v2560, 16
        %v3368 = vsel %vm593, %v3364, %v3366
        %v3369 = vshrl.u32 %v2560, 16
        %v3371 = vrot.slane %v3369, 7
        %v3372 = vrot.slane %v3371, 1
        %v3374 = vshll.u32 %v2561, 16
        %v3376 = vsel %vm593, %v3372, %v3374
        %v3377 = vshrl.u32 %v2561, 16
        %v3379 = vrot.slane %v3377, 7
        %v3380 = vrot.slane %v3379, 1
        %v3382 = vshll.u32 %v2562, 16
        %v3384 = vsel %vm593, %v3380, %v3382
        %v3385 = vshrl.u32 %v2562, 16
        %v3387 = vrot.slane %v3385, 7
        %v3388 = vrot.slane %v3387, 1
        %v3390 = vshll.u32 %v2577, 16
        %v3392 = vsel %vm593, %v3388, %v3390
        %v3393 = vshrl.u32 %v2577, 16
        %v3395 = vrot.slane %v3393, 7
        %v3396 = vrot.slane %v3395, 1
        %v3398 = vshll.u32 %v2584, 16
        %v3400 = vsel %vm593, %v3396, %v3398
        %v3401 = vshrl.u32 %v2584, 16
        %v3403 = vrot.slane %v3401, 7
        %v3404 = vrot.slane %v3403, 1
        %v3406 = vshll.u32 %v2585, 16
        %v3408 = vsel %vm593, %v3404, %v3406
        %v3409 = vshrl.u32 %v2585, 16
        %v3411 = vrot.slane %v3409, 7
        %v3412 = vrot.slane %v3411, 1
        %v3414 = vshll.u32 %v3073, 16
        %v3416 = vsel %vm593, %v3412, %v3414
        %v3418 = vshrl.u32 %v2600, 16
        %v3420 = vrot.slane %v3418, 7
        %v3421 = vrot.slane %v3420, 1
        %v3423 = vshll.u32 %v2607, 16
        %v3425 = vsel %vm593, %v3421, %v3423
        %v3426 = vshrl.u32 %v2607, 16
        %v3428 = vrot.slane %v3426, 7
        %v3429 = vrot.slane %v3428, 1
        %v3431 = vshll.u32 %v2608, 16
        %v3433 = vsel %vm593, %v3429, %v3431
        %v3434 = vshrl.u32 %v2608, 16
        %v3436 = vrot.slane %v3434, 7
        %v3437 = vrot.slane %v3436, 1
        %v3439 = vshll.u32 %v2609, 16
        %v3441 = vsel %vm593, %v3437, %v3439
        %v3442 = vshrl.u32 %v2609, 16
        %v3444 = vrot.slane %v3442, 7
        %v3445 = vrot.slane %v3444, 1
        %v3447 = vshll.u32 %v2624, 16
        %v3449 = vsel %vm593, %v3445, %v3447
        %v3450 = vshrl.u32 %v2624, 16
        %v3452 = vrot.slane %v3450, 7
        %v3453 = vrot.slane %v3452, 1
        %v3455 = vshll.u32 %v2631, 16
        %v3457 = vsel %vm593, %v3453, %v3455
        %v3458 = vshrl.u32 %v2631, 16
        %v3460 = vrot.slane %v3458, 7
        %v3461 = vrot.slane %v3460, 1
        %v3463 = vshll.u32 %v2632, 16
        %v3465 = vsel %vm593, %v3461, %v3463
        %v3466 = vshrl.u32 %v2632, 16
        %v3468 = vrot.slane %v3466, 7
        %v3469 = vrot.slane %v3468, 1
        %v3471 = vshll.u32 %v3074, 16
        %v3473 = vsel %vm593, %v3469, %v3471
        %s3474 = scalar_lea.vmem %s1, 8
        %v3475 = vld [vmem:[%s3474] sm:$0x3]
        %v3476 = vcombine.low %v3083, %v3091
        %v3477 = vcombine.low %v3099, %v3107
        %v3478 = vcombine.low %v3115, %v3123
        %v3479 = vcombine.low %v3131, %v3140
        %v3481 = vunpack.c.l.s4 1966171168
        %v3482 = vunpack.c.0.s8 %v3481
        %v3483 = vlaneseq
        %v3484 = vshrl.u32 %v3483, 7
        %v3485 = vsub.s32 %v3482, %v3484
        %v3486 = vrot.slane %v3476, %v3485
        %v3488 = vunpack.c.l.s4 1966171168
        %v3489 = vunpack.c.0.s8 %v3488
        %v3490 = vlaneseq
        %v3491 = vshrl.u32 %v3490, 7
        %v3492 = vsub.s32 %v3489, %v3491
        %v3493 = vrot.slane %v3477, %v3492
        %v3495 = vunpack.c.l.s4 1966171168
        %v3496 = vunpack.c.0.s8 %v3495
        %v3497 = vlaneseq
        %v3498 = vshrl.u32 %v3497, 7
        %v3499 = vsub.s32 %v3496, %v3498
        %v3500 = vrot.slane %v3478, %v3499
        %v3502 = vunpack.c.l.s4 1966171168
        %v3503 = vunpack.c.0.s8 %v3502
        %v3504 = vlaneseq
        %v3505 = vshrl.u32 %v3504, 7
        %v3506 = vsub.s32 %v3503, %v3505
        %v3507 = vrot.slane %v3479, %v3506
        %v3508 = vcombine.low %v3486, %v3493
        %v3509 = vcombine.low %v3500, %v3507
        %v3511 = vunpack.c.l.s4 1966171168
        %v3512 = vunpack.c.0.s8 %v3511
        %v3513 = vlaneseq
        %v3514 = vshrl.u32 %v3513, 7
        %v3515 = vsub.s32 %v3512, %v3514
        %v3516 = vrot.slane %v3508, %v3515
        %v3518 = vunpack.c.l.s4 1966171168
        %v3519 = vunpack.c.0.s8 %v3518
        %v3520 = vlaneseq
        %v3521 = vshrl.u32 %v3520, 7
        %v3522 = vsub.s32 %v3519, %v3521
        %v3523 = vrot.slane %v3509, %v3522
        %v3524 = vcombine.low %v3516, %v3523
        %v3525 = vcombine.low %v3148, %v3156
        %v3526 = vcombine.low %v3164, %v3172
        %v3527 = vcombine.low %v3180, %v3188
        %v3528 = vcombine.low %v3197, %v3205
        %v3530 = vunpack.c.l.s4 1966171168
        %v3531 = vunpack.c.0.s8 %v3530
        %v3532 = vlaneseq
        %v3533 = vshrl.u32 %v3532, 7
        %v3534 = vsub.s32 %v3531, %v3533
        %v3535 = vrot.slane %v3525, %v3534
        %v3537 = vunpack.c.l.s4 1966171168
        %v3538 = vunpack.c.0.s8 %v3537
        %v3539 = vlaneseq
        %v3540 = vshrl.u32 %v3539, 7
        %v3541 = vsub.s32 %v3538, %v3540
        %v3542 = vrot.slane %v3526, %v3541
        %v3544 = vunpack.c.l.s4 1966171168
        %v3545 = vunpack.c.0.s8 %v3544
        %v3546 = vlaneseq
        %v3547 = vshrl.u32 %v3546, 7
        %v3548 = vsub.s32 %v3545, %v3547
        %v3549 = vrot.slane %v3527, %v3548
        %v3551 = vunpack.c.l.s4 1966171168
        %v3552 = vunpack.c.0.s8 %v3551
        %v3553 = vlaneseq
        %v3554 = vshrl.u32 %v3553, 7
        %v3555 = vsub.s32 %v3552, %v3554
        %v3556 = vrot.slane %v3528, %v3555
        %v3557 = vcombine.low %v3535, %v3542
        %v3558 = vcombine.low %v3549, %v3556
        %v3560 = vunpack.c.l.s4 1966171168
        %v3561 = vunpack.c.0.s8 %v3560
        %v3562 = vlaneseq
        %v3563 = vshrl.u32 %v3562, 7
        %v3564 = vsub.s32 %v3561, %v3563
        %v3565 = vrot.slane %v3557, %v3564
        %v3567 = vunpack.c.l.s4 1966171168
        %v3568 = vunpack.c.0.s8 %v3567
        %v3569 = vlaneseq
        %v3570 = vshrl.u32 %v3569, 7
        %v3571 = vsub.s32 %v3568, %v3570
        %v3572 = vrot.slane %v3558, %v3571
        %v3573 = vcombine.low %v3565, %v3572
        %v3574 = vcombine.low %v3213, %v3221
        %v3575 = vcombine.low %v3229, %v3237
        %v3576 = vcombine.low %v3245, %v3254
        %v3577 = vcombine.low %v3262, %v3270
        %v3579 = vunpack.c.l.s4 1966171168
        %v3580 = vunpack.c.0.s8 %v3579
        %v3581 = vlaneseq
        %v3582 = vshrl.u32 %v3581, 7
        %v3583 = vsub.s32 %v3580, %v3582
        %v3584 = vrot.slane %v3574, %v3583
        %v3586 = vunpack.c.l.s4 1966171168
        %v3587 = vunpack.c.0.s8 %v3586
        %v3588 = vlaneseq
        %v3589 = vshrl.u32 %v3588, 7
        %v3590 = vsub.s32 %v3587, %v3589
        %v3591 = vrot.slane %v3575, %v3590
        %v3593 = vunpack.c.l.s4 1966171168
        %v3594 = vunpack.c.0.s8 %v3593
        %v3595 = vlaneseq
        %v3596 = vshrl.u32 %v3595, 7
        %v3597 = vsub.s32 %v3594, %v3596
        %v3598 = vrot.slane %v3576, %v3597
        %v3600 = vunpack.c.l.s4 1966171168
        %v3601 = vunpack.c.0.s8 %v3600
        %v3602 = vlaneseq
        %v3603 = vshrl.u32 %v3602, 7
        %v3604 = vsub.s32 %v3601, %v3603
        %v3605 = vrot.slane %v3577, %v3604
        %v3606 = vcombine.low %v3584, %v3591
        %v3607 = vcombine.low %v3598, %v3605
        %v3609 = vunpack.c.l.s4 1966171168
        %v3610 = vunpack.c.0.s8 %v3609
        %v3611 = vlaneseq
        %v3612 = vshrl.u32 %v3611, 7
        %v3613 = vsub.s32 %v3610, %v3612
        %v3614 = vrot.slane %v3606, %v3613
        %v3616 = vunpack.c.l.s4 1966171168
        %v3617 = vunpack.c.0.s8 %v3616
        %v3618 = vlaneseq
        %v3619 = vshrl.u32 %v3618, 7
        %v3620 = vsub.s32 %v3617, %v3619
        %v3621 = vrot.slane %v3607, %v3620
        %v3622 = vcombine.low %v3614, %v3621
        %v3623 = vcombine.low %v3278, %v3286
        %v3624 = vcombine.low %v3294, %v3302
        %v3625 = vcombine.low %v3311, %v3319
        %v3626 = vcombine.low %v3327, %v3335
        %v3628 = vunpack.c.l.s4 1966171168
        %v3629 = vunpack.c.0.s8 %v3628
        %v3630 = vlaneseq
        %v3631 = vshrl.u32 %v3630, 7
        %v3632 = vsub.s32 %v3629, %v3631
        %v3633 = vrot.slane %v3623, %v3632
        %v3635 = vunpack.c.l.s4 1966171168
        %v3636 = vunpack.c.0.s8 %v3635
        %v3637 = vlaneseq
        %v3638 = vshrl.u32 %v3637, 7
        %v3639 = vsub.s32 %v3636, %v3638
        %v3640 = vrot.slane %v3624, %v3639
        %v3642 = vunpack.c.l.s4 1966171168
        %v3643 = vunpack.c.0.s8 %v3642
        %v3644 = vlaneseq
        %v3645 = vshrl.u32 %v3644, 7
        %v3646 = vsub.s32 %v3643, %v3645
        %v3647 = vrot.slane %v3625, %v3646
        %v3649 = vunpack.c.l.s4 1966171168
        %v3650 = vunpack.c.0.s8 %v3649
        %v3651 = vlaneseq
        %v3652 = vshrl.u32 %v3651, 7
        %v3653 = vsub.s32 %v3650, %v3652
        %v3654 = vrot.slane %v3626, %v3653
        %v3655 = vcombine.low %v3633, %v3640
        %v3656 = vcombine.low %v3647, %v3654
        %v3658 = vunpack.c.l.s4 1966171168
        %v3659 = vunpack.c.0.s8 %v3658
        %v3660 = vlaneseq
        %v3661 = vshrl.u32 %v3660, 7
        %v3662 = vsub.s32 %v3659, %v3661
        %v3663 = vrot.slane %v3655, %v3662
        %v3665 = vunpack.c.l.s4 1966171168
        %v3666 = vunpack.c.0.s8 %v3665
        %v3667 = vlaneseq
        %v3668 = vshrl.u32 %v3667, 7
        %v3669 = vsub.s32 %v3666, %v3668
        %v3670 = vrot.slane %v3656, %v3669
        %v3671 = vcombine.low %v3663, %v3670
        %v3672 = vcombine.low %v3343, %v3351
        %v3673 = vcombine.low %v3359, %v3368
        %v3674 = vcombine.low %v3376, %v3384
        %v3675 = vcombine.low %v3392, %v3400
        %v3677 = vunpack.c.l.s4 1966171168
        %v3678 = vunpack.c.0.s8 %v3677
        %v3679 = vlaneseq
        %v3680 = vshrl.u32 %v3679, 7
        %v3681 = vsub.s32 %v3678, %v3680
        %v3682 = vrot.slane %v3672, %v3681
        %v3684 = vunpack.c.l.s4 1966171168
        %v3685 = vunpack.c.0.s8 %v3684
        %v3686 = vlaneseq
        %v3687 = vshrl.u32 %v3686, 7
        %v3688 = vsub.s32 %v3685, %v3687
        %v3689 = vrot.slane %v3673, %v3688
        %v3691 = vunpack.c.l.s4 1966171168
        %v3692 = vunpack.c.0.s8 %v3691
        %v3693 = vlaneseq
        %v3694 = vshrl.u32 %v3693, 7
        %v3695 = vsub.s32 %v3692, %v3694
        %v3696 = vrot.slane %v3674, %v3695
        %v3698 = vunpack.c.l.s4 1966171168
        %v3699 = vunpack.c.0.s8 %v3698
        %v3700 = vlaneseq
        %v3701 = vshrl.u32 %v3700, 7
        %v3702 = vsub.s32 %v3699, %v3701
        %v3703 = vrot.slane %v3675, %v3702
        %v3704 = vcombine.low %v3682, %v3689
        %v3705 = vcombine.low %v3696, %v3703
        %v3707 = vunpack.c.l.s4 1966171168
        %v3708 = vunpack.c.0.s8 %v3707
        %v3709 = vlaneseq
        %v3710 = vshrl.u32 %v3709, 7
        %v3711 = vsub.s32 %v3708, %v3710
        %v3712 = vrot.slane %v3704, %v3711
        %v3714 = vunpack.c.l.s4 1966171168
        %v3715 = vunpack.c.0.s8 %v3714
        %v3716 = vlaneseq
        %v3717 = vshrl.u32 %v3716, 7
        %v3718 = vsub.s32 %v3715, %v3717
        %v3719 = vrot.slane %v3705, %v3718
        %v3720 = vcombine.low %v3712, %v3719
        %v3721 = vcombine.low %v3408, %v3416
        %v3722 = vcombine.low %v3425, %v3433
        %v3723 = vcombine.low %v3441, %v3449
        %v3724 = vcombine.low %v3457, %v3465
        %v3726 = vunpack.c.l.s4 1966171168
        %v3727 = vunpack.c.0.s8 %v3726
        %v3728 = vlaneseq
        %v3729 = vshrl.u32 %v3728, 7
        %v3730 = vsub.s32 %v3727, %v3729
        %v3731 = vrot.slane %v3721, %v3730
        %v3733 = vunpack.c.l.s4 1966171168
        %v3734 = vunpack.c.0.s8 %v3733
        %v3735 = vlaneseq
        %v3736 = vshrl.u32 %v3735, 7
        %v3737 = vsub.s32 %v3734, %v3736
        %v3738 = vrot.slane %v3722, %v3737
        %v3740 = vunpack.c.l.s4 1966171168
        %v3741 = vunpack.c.0.s8 %v3740
        %v3742 = vlaneseq
        %v3743 = vshrl.u32 %v3742, 7
        %v3744 = vsub.s32 %v3741, %v3743
        %v3745 = vrot.slane %v3723, %v3744
        %v3747 = vunpack.c.l.s4 1966171168
        %v3748 = vunpack.c.0.s8 %v3747
        %v3749 = vlaneseq
        %v3750 = vshrl.u32 %v3749, 7
        %v3751 = vsub.s32 %v3748, %v3750
        %v3752 = vrot.slane %v3724, %v3751
        %v3753 = vcombine.low %v3731, %v3738
        %v3754 = vcombine.low %v3745, %v3752
        %v3756 = vunpack.c.l.s4 1966171168
        %v3757 = vunpack.c.0.s8 %v3756
        %v3758 = vlaneseq
        %v3759 = vshrl.u32 %v3758, 7
        %v3760 = vsub.s32 %v3757, %v3759
        %v3761 = vrot.slane %v3753, %v3760
        %v3763 = vunpack.c.l.s4 1966171168
        %v3764 = vunpack.c.0.s8 %v3763
        %v3765 = vlaneseq
        %v3766 = vshrl.u32 %v3765, 7
        %v3767 = vsub.s32 %v3764, %v3766
        %v3768 = vrot.slane %v3754, %v3767
        %v3769 = vcombine.low %v3761, %v3768
        %v3771 = vunpack.c.l.s4 1966171168
        %v3772 = vunpack.c.0.s8 %v3771
        %v3773 = vlaneseq
        %v3774 = vshrl.u32 %v3773, 7
        %v3775 = vsub.s32 %v3772, %v3774
        %v3776 = vrot.slane %v3473, %v3775
        %v3778 = vunpack.c.l.s4 1966171168
        %v3779 = vunpack.c.0.s8 %v3778
        %v3780 = vlaneseq
        %v3781 = vshrl.u32 %v3780, 7
        %v3782 = vsub.s32 %v3779, %v3781
        %v3783 = vrot.slane %v3776, %v3782
        %v3785 = vsel %vm1303, %v3524, 0
        %v3788 = vsel %vm1303, %v3573, 0
        %v3791 = vsel %vm1303, %v3622, 0
        %v3794 = vsel %vm1303, %v3671, 0
        %v3797 = vsel %vm1303, %v3720, 0
        %v3800 = vsel %vm1303, %v3769, 0
        %v3803 = vsel %vm1303, %v3783, 0
        %v3806 = vsel %vm1325, %v3475, 0
        %3808 = vmatprep.subr.bf16.mxu0 0
        %3809 = vmatpush1.bf16.msra.mxu0 0
        %3810 = vmatprep.subr.bf16.mxu0 0
        %3811 = vmatpush1.bf16.msra.mxu0 0
        %3812 = vmatprep.subr.bf16.mxu0 0
        %3813 = vmatpush1.bf16.msra.mxu0 0
        %3814 = vmatprep.subr.bf16.mxu0 0
        %3815 = vmatpush1.bf16.msra.mxu0 0
        %3816 = vmatprep.subr.bf16.mxu0 0
        %3817 = vmatpush1.bf16.msra.mxu0 0
        %3818 = vmatprep.subr.bf16.mxu0 0
        %3819 = vmatpush1.bf16.msra.mxu0 0
        %3820 = vmatprep.subr.bf16.mxu0 0
        %3821 = vmatpush1.bf16.msra.mxu0 0
        %3822 = vmatprep.subr.bf16.mxu0 0
        %3823 = vmatpush1.bf16.msra.mxu0 %v3806
        %3824 = vmatprep.subr.bf16.mxu0 0
        %3825 = vmatpush2.bf16.msra.mxu0 0
        %3826 = vmatprep.subr.bf16.mxu0 0
        %3827 = vmatpush2.bf16.msra.mxu0 0
        %3828 = vmatprep.subr.bf16.mxu0 0
        %3829 = vmatpush2.bf16.msra.mxu0 0
        %3830 = vmatprep.subr.bf16.mxu0 0
        %3831 = vmatpush2.bf16.msra.mxu0 0
        %3832 = vmatprep.subr.bf16.mxu0 0
        %3833 = vmatpush2.bf16.msra.mxu0 0
        %3834 = vmatprep.subr.bf16.mxu0 0
        %3835 = vmatpush2.bf16.msra.mxu0 0
        %3836 = vmatprep.subr.bf16.mxu0 0
        %3837 = vmatpush2.bf16.msra.mxu0 0
        %3838 = vmatprep.subr.bf16.mxu0 0
        %3839 = vmatpush2.bf16.msra.mxu0 0
        %3840 = vmatprep.mubr.bf16.mxu0 0
        %3841 = vmatmul.mubr.bf16.gmra.mxu0 %v3785
        %v3842 = vpop.f32.mrf.mxu0
        %v3843 = vadd.f32 0.0, %v3842
        %v3844 = vpop.f32.mrf.mxu0
        %v3845 = vpop.f32.mrf.mxu0
        %v3846 = vadd.f32 0.0, %v3845
        %v3847 = vpop.f32.mrf.mxu0
        %3848 = vmatprep.mubr.bf16.mxu0 0
        %3849 = vmatmul.mubr.bf16.gmra.mxu0 %v3788
        %v3850 = vpop.f32.mrf.mxu0
        %v3851 = vadd.f32 0.0, %v3850
        %v3852 = vpop.f32.mrf.mxu0
        %v3853 = vpop.f32.mrf.mxu0
        %v3854 = vadd.f32 0.0, %v3853
        %v3855 = vpop.f32.mrf.mxu0
        %3856 = vmatprep.mubr.bf16.mxu0 0
        %3857 = vmatmul.mubr.bf16.gmra.mxu0 %v3791
        %v3858 = vpop.f32.mrf.mxu0
        %v3859 = vadd.f32 0.0, %v3858
        %v3860 = vpop.f32.mrf.mxu0
        %v3861 = vpop.f32.mrf.mxu0
        %v3862 = vadd.f32 0.0, %v3861
        %v3863 = vpop.f32.mrf.mxu0
        %3864 = vmatprep.mubr.bf16.mxu0 0
        %3865 = vmatmul.mubr.bf16.gmra.mxu0 %v3794
        %v3866 = vpop.f32.mrf.mxu0
        %v3867 = vadd.f32 0.0, %v3866
        %v3868 = vpop.f32.mrf.mxu0
        %v3869 = vpop.f32.mrf.mxu0
        %v3870 = vadd.f32 0.0, %v3869
        %v3871 = vpop.f32.mrf.mxu0
        %3872 = vmatprep.mubr.bf16.mxu0 0
        %3873 = vmatmul.mubr.bf16.gmra.mxu0 %v3797
        %v3874 = vpop.f32.mrf.mxu0
        %v3875 = vadd.f32 0.0, %v3874
        %v3876 = vpop.f32.mrf.mxu0
        %v3877 = vpop.f32.mrf.mxu0
        %v3878 = vadd.f32 0.0, %v3877
        %v3879 = vpop.f32.mrf.mxu0
        %3880 = vmatprep.mubr.bf16.mxu0 0
        %3881 = vmatmul.mubr.bf16.gmra.mxu0 %v3800
        %v3882 = vpop.f32.mrf.mxu0
        %v3883 = vadd.f32 0.0, %v3882
        %v3884 = vpop.f32.mrf.mxu0
        %v3885 = vpop.f32.mrf.mxu0
        %v3886 = vadd.f32 0.0, %v3885
        %v3887 = vpop.f32.mrf.mxu0
        %3888 = vmatprep.mubr.bf16.mxu0 0
        %3889 = vmatmul.mubr.bf16.gmra.mxu0 %v3803
        %v3890 = vpop.f32.mrf.mxu0
        %v3891 = vadd.f32 0.0, %v3890
        %v3892 = vpop.f32.mrf.mxu0
        %v3893 = vpop.f32.mrf.mxu0
        %v3894 = vpop.f32.mrf.mxu0
        %3895 = vdwg.mxu0
        %v3896 = vadd.f32 %v3055, %v3843
        %v3897 = vadd.f32 %v3056, %v3846
        %v3898 = vadd.f32 %v3057, %v3851
        %v3899 = vadd.f32 %v3058, %v3854
        %v3900 = vadd.f32 %v3059, %v3859
        %v3901 = vadd.f32 %v3060, %v3862
        %v3902 = vadd.f32 %v3061, %v3867
        %v3903 = vadd.f32 %v3062, %v3870
        %v3904 = vadd.f32 %v3063, %v3875
        %v3905 = vadd.f32 %v3064, %v3878
        %v3906 = vadd.f32 %v3065, %v3883
        %v3907 = vadd.f32 %v3066, %v3886
        %v3908 = vadd.f32 %v3067, %v3891
        %s3909 = scalar_lea.vmem %s1, 10
        %v3910 = vld [vmem:[%s3909] sm:$0x3]
        %v3911 = vcombine.low %v2325, %v2326
        %v3912 = vcombine.low %v2327, %v2342
        %v3913 = vcombine.low %v2349, %v2350
        %v3914 = vcombine.low %v3068, %v2372
        %v3916 = vunpack.c.l.s4 1966171168
        %v3917 = vunpack.c.0.s8 %v3916
        %v3918 = vlaneseq
        %v3919 = vshrl.u32 %v3918, 7
        %v3920 = vsub.s32 %v3917, %v3919
        %v3921 = vrot.slane %v3911, %v3920
        %v3923 = vunpack.c.l.s4 1966171168
        %v3924 = vunpack.c.0.s8 %v3923
        %v3925 = vlaneseq
        %v3926 = vshrl.u32 %v3925, 7
        %v3927 = vsub.s32 %v3924, %v3926
        %v3928 = vrot.slane %v3912, %v3927
        %v3930 = vunpack.c.l.s4 1966171168
        %v3931 = vunpack.c.0.s8 %v3930
        %v3932 = vlaneseq
        %v3933 = vshrl.u32 %v3932, 7
        %v3934 = vsub.s32 %v3931, %v3933
        %v3935 = vrot.slane %v3913, %v3934
        %v3937 = vunpack.c.l.s4 1966171168
        %v3938 = vunpack.c.0.s8 %v3937
        %v3939 = vlaneseq
        %v3940 = vshrl.u32 %v3939, 7
        %v3941 = vsub.s32 %v3938, %v3940
        %v3942 = vrot.slane %v3914, %v3941
        %v3943 = vcombine.low %v3921, %v3928
        %v3944 = vcombine.low %v3935, %v3942
        %v3946 = vunpack.c.l.s4 1966171168
        %v3947 = vunpack.c.0.s8 %v3946
        %v3948 = vlaneseq
        %v3949 = vshrl.u32 %v3948, 7
        %v3950 = vsub.s32 %v3947, %v3949
        %v3951 = vrot.slane %v3943, %v3950
        %v3953 = vunpack.c.l.s4 1966171168
        %v3954 = vunpack.c.0.s8 %v3953
        %v3955 = vlaneseq
        %v3956 = vshrl.u32 %v3955, 7
        %v3957 = vsub.s32 %v3954, %v3956
        %v3958 = vrot.slane %v3944, %v3957
        %v3959 = vcombine.low %v3951, %v3958
        %v3960 = vcombine.low %v2373, %v2374
        %v3961 = vcombine.low %v2389, %v2396
        %v3962 = vcombine.low %v2397, %v3069
        %v3963 = vcombine.low %v2419, %v2420
        %v3965 = vunpack.c.l.s4 1966171168
        %v3966 = vunpack.c.0.s8 %v3965
        %v3967 = vlaneseq
        %v3968 = vshrl.u32 %v3967, 7
        %v3969 = vsub.s32 %v3966, %v3968
        %v3970 = vrot.slane %v3960, %v3969
        %v3972 = vunpack.c.l.s4 1966171168
        %v3973 = vunpack.c.0.s8 %v3972
        %v3974 = vlaneseq
        %v3975 = vshrl.u32 %v3974, 7
        %v3976 = vsub.s32 %v3973, %v3975
        %v3977 = vrot.slane %v3961, %v3976
        %v3979 = vunpack.c.l.s4 1966171168
        %v3980 = vunpack.c.0.s8 %v3979
        %v3981 = vlaneseq
        %v3982 = vshrl.u32 %v3981, 7
        %v3983 = vsub.s32 %v3980, %v3982
        %v3984 = vrot.slane %v3962, %v3983
        %v3986 = vunpack.c.l.s4 1966171168
        %v3987 = vunpack.c.0.s8 %v3986
        %v3988 = vlaneseq
        %v3989 = vshrl.u32 %v3988, 7
        %v3990 = vsub.s32 %v3987, %v3989
        %v3991 = vrot.slane %v3963, %v3990
        %v3992 = vcombine.low %v3970, %v3977
        %v3993 = vcombine.low %v3984, %v3991
        %v3995 = vunpack.c.l.s4 1966171168
        %v3996 = vunpack.c.0.s8 %v3995
        %v3997 = vlaneseq
        %v3998 = vshrl.u32 %v3997, 7
        %v3999 = vsub.s32 %v3996, %v3998
        %v4000 = vrot.slane %v3992, %v3999
        %v4002 = vunpack.c.l.s4 1966171168
        %v4003 = vunpack.c.0.s8 %v4002
        %v4004 = vlaneseq
        %v4005 = vshrl.u32 %v4004, 7
        %v4006 = vsub.s32 %v4003, %v4005
        %v4007 = vrot.slane %v3993, %v4006
        %v4008 = vcombine.low %v4000, %v4007
        %v4009 = vcombine.low %v2421, %v2436
        %v4010 = vcombine.low %v2443, %v2444
        %v4011 = vcombine.low %v3070, %v2466
        %v4012 = vcombine.low %v2467, %v2468
        %v4014 = vunpack.c.l.s4 1966171168
        %v4015 = vunpack.c.0.s8 %v4014
        %v4016 = vlaneseq
        %v4017 = vshrl.u32 %v4016, 7
        %v4018 = vsub.s32 %v4015, %v4017
        %v4019 = vrot.slane %v4009, %v4018
        %v4021 = vunpack.c.l.s4 1966171168
        %v4022 = vunpack.c.0.s8 %v4021
        %v4023 = vlaneseq
        %v4024 = vshrl.u32 %v4023, 7
        %v4025 = vsub.s32 %v4022, %v4024
        %v4026 = vrot.slane %v4010, %v4025
        %v4028 = vunpack.c.l.s4 1966171168
        %v4029 = vunpack.c.0.s8 %v4028
        %v4030 = vlaneseq
        %v4031 = vshrl.u32 %v4030, 7
        %v4032 = vsub.s32 %v4029, %v4031
        %v4033 = vrot.slane %v4011, %v4032
        %v4035 = vunpack.c.l.s4 1966171168
        %v4036 = vunpack.c.0.s8 %v4035
        %v4037 = vlaneseq
        %v4038 = vshrl.u32 %v4037, 7
        %v4039 = vsub.s32 %v4036, %v4038
        %v4040 = vrot.slane %v4012, %v4039
        %v4041 = vcombine.low %v4019, %v4026
        %v4042 = vcombine.low %v4033, %v4040
        %v4044 = vunpack.c.l.s4 1966171168
        %v4045 = vunpack.c.0.s8 %v4044
        %v4046 = vlaneseq
        %v4047 = vshrl.u32 %v4046, 7
        %v4048 = vsub.s32 %v4045, %v4047
        %v4049 = vrot.slane %v4041, %v4048
        %v4051 = vunpack.c.l.s4 1966171168
        %v4052 = vunpack.c.0.s8 %v4051
        %v4053 = vlaneseq
        %v4054 = vshrl.u32 %v4053, 7
        %v4055 = vsub.s32 %v4052, %v4054
        %v4056 = vrot.slane %v4042, %v4055
        %v4057 = vcombine.low %v4049, %v4056
        %v4058 = vcombine.low %v2483, %v2490
        %v4059 = vcombine.low %v2491, %v3071
        %v4060 = vcombine.low %v2513, %v2514
        %v4061 = vcombine.low %v2515, %v2530
        %v4063 = vunpack.c.l.s4 1966171168
        %v4064 = vunpack.c.0.s8 %v4063
        %v4065 = vlaneseq
        %v4066 = vshrl.u32 %v4065, 7
        %v4067 = vsub.s32 %v4064, %v4066
        %v4068 = vrot.slane %v4058, %v4067
        %v4070 = vunpack.c.l.s4 1966171168
        %v4071 = vunpack.c.0.s8 %v4070
        %v4072 = vlaneseq
        %v4073 = vshrl.u32 %v4072, 7
        %v4074 = vsub.s32 %v4071, %v4073
        %v4075 = vrot.slane %v4059, %v4074
        %v4077 = vunpack.c.l.s4 1966171168
        %v4078 = vunpack.c.0.s8 %v4077
        %v4079 = vlaneseq
        %v4080 = vshrl.u32 %v4079, 7
        %v4081 = vsub.s32 %v4078, %v4080
        %v4082 = vrot.slane %v4060, %v4081
        %v4084 = vunpack.c.l.s4 1966171168
        %v4085 = vunpack.c.0.s8 %v4084
        %v4086 = vlaneseq
        %v4087 = vshrl.u32 %v4086, 7
        %v4088 = vsub.s32 %v4085, %v4087
        %v4089 = vrot.slane %v4061, %v4088
        %v4090 = vcombine.low %v4068, %v4075
        %v4091 = vcombine.low %v4082, %v4089
        %v4093 = vunpack.c.l.s4 1966171168
        %v4094 = vunpack.c.0.s8 %v4093
        %v4095 = vlaneseq
        %v4096 = vshrl.u32 %v4095, 7
        %v4097 = vsub.s32 %v4094, %v4096
        %v4098 = vrot.slane %v4090, %v4097
        %v4100 = vunpack.c.l.s4 1966171168
        %v4101 = vunpack.c.0.s8 %v4100
        %v4102 = vlaneseq
        %v4103 = vshrl.u32 %v4102, 7
        %v4104 = vsub.s32 %v4101, %v4103
        %v4105 = vrot.slane %v4091, %v4104
        %v4106 = vcombine.low %v4098, %v4105
        %v4107 = vcombine.low %v2537, %v2538
        %v4108 = vcombine.low %v3072, %v2560
        %v4109 = vcombine.low %v2561, %v2562
        %v4110 = vcombine.low %v2577, %v2584
        %v4112 = vunpack.c.l.s4 1966171168
        %v4113 = vunpack.c.0.s8 %v4112
        %v4114 = vlaneseq
        %v4115 = vshrl.u32 %v4114, 7
        %v4116 = vsub.s32 %v4113, %v4115
        %v4117 = vrot.slane %v4107, %v4116
        %v4119 = vunpack.c.l.s4 1966171168
        %v4120 = vunpack.c.0.s8 %v4119
        %v4121 = vlaneseq
        %v4122 = vshrl.u32 %v4121, 7
        %v4123 = vsub.s32 %v4120, %v4122
        %v4124 = vrot.slane %v4108, %v4123
        %v4126 = vunpack.c.l.s4 1966171168
        %v4127 = vunpack.c.0.s8 %v4126
        %v4128 = vlaneseq
        %v4129 = vshrl.u32 %v4128, 7
        %v4130 = vsub.s32 %v4127, %v4129
        %v4131 = vrot.slane %v4109, %v4130
        %v4133 = vunpack.c.l.s4 1966171168
        %v4134 = vunpack.c.0.s8 %v4133
        %v4135 = vlaneseq
        %v4136 = vshrl.u32 %v4135, 7
        %v4137 = vsub.s32 %v4134, %v4136
        %v4138 = vrot.slane %v4110, %v4137
        %v4139 = vcombine.low %v4117, %v4124
        %v4140 = vcombine.low %v4131, %v4138
        %v4142 = vunpack.c.l.s4 1966171168
        %v4143 = vunpack.c.0.s8 %v4142
        %v4144 = vlaneseq
        %v4145 = vshrl.u32 %v4144, 7
        %v4146 = vsub.s32 %v4143, %v4145
        %v4147 = vrot.slane %v4139, %v4146
        %v4149 = vunpack.c.l.s4 1966171168
        %v4150 = vunpack.c.0.s8 %v4149
        %v4151 = vlaneseq
        %v4152 = vshrl.u32 %v4151, 7
        %v4153 = vsub.s32 %v4150, %v4152
        %v4154 = vrot.slane %v4140, %v4153
        %v4155 = vcombine.low %v4147, %v4154
        %v4156 = vcombine.low %v2585, %v3073
        %v4157 = vcombine.low %v2607, %v2608
        %v4158 = vcombine.low %v2609, %v2624
        %v4159 = vcombine.low %v2631, %v2632
        %v4161 = vunpack.c.l.s4 1966171168
        %v4162 = vunpack.c.0.s8 %v4161
        %v4163 = vlaneseq
        %v4164 = vshrl.u32 %v4163, 7
        %v4165 = vsub.s32 %v4162, %v4164
        %v4166 = vrot.slane %v4156, %v4165
        %v4168 = vunpack.c.l.s4 1966171168
        %v4169 = vunpack.c.0.s8 %v4168
        %v4170 = vlaneseq
        %v4171 = vshrl.u32 %v4170, 7
        %v4172 = vsub.s32 %v4169, %v4171
        %v4173 = vrot.slane %v4157, %v4172
        %v4175 = vunpack.c.l.s4 1966171168
        %v4176 = vunpack.c.0.s8 %v4175
        %v4177 = vlaneseq
        %v4178 = vshrl.u32 %v4177, 7
        %v4179 = vsub.s32 %v4176, %v4178
        %v4180 = vrot.slane %v4158, %v4179
        %v4182 = vunpack.c.l.s4 1966171168
        %v4183 = vunpack.c.0.s8 %v4182
        %v4184 = vlaneseq
        %v4185 = vshrl.u32 %v4184, 7
        %v4186 = vsub.s32 %v4183, %v4185
        %v4187 = vrot.slane %v4159, %v4186
        %v4188 = vcombine.low %v4166, %v4173
        %v4189 = vcombine.low %v4180, %v4187
        %v4191 = vunpack.c.l.s4 1966171168
        %v4192 = vunpack.c.0.s8 %v4191
        %v4193 = vlaneseq
        %v4194 = vshrl.u32 %v4193, 7
        %v4195 = vsub.s32 %v4192, %v4194
        %v4196 = vrot.slane %v4188, %v4195
        %v4198 = vunpack.c.l.s4 1966171168
        %v4199 = vunpack.c.0.s8 %v4198
        %v4200 = vlaneseq
        %v4201 = vshrl.u32 %v4200, 7
        %v4202 = vsub.s32 %v4199, %v4201
        %v4203 = vrot.slane %v4189, %v4202
        %v4204 = vcombine.low %v4196, %v4203
        %v4206 = vunpack.c.l.s4 1966171168
        %v4207 = vunpack.c.0.s8 %v4206
        %v4208 = vlaneseq
        %v4209 = vshrl.u32 %v4208, 7
        %v4210 = vsub.s32 %v4207, %v4209
        %v4211 = vrot.slane %v3074, %v4210
        %v4213 = vunpack.c.l.s4 1966171168
        %v4214 = vunpack.c.0.s8 %v4213
        %v4215 = vlaneseq
        %v4216 = vshrl.u32 %v4215, 7
        %v4217 = vsub.s32 %v4214, %v4216
        %v4218 = vrot.slane %v4211, %v4217
        %v4220 = vsel %vm1303, %v3959, 0
        %v4223 = vsel %vm1303, %v4008, 0
        %v4226 = vsel %vm1303, %v4057, 0
        %v4229 = vsel %vm1303, %v4106, 0
        %v4232 = vsel %vm1303, %v4155, 0
        %v4235 = vsel %vm1303, %v4204, 0
        %v4238 = vsel %vm1303, %v4218, 0
        %v4241 = vsel %vm1325, %v3910, 0
        %4243 = vmatprep.subr.bf16.mxu0 0
        %4244 = vmatpush1.bf16.msra.mxu0 0
        %4245 = vmatprep.subr.bf16.mxu0 0
        %4246 = vmatpush1.bf16.msra.mxu0 0
        %4247 = vmatprep.subr.bf16.mxu0 0
        %4248 = vmatpush1.bf16.msra.mxu0 0
        %4249 = vmatprep.subr.bf16.mxu0 0
        %4250 = vmatpush1.bf16.msra.mxu0 0
        %4251 = vmatprep.subr.bf16.mxu0 0
        %4252 = vmatpush1.bf16.msra.mxu0 0
        %4253 = vmatprep.subr.bf16.mxu0 0
        %4254 = vmatpush1.bf16.msra.mxu0 0
        %4255 = vmatprep.subr.bf16.mxu0 0
        %4256 = vmatpush1.bf16.msra.mxu0 0
        %4257 = vmatprep.subr.bf16.mxu0 0
        %4258 = vmatpush1.bf16.msra.mxu0 %v4241
        %4259 = vmatprep.subr.bf16.mxu0 0
        %4260 = vmatpush2.bf16.msra.mxu0 0
        %4261 = vmatprep.subr.bf16.mxu0 0
        %4262 = vmatpush2.bf16.msra.mxu0 0
        %4263 = vmatprep.subr.bf16.mxu0 0
        %4264 = vmatpush2.bf16.msra.mxu0 0
        %4265 = vmatprep.subr.bf16.mxu0 0
        %4266 = vmatpush2.bf16.msra.mxu0 0
        %4267 = vmatprep.subr.bf16.mxu0 0
        %4268 = vmatpush2.bf16.msra.mxu0 0
        %4269 = vmatprep.subr.bf16.mxu0 0
        %4270 = vmatpush2.bf16.msra.mxu0 0
        %4271 = vmatprep.subr.bf16.mxu0 0
        %4272 = vmatpush2.bf16.msra.mxu0 0
        %4273 = vmatprep.subr.bf16.mxu0 0
        %4274 = vmatpush2.bf16.msra.mxu0 0
        %4275 = vmatprep.mubr.bf16.mxu0 0
        %4276 = vmatmul.mubr.bf16.gmra.mxu0 %v4220
        %v4277 = vpop.f32.mrf.mxu0
        %v4278 = vadd.f32 0.0, %v4277
        %v4279 = vpop.f32.mrf.mxu0
        %v4280 = vpop.f32.mrf.mxu0
        %v4281 = vadd.f32 0.0, %v4280
        %v4282 = vpop.f32.mrf.mxu0
        %4283 = vmatprep.mubr.bf16.mxu0 0
        %4284 = vmatmul.mubr.bf16.gmra.mxu0 %v4223
        %v4285 = vpop.f32.mrf.mxu0
        %v4286 = vadd.f32 0.0, %v4285
        %v4287 = vpop.f32.mrf.mxu0
        %v4288 = vpop.f32.mrf.mxu0
        %v4289 = vadd.f32 0.0, %v4288
        %v4290 = vpop.f32.mrf.mxu0
        %4291 = vmatprep.mubr.bf16.mxu0 0
        %4292 = vmatmul.mubr.bf16.gmra.mxu0 %v4226
        %v4293 = vpop.f32.mrf.mxu0
        %v4294 = vadd.f32 0.0, %v4293
        %v4295 = vpop.f32.mrf.mxu0
        %v4296 = vpop.f32.mrf.mxu0
        %v4297 = vadd.f32 0.0, %v4296
        %v4298 = vpop.f32.mrf.mxu0
        %4299 = vmatprep.mubr.bf16.mxu0 0
        %4300 = vmatmul.mubr.bf16.gmra.mxu0 %v4229
        %v4301 = vpop.f32.mrf.mxu0
        %v4302 = vadd.f32 0.0, %v4301
        %v4303 = vpop.f32.mrf.mxu0
        %v4304 = vpop.f32.mrf.mxu0
        %v4305 = vadd.f32 0.0, %v4304
        %v4306 = vpop.f32.mrf.mxu0
        %4307 = vmatprep.mubr.bf16.mxu0 0
        %4308 = vmatmul.mubr.bf16.gmra.mxu0 %v4232
        %v4309 = vpop.f32.mrf.mxu0
        %v4310 = vadd.f32 0.0, %v4309
        %v4311 = vpop.f32.mrf.mxu0
        %v4312 = vpop.f32.mrf.mxu0
        %v4313 = vadd.f32 0.0, %v4312
        %v4314 = vpop.f32.mrf.mxu0
        %4315 = vmatprep.mubr.bf16.mxu0 0
        %4316 = vmatmul.mubr.bf16.gmra.mxu0 %v4235
        %v4317 = vpop.f32.mrf.mxu0
        %v4318 = vadd.f32 0.0, %v4317
        %v4319 = vpop.f32.mrf.mxu0
        %v4320 = vpop.f32.mrf.mxu0
        %v4321 = vadd.f32 0.0, %v4320
        %v4322 = vpop.f32.mrf.mxu0
        %4323 = vmatprep.mubr.bf16.mxu0 0
        %4324 = vmatmul.mubr.bf16.gmra.mxu0 %v4238
        %v4325 = vpop.f32.mrf.mxu0
        %v4326 = vadd.f32 0.0, %v4325
        %v4327 = vpop.f32.mrf.mxu0
        %v4328 = vpop.f32.mrf.mxu0
        %v4329 = vpop.f32.mrf.mxu0
        %4330 = vdwg.mxu0
        %v4331 = vadd.f32 %v3896, %v4278
        %v4332 = vadd.f32 %v3897, %v4281
        %v4333 = vadd.f32 %v3898, %v4286
        %v4334 = vadd.f32 %v3899, %v4289
        %v4335 = vadd.f32 %v3900, %v4294
        %v4336 = vadd.f32 %v3901, %v4297
        %v4337 = vadd.f32 %v3902, %v4302
        %v4338 = vadd.f32 %v3903, %v4305
        %v4339 = vadd.f32 %v3904, %v4310
        %v4340 = vadd.f32 %v3905, %v4313
        %v4341 = vadd.f32 %v3906, %v4318
        %v4342 = vadd.f32 %v3907, %v4321
        %v4343 = vadd.f32 %v3908, %v4326
        %s4344 = sadd.s32 %s210, 2
        %s4345 = smul.u32 %s4344, 2
        %s4346 = smul.addr %s4345, 4
        %s4347 = scalar_lea.vmem %s197, %s4346
        %v4348 = vld [vmem:[%s4347] sm:$0xf]
        %v4349 = vld [vmem:[%s4347 + $0x4] sm:$0xf]
        %v4350 = vld [vmem:[%s4347 + $0x8] sm:$0xf]
        %v4351 = vld [vmem:[%s4347 + $0xc] sm:$0xf]
        %v4352 = vld [vmem:[%s4347 + $0x10] sm:$0xf]
        %v4353 = vld [vmem:[%s4347 + $0x14] sm:$0xf]
        %v4354 = vld [vmem:[%s4347 + $0x18] sm:$0xf]
        %v4355 = vld [vmem:[%s4347 + $0x1c] sm:$0xf]
        %v4356 = vld [vmem:[%s4347 + $0x20] sm:$0xf]
        %v4357 = vld [vmem:[%s4347 + $0x24] sm:$0xf]
        %v4358 = vld [vmem:[%s4347 + $0x28] sm:$0xf]
        %v4359 = vld [vmem:[%s4347 + $0x2c] sm:$0xf]
        %v4360 = vld [vmem:[%s4347 + $0x30] sm:$0xf]
        %v4361 = vld [vmem:[%s4347 + $0x34] sm:$0xf]
        %v4377 = vunpack.c.l.s4 1966171168
        %v4378 = vunpack.c.0.s8 %v4377
        %v4379 = vlaneseq
        %v4380 = vshrl.u32 %v4379, 7
        %v4381 = vsub.s32 %v4378, %v4380
        %v4382 = vrot.slane %v4348, %v4381
        %v4383 = vcombine.high %v4382, %v4382
        %v4385 = vunpack.c.l.s4 1966171168
        %v4386 = vunpack.c.0.s8 %v4385
        %v4387 = vlaneseq
        %v4388 = vshrl.u32 %v4387, 7
        %v4389 = vsub.s32 %v4386, %v4388
        %v4390 = vrot.slane %v4382, %v4389
        %v4392 = vunpack.c.l.s4 1966171168
        %v4393 = vunpack.c.0.s8 %v4392
        %v4394 = vlaneseq
        %v4395 = vshrl.u32 %v4394, 7
        %v4396 = vsub.s32 %v4393, %v4395
        %v4397 = vrot.slane %v4383, %v4396
        %v4398 = vcombine.high %v4390, %v4390
        %v4399 = vcombine.high %v4397, %v4397
        %v4401 = vunpack.c.l.s4 1966171168
        %v4402 = vunpack.c.0.s8 %v4401
        %v4403 = vlaneseq
        %v4404 = vshrl.u32 %v4403, 7
        %v4405 = vsub.s32 %v4402, %v4404
        %v4406 = vrot.slane %v4349, %v4405
        %v4407 = vcombine.high %v4406, %v4406
        %v4409 = vunpack.c.l.s4 1966171168
        %v4410 = vunpack.c.0.s8 %v4409
        %v4411 = vlaneseq
        %v4412 = vshrl.u32 %v4411, 7
        %v4413 = vsub.s32 %v4410, %v4412
        %v4414 = vrot.slane %v4406, %v4413
        %v4416 = vunpack.c.l.s4 1966171168
        %v4417 = vunpack.c.0.s8 %v4416
        %v4418 = vlaneseq
        %v4419 = vshrl.u32 %v4418, 7
        %v4420 = vsub.s32 %v4417, %v4419
        %v4421 = vrot.slane %v4407, %v4420
        %v4422 = vcombine.high %v4414, %v4414
        %v4424 = vunpack.c.l.s4 1966171168
        %v4425 = vunpack.c.0.s8 %v4424
        %v4426 = vlaneseq
        %v4427 = vshrl.u32 %v4426, 7
        %v4428 = vsub.s32 %v4425, %v4427
        %v4429 = vrot.slane %v4350, %v4428
        %v4430 = vcombine.high %v4429, %v4429
        %v4432 = vunpack.c.l.s4 1966171168
        %v4433 = vunpack.c.0.s8 %v4432
        %v4434 = vlaneseq
        %v4435 = vshrl.u32 %v4434, 7
        %v4436 = vsub.s32 %v4433, %v4435
        %v4437 = vrot.slane %v4429, %v4436
        %v4439 = vunpack.c.l.s4 1966171168
        %v4440 = vunpack.c.0.s8 %v4439
        %v4441 = vlaneseq
        %v4442 = vshrl.u32 %v4441, 7
        %v4443 = vsub.s32 %v4440, %v4442
        %v4444 = vrot.slane %v4430, %v4443
        %v4445 = vcombine.high %v4437, %v4437
        %v4446 = vcombine.high %v4444, %v4444
        %v4448 = vunpack.c.l.s4 1966171168
        %v4449 = vunpack.c.0.s8 %v4448
        %v4450 = vlaneseq
        %v4451 = vshrl.u32 %v4450, 7
        %v4452 = vsub.s32 %v4449, %v4451
        %v4453 = vrot.slane %v4351, %v4452
        %v4454 = vcombine.high %v4453, %v4453
        %v4456 = vunpack.c.l.s4 1966171168
        %v4457 = vunpack.c.0.s8 %v4456
        %v4458 = vlaneseq
        %v4459 = vshrl.u32 %v4458, 7
        %v4460 = vsub.s32 %v4457, %v4459
        %v4461 = vrot.slane %v4453, %v4460
        %v4463 = vunpack.c.l.s4 1966171168
        %v4464 = vunpack.c.0.s8 %v4463
        %v4465 = vlaneseq
        %v4466 = vshrl.u32 %v4465, 7
        %v4467 = vsub.s32 %v4464, %v4466
        %v4468 = vrot.slane %v4454, %v4467
        %v4469 = vcombine.high %v4461, %v4461
        %v4471 = vunpack.c.l.s4 1966171168
        %v4472 = vunpack.c.0.s8 %v4471
        %v4473 = vlaneseq
        %v4474 = vshrl.u32 %v4473, 7
        %v4475 = vsub.s32 %v4472, %v4474
        %v4476 = vrot.slane %v4352, %v4475
        %v4477 = vcombine.high %v4476, %v4476
        %v4479 = vunpack.c.l.s4 1966171168
        %v4480 = vunpack.c.0.s8 %v4479
        %v4481 = vlaneseq
        %v4482 = vshrl.u32 %v4481, 7
        %v4483 = vsub.s32 %v4480, %v4482
        %v4484 = vrot.slane %v4476, %v4483
        %v4486 = vunpack.c.l.s4 1966171168
        %v4487 = vunpack.c.0.s8 %v4486
        %v4488 = vlaneseq
        %v4489 = vshrl.u32 %v4488, 7
        %v4490 = vsub.s32 %v4487, %v4489
        %v4491 = vrot.slane %v4477, %v4490
        %v4492 = vcombine.high %v4484, %v4484
        %v4493 = vcombine.high %v4491, %v4491
        %v4495 = vunpack.c.l.s4 1966171168
        %v4496 = vunpack.c.0.s8 %v4495
        %v4497 = vlaneseq
        %v4498 = vshrl.u32 %v4497, 7
        %v4499 = vsub.s32 %v4496, %v4498
        %v4500 = vrot.slane %v4353, %v4499
        %v4501 = vcombine.high %v4500, %v4500
        %v4503 = vunpack.c.l.s4 1966171168
        %v4504 = vunpack.c.0.s8 %v4503
        %v4505 = vlaneseq
        %v4506 = vshrl.u32 %v4505, 7
        %v4507 = vsub.s32 %v4504, %v4506
        %v4508 = vrot.slane %v4500, %v4507
        %v4510 = vunpack.c.l.s4 1966171168
        %v4511 = vunpack.c.0.s8 %v4510
        %v4512 = vlaneseq
        %v4513 = vshrl.u32 %v4512, 7
        %v4514 = vsub.s32 %v4511, %v4513
        %v4515 = vrot.slane %v4501, %v4514
        %v4516 = vcombine.high %v4508, %v4508
        %v4518 = vunpack.c.l.s4 1966171168
        %v4519 = vunpack.c.0.s8 %v4518
        %v4520 = vlaneseq
        %v4521 = vshrl.u32 %v4520, 7
        %v4522 = vsub.s32 %v4519, %v4521
        %v4523 = vrot.slane %v4354, %v4522
        %v4524 = vcombine.high %v4523, %v4523
        %v4526 = vunpack.c.l.s4 1966171168
        %v4527 = vunpack.c.0.s8 %v4526
        %v4528 = vlaneseq
        %v4529 = vshrl.u32 %v4528, 7
        %v4530 = vsub.s32 %v4527, %v4529
        %v4531 = vrot.slane %v4523, %v4530
        %v4533 = vunpack.c.l.s4 1966171168
        %v4534 = vunpack.c.0.s8 %v4533
        %v4535 = vlaneseq
        %v4536 = vshrl.u32 %v4535, 7
        %v4537 = vsub.s32 %v4534, %v4536
        %v4538 = vrot.slane %v4524, %v4537
        %v4539 = vcombine.high %v4531, %v4531
        %v4540 = vcombine.high %v4538, %v4538
        %v4542 = vunpack.c.l.s4 1966171168
        %v4543 = vunpack.c.0.s8 %v4542
        %v4544 = vlaneseq
        %v4545 = vshrl.u32 %v4544, 7
        %v4546 = vsub.s32 %v4543, %v4545
        %v4547 = vrot.slane %v4355, %v4546
        %v4548 = vcombine.high %v4547, %v4547
        %v4550 = vunpack.c.l.s4 1966171168
        %v4551 = vunpack.c.0.s8 %v4550
        %v4552 = vlaneseq
        %v4553 = vshrl.u32 %v4552, 7
        %v4554 = vsub.s32 %v4551, %v4553
        %v4555 = vrot.slane %v4547, %v4554
        %v4557 = vunpack.c.l.s4 1966171168
        %v4558 = vunpack.c.0.s8 %v4557
        %v4559 = vlaneseq
        %v4560 = vshrl.u32 %v4559, 7
        %v4561 = vsub.s32 %v4558, %v4560
        %v4562 = vrot.slane %v4548, %v4561
        %v4563 = vcombine.high %v4555, %v4555
        %v4565 = vunpack.c.l.s4 1966171168
        %v4566 = vunpack.c.0.s8 %v4565
        %v4567 = vlaneseq
        %v4568 = vshrl.u32 %v4567, 7
        %v4569 = vsub.s32 %v4566, %v4568
        %v4570 = vrot.slane %v4356, %v4569
        %v4571 = vcombine.high %v4570, %v4570
        %v4573 = vunpack.c.l.s4 1966171168
        %v4574 = vunpack.c.0.s8 %v4573
        %v4575 = vlaneseq
        %v4576 = vshrl.u32 %v4575, 7
        %v4577 = vsub.s32 %v4574, %v4576
        %v4578 = vrot.slane %v4570, %v4577
        %v4580 = vunpack.c.l.s4 1966171168
        %v4581 = vunpack.c.0.s8 %v4580
        %v4582 = vlaneseq
        %v4583 = vshrl.u32 %v4582, 7
        %v4584 = vsub.s32 %v4581, %v4583
        %v4585 = vrot.slane %v4571, %v4584
        %v4586 = vcombine.high %v4578, %v4578
        %v4587 = vcombine.high %v4585, %v4585
        %v4589 = vunpack.c.l.s4 1966171168
        %v4590 = vunpack.c.0.s8 %v4589
        %v4591 = vlaneseq
        %v4592 = vshrl.u32 %v4591, 7
        %v4593 = vsub.s32 %v4590, %v4592
        %v4594 = vrot.slane %v4357, %v4593
        %v4595 = vcombine.high %v4594, %v4594
        %v4597 = vunpack.c.l.s4 1966171168
        %v4598 = vunpack.c.0.s8 %v4597
        %v4599 = vlaneseq
        %v4600 = vshrl.u32 %v4599, 7
        %v4601 = vsub.s32 %v4598, %v4600
        %v4602 = vrot.slane %v4594, %v4601
        %v4604 = vunpack.c.l.s4 1966171168
        %v4605 = vunpack.c.0.s8 %v4604
        %v4606 = vlaneseq
        %v4607 = vshrl.u32 %v4606, 7
        %v4608 = vsub.s32 %v4605, %v4607
        %v4609 = vrot.slane %v4595, %v4608
        %v4610 = vcombine.high %v4602, %v4602
        %v4612 = vunpack.c.l.s4 1966171168
        %v4613 = vunpack.c.0.s8 %v4612
        %v4614 = vlaneseq
        %v4615 = vshrl.u32 %v4614, 7
        %v4616 = vsub.s32 %v4613, %v4615
        %v4617 = vrot.slane %v4358, %v4616
        %v4618 = vcombine.high %v4617, %v4617
        %v4620 = vunpack.c.l.s4 1966171168
        %v4621 = vunpack.c.0.s8 %v4620
        %v4622 = vlaneseq
        %v4623 = vshrl.u32 %v4622, 7
        %v4624 = vsub.s32 %v4621, %v4623
        %v4625 = vrot.slane %v4617, %v4624
        %v4627 = vunpack.c.l.s4 1966171168
        %v4628 = vunpack.c.0.s8 %v4627
        %v4629 = vlaneseq
        %v4630 = vshrl.u32 %v4629, 7
        %v4631 = vsub.s32 %v4628, %v4630
        %v4632 = vrot.slane %v4618, %v4631
        %v4633 = vcombine.high %v4625, %v4625
        %v4634 = vcombine.high %v4632, %v4632
        %v4636 = vunpack.c.l.s4 1966171168
        %v4637 = vunpack.c.0.s8 %v4636
        %v4638 = vlaneseq
        %v4639 = vshrl.u32 %v4638, 7
        %v4640 = vsub.s32 %v4637, %v4639
        %v4641 = vrot.slane %v4359, %v4640
        %v4642 = vcombine.high %v4641, %v4641
        %v4644 = vunpack.c.l.s4 1966171168
        %v4645 = vunpack.c.0.s8 %v4644
        %v4646 = vlaneseq
        %v4647 = vshrl.u32 %v4646, 7
        %v4648 = vsub.s32 %v4645, %v4647
        %v4649 = vrot.slane %v4641, %v4648
        %v4651 = vunpack.c.l.s4 1966171168
        %v4652 = vunpack.c.0.s8 %v4651
        %v4653 = vlaneseq
        %v4654 = vshrl.u32 %v4653, 7
        %v4655 = vsub.s32 %v4652, %v4654
        %v4656 = vrot.slane %v4642, %v4655
        %v4657 = vcombine.high %v4649, %v4649
        %v4659 = vunpack.c.l.s4 1966171168
        %v4660 = vunpack.c.0.s8 %v4659
        %v4661 = vlaneseq
        %v4662 = vshrl.u32 %v4661, 7
        %v4663 = vsub.s32 %v4660, %v4662
        %v4664 = vrot.slane %v4360, %v4663
        %v4665 = vcombine.high %v4664, %v4664
        %v4667 = vunpack.c.l.s4 1966171168
        %v4668 = vunpack.c.0.s8 %v4667
        %v4669 = vlaneseq
        %v4670 = vshrl.u32 %v4669, 7
        %v4671 = vsub.s32 %v4668, %v4670
        %v4672 = vrot.slane %v4664, %v4671
        %v4674 = vunpack.c.l.s4 1966171168
        %v4675 = vunpack.c.0.s8 %v4674
        %v4676 = vlaneseq
        %v4677 = vshrl.u32 %v4676, 7
        %v4678 = vsub.s32 %v4675, %v4677
        %v4679 = vrot.slane %v4665, %v4678
        %v4680 = vcombine.high %v4672, %v4672
        %v4681 = vcombine.high %v4679, %v4679
        %v4683 = vunpack.c.l.s4 1966171168
        %v4684 = vunpack.c.0.s8 %v4683
        %v4685 = vlaneseq
        %v4686 = vshrl.u32 %v4685, 7
        %v4687 = vsub.s32 %v4684, %v4686
        %v4688 = vrot.slane %v4361, %v4687
        %v4689 = vcombine.high %v4688, %v4688
        %v4691 = vunpack.c.l.s4 1966171168
        %v4692 = vunpack.c.0.s8 %v4691
        %v4693 = vlaneseq
        %v4694 = vshrl.u32 %v4693, 7
        %v4695 = vsub.s32 %v4692, %v4694
        %v4696 = vrot.slane %v4688, %v4695
        %v4698 = vunpack.c.l.s4 1966171168
        %v4699 = vunpack.c.0.s8 %v4698
        %v4700 = vlaneseq
        %v4701 = vshrl.u32 %v4700, 7
        %v4702 = vsub.s32 %v4699, %v4701
        %v4703 = vrot.slane %v4689, %v4702
        %v4704 = vcombine.high %v4696, %v4696
        %s4705 = scalar_lea.vmem %s1, 12
        %v4706 = vld [vmem:[%s4705] sm:$0x3]
        %v4707 = vcombine.low %v4390, %v4397
        %v4708 = vcombine.low %v4398, %v4399
        %v4709 = vcombine.low %v4414, %v4421
        %v4710 = vcombine.low %v4422, %v4437
        %v4712 = vunpack.c.l.s4 1966171168
        %v4713 = vunpack.c.0.s8 %v4712
        %v4714 = vlaneseq
        %v4715 = vshrl.u32 %v4714, 7
        %v4716 = vsub.s32 %v4713, %v4715
        %v4717 = vrot.slane %v4707, %v4716
        %v4719 = vunpack.c.l.s4 1966171168
        %v4720 = vunpack.c.0.s8 %v4719
        %v4721 = vlaneseq
        %v4722 = vshrl.u32 %v4721, 7
        %v4723 = vsub.s32 %v4720, %v4722
        %v4724 = vrot.slane %v4708, %v4723
        %v4726 = vunpack.c.l.s4 1966171168
        %v4727 = vunpack.c.0.s8 %v4726
        %v4728 = vlaneseq
        %v4729 = vshrl.u32 %v4728, 7
        %v4730 = vsub.s32 %v4727, %v4729
        %v4731 = vrot.slane %v4709, %v4730
        %v4733 = vunpack.c.l.s4 1966171168
        %v4734 = vunpack.c.0.s8 %v4733
        %v4735 = vlaneseq
        %v4736 = vshrl.u32 %v4735, 7
        %v4737 = vsub.s32 %v4734, %v4736
        %v4738 = vrot.slane %v4710, %v4737
        %v4739 = vcombine.low %v4717, %v4724
        %v4740 = vcombine.low %v4731, %v4738
        %v4742 = vunpack.c.l.s4 1966171168
        %v4743 = vunpack.c.0.s8 %v4742
        %v4744 = vlaneseq
        %v4745 = vshrl.u32 %v4744, 7
        %v4746 = vsub.s32 %v4743, %v4745
        %v4747 = vrot.slane %v4739, %v4746
        %v4749 = vunpack.c.l.s4 1966171168
        %v4750 = vunpack.c.0.s8 %v4749
        %v4751 = vlaneseq
        %v4752 = vshrl.u32 %v4751, 7
        %v4753 = vsub.s32 %v4750, %v4752
        %v4754 = vrot.slane %v4740, %v4753
        %v4755 = vcombine.low %v4747, %v4754
        %v4756 = vcombine.low %v4444, %v4445
        %v4757 = vcombine.low %v4446, %v4461
        %v4758 = vcombine.low %v4468, %v4469
        %v4759 = vcombine.low %v4484, %v4491
        %v4761 = vunpack.c.l.s4 1966171168
        %v4762 = vunpack.c.0.s8 %v4761
        %v4763 = vlaneseq
        %v4764 = vshrl.u32 %v4763, 7
        %v4765 = vsub.s32 %v4762, %v4764
        %v4766 = vrot.slane %v4756, %v4765
        %v4768 = vunpack.c.l.s4 1966171168
        %v4769 = vunpack.c.0.s8 %v4768
        %v4770 = vlaneseq
        %v4771 = vshrl.u32 %v4770, 7
        %v4772 = vsub.s32 %v4769, %v4771
        %v4773 = vrot.slane %v4757, %v4772
        %v4775 = vunpack.c.l.s4 1966171168
        %v4776 = vunpack.c.0.s8 %v4775
        %v4777 = vlaneseq
        %v4778 = vshrl.u32 %v4777, 7
        %v4779 = vsub.s32 %v4776, %v4778
        %v4780 = vrot.slane %v4758, %v4779
        %v4782 = vunpack.c.l.s4 1966171168
        %v4783 = vunpack.c.0.s8 %v4782
        %v4784 = vlaneseq
        %v4785 = vshrl.u32 %v4784, 7
        %v4786 = vsub.s32 %v4783, %v4785
        %v4787 = vrot.slane %v4759, %v4786
        %v4788 = vcombine.low %v4766, %v4773
        %v4789 = vcombine.low %v4780, %v4787
        %v4791 = vunpack.c.l.s4 1966171168
        %v4792 = vunpack.c.0.s8 %v4791
        %v4793 = vlaneseq
        %v4794 = vshrl.u32 %v4793, 7
        %v4795 = vsub.s32 %v4792, %v4794
        %v4796 = vrot.slane %v4788, %v4795
        %v4798 = vunpack.c.l.s4 1966171168
        %v4799 = vunpack.c.0.s8 %v4798
        %v4800 = vlaneseq
        %v4801 = vshrl.u32 %v4800, 7
        %v4802 = vsub.s32 %v4799, %v4801
        %v4803 = vrot.slane %v4789, %v4802
        %v4804 = vcombine.low %v4796, %v4803
        %v4805 = vcombine.low %v4492, %v4493
        %v4806 = vcombine.low %v4508, %v4515
        %v4807 = vcombine.low %v4516, %v4531
        %v4808 = vcombine.low %v4538, %v4539
        %v4810 = vunpack.c.l.s4 1966171168
        %v4811 = vunpack.c.0.s8 %v4810
        %v4812 = vlaneseq
        %v4813 = vshrl.u32 %v4812, 7
        %v4814 = vsub.s32 %v4811, %v4813
        %v4815 = vrot.slane %v4805, %v4814
        %v4817 = vunpack.c.l.s4 1966171168
        %v4818 = vunpack.c.0.s8 %v4817
        %v4819 = vlaneseq
        %v4820 = vshrl.u32 %v4819, 7
        %v4821 = vsub.s32 %v4818, %v4820
        %v4822 = vrot.slane %v4806, %v4821
        %v4824 = vunpack.c.l.s4 1966171168
        %v4825 = vunpack.c.0.s8 %v4824
        %v4826 = vlaneseq
        %v4827 = vshrl.u32 %v4826, 7
        %v4828 = vsub.s32 %v4825, %v4827
        %v4829 = vrot.slane %v4807, %v4828
        %v4831 = vunpack.c.l.s4 1966171168
        %v4832 = vunpack.c.0.s8 %v4831
        %v4833 = vlaneseq
        %v4834 = vshrl.u32 %v4833, 7
        %v4835 = vsub.s32 %v4832, %v4834
        %v4836 = vrot.slane %v4808, %v4835
        %v4837 = vcombine.low %v4815, %v4822
        %v4838 = vcombine.low %v4829, %v4836
        %v4840 = vunpack.c.l.s4 1966171168
        %v4841 = vunpack.c.0.s8 %v4840
        %v4842 = vlaneseq
        %v4843 = vshrl.u32 %v4842, 7
        %v4844 = vsub.s32 %v4841, %v4843
        %v4845 = vrot.slane %v4837, %v4844
        %v4847 = vunpack.c.l.s4 1966171168
        %v4848 = vunpack.c.0.s8 %v4847
        %v4849 = vlaneseq
        %v4850 = vshrl.u32 %v4849, 7
        %v4851 = vsub.s32 %v4848, %v4850
        %v4852 = vrot.slane %v4838, %v4851
        %v4853 = vcombine.low %v4845, %v4852
        %v4854 = vcombine.low %v4540, %v4555
        %v4855 = vcombine.low %v4562, %v4563
        %v4856 = vcombine.low %v4578, %v4585
        %v4857 = vcombine.low %v4586, %v4587
        %v4859 = vunpack.c.l.s4 1966171168
        %v4860 = vunpack.c.0.s8 %v4859
        %v4861 = vlaneseq
        %v4862 = vshrl.u32 %v4861, 7
        %v4863 = vsub.s32 %v4860, %v4862
        %v4864 = vrot.slane %v4854, %v4863
        %v4866 = vunpack.c.l.s4 1966171168
        %v4867 = vunpack.c.0.s8 %v4866
        %v4868 = vlaneseq
        %v4869 = vshrl.u32 %v4868, 7
        %v4870 = vsub.s32 %v4867, %v4869
        %v4871 = vrot.slane %v4855, %v4870
        %v4873 = vunpack.c.l.s4 1966171168
        %v4874 = vunpack.c.0.s8 %v4873
        %v4875 = vlaneseq
        %v4876 = vshrl.u32 %v4875, 7
        %v4877 = vsub.s32 %v4874, %v4876
        %v4878 = vrot.slane %v4856, %v4877
        %v4880 = vunpack.c.l.s4 1966171168
        %v4881 = vunpack.c.0.s8 %v4880
        %v4882 = vlaneseq
        %v4883 = vshrl.u32 %v4882, 7
        %v4884 = vsub.s32 %v4881, %v4883
        %v4885 = vrot.slane %v4857, %v4884
        %v4886 = vcombine.low %v4864, %v4871
        %v4887 = vcombine.low %v4878, %v4885
        %v4889 = vunpack.c.l.s4 1966171168
        %v4890 = vunpack.c.0.s8 %v4889
        %v4891 = vlaneseq
        %v4892 = vshrl.u32 %v4891, 7
        %v4893 = vsub.s32 %v4890, %v4892
        %v4894 = vrot.slane %v4886, %v4893
        %v4896 = vunpack.c.l.s4 1966171168
        %v4897 = vunpack.c.0.s8 %v4896
        %v4898 = vlaneseq
        %v4899 = vshrl.u32 %v4898, 7
        %v4900 = vsub.s32 %v4897, %v4899
        %v4901 = vrot.slane %v4887, %v4900
        %v4902 = vcombine.low %v4894, %v4901
        %v4903 = vcombine.low %v4602, %v4609
        %v4904 = vcombine.low %v4610, %v4625
        %v4905 = vcombine.low %v4632, %v4633
        %v4906 = vcombine.low %v4634, %v4649
        %v4908 = vunpack.c.l.s4 1966171168
        %v4909 = vunpack.c.0.s8 %v4908
        %v4910 = vlaneseq
        %v4911 = vshrl.u32 %v4910, 7
        %v4912 = vsub.s32 %v4909, %v4911
        %v4913 = vrot.slane %v4903, %v4912
        %v4915 = vunpack.c.l.s4 1966171168
        %v4916 = vunpack.c.0.s8 %v4915
        %v4917 = vlaneseq
        %v4918 = vshrl.u32 %v4917, 7
        %v4919 = vsub.s32 %v4916, %v4918
        %v4920 = vrot.slane %v4904, %v4919
        %v4922 = vunpack.c.l.s4 1966171168
        %v4923 = vunpack.c.0.s8 %v4922
        %v4924 = vlaneseq
        %v4925 = vshrl.u32 %v4924, 7
        %v4926 = vsub.s32 %v4923, %v4925
        %v4927 = vrot.slane %v4905, %v4926
        %v4929 = vunpack.c.l.s4 1966171168
        %v4930 = vunpack.c.0.s8 %v4929
        %v4931 = vlaneseq
        %v4932 = vshrl.u32 %v4931, 7
        %v4933 = vsub.s32 %v4930, %v4932
        %v4934 = vrot.slane %v4906, %v4933
        %v4935 = vcombine.low %v4913, %v4920
        %v4936 = vcombine.low %v4927, %v4934
        %v4938 = vunpack.c.l.s4 1966171168
        %v4939 = vunpack.c.0.s8 %v4938
        %v4940 = vlaneseq
        %v4941 = vshrl.u32 %v4940, 7
        %v4942 = vsub.s32 %v4939, %v4941
        %v4943 = vrot.slane %v4935, %v4942
        %v4945 = vunpack.c.l.s4 1966171168
        %v4946 = vunpack.c.0.s8 %v4945
        %v4947 = vlaneseq
        %v4948 = vshrl.u32 %v4947, 7
        %v4949 = vsub.s32 %v4946, %v4948
        %v4950 = vrot.slane %v4936, %v4949
        %v4951 = vcombine.low %v4943, %v4950
        %v4952 = vcombine.low %v4656, %v4657
        %v4953 = vcombine.low %v4672, %v4679
        %v4954 = vcombine.low %v4680, %v4681
        %v4955 = vcombine.low %v4696, %v4703
        %v4957 = vunpack.c.l.s4 1966171168
        %v4958 = vunpack.c.0.s8 %v4957
        %v4959 = vlaneseq
        %v4960 = vshrl.u32 %v4959, 7
        %v4961 = vsub.s32 %v4958, %v4960
        %v4962 = vrot.slane %v4952, %v4961
        %v4964 = vunpack.c.l.s4 1966171168
        %v4965 = vunpack.c.0.s8 %v4964
        %v4966 = vlaneseq
        %v4967 = vshrl.u32 %v4966, 7
        %v4968 = vsub.s32 %v4965, %v4967
        %v4969 = vrot.slane %v4953, %v4968
        %v4971 = vunpack.c.l.s4 1966171168
        %v4972 = vunpack.c.0.s8 %v4971
        %v4973 = vlaneseq
        %v4974 = vshrl.u32 %v4973, 7
        %v4975 = vsub.s32 %v4972, %v4974
        %v4976 = vrot.slane %v4954, %v4975
        %v4978 = vunpack.c.l.s4 1966171168
        %v4979 = vunpack.c.0.s8 %v4978
        %v4980 = vlaneseq
        %v4981 = vshrl.u32 %v4980, 7
        %v4982 = vsub.s32 %v4979, %v4981
        %v4983 = vrot.slane %v4955, %v4982
        %v4984 = vcombine.low %v4962, %v4969
        %v4985 = vcombine.low %v4976, %v4983
        %v4987 = vunpack.c.l.s4 1966171168
        %v4988 = vunpack.c.0.s8 %v4987
        %v4989 = vlaneseq
        %v4990 = vshrl.u32 %v4989, 7
        %v4991 = vsub.s32 %v4988, %v4990
        %v4992 = vrot.slane %v4984, %v4991
        %v4994 = vunpack.c.l.s4 1966171168
        %v4995 = vunpack.c.0.s8 %v4994
        %v4996 = vlaneseq
        %v4997 = vshrl.u32 %v4996, 7
        %v4998 = vsub.s32 %v4995, %v4997
        %v4999 = vrot.slane %v4985, %v4998
        %v5000 = vcombine.low %v4992, %v4999
        %v5002 = vunpack.c.l.s4 1966171168
        %v5003 = vunpack.c.0.s8 %v5002
        %v5004 = vlaneseq
        %v5005 = vshrl.u32 %v5004, 7
        %v5006 = vsub.s32 %v5003, %v5005
        %v5007 = vrot.slane %v4704, %v5006
        %v5009 = vunpack.c.l.s4 1966171168
        %v5010 = vunpack.c.0.s8 %v5009
        %v5011 = vlaneseq
        %v5012 = vshrl.u32 %v5011, 7
        %v5013 = vsub.s32 %v5010, %v5012
        %v5014 = vrot.slane %v5007, %v5013
        %v5016 = vsel %vm1303, %v4755, 0
        %v5019 = vsel %vm1303, %v4804, 0
        %v5022 = vsel %vm1303, %v4853, 0
        %v5025 = vsel %vm1303, %v4902, 0
        %v5028 = vsel %vm1303, %v4951, 0
        %v5031 = vsel %vm1303, %v5000, 0
        %v5034 = vsel %vm1303, %v5014, 0
        %v5037 = vsel %vm1325, %v4706, 0
        %5039 = vmatprep.subr.bf16.mxu0 0
        %5040 = vmatpush1.bf16.msra.mxu0 0
        %5041 = vmatprep.subr.bf16.mxu0 0
        %5042 = vmatpush1.bf16.msra.mxu0 0
        %5043 = vmatprep.subr.bf16.mxu0 0
        %5044 = vmatpush1.bf16.msra.mxu0 0
        %5045 = vmatprep.subr.bf16.mxu0 0
        %5046 = vmatpush1.bf16.msra.mxu0 0
        %5047 = vmatprep.subr.bf16.mxu0 0
        %5048 = vmatpush1.bf16.msra.mxu0 0
        %5049 = vmatprep.subr.bf16.mxu0 0
        %5050 = vmatpush1.bf16.msra.mxu0 0
        %5051 = vmatprep.subr.bf16.mxu0 0
        %5052 = vmatpush1.bf16.msra.mxu0 0
        %5053 = vmatprep.subr.bf16.mxu0 0
        %5054 = vmatpush1.bf16.msra.mxu0 %v5037
        %5055 = vmatprep.subr.bf16.mxu0 0
        %5056 = vmatpush2.bf16.msra.mxu0 0
        %5057 = vmatprep.subr.bf16.mxu0 0
        %5058 = vmatpush2.bf16.msra.mxu0 0
        %5059 = vmatprep.subr.bf16.mxu0 0
        %5060 = vmatpush2.bf16.msra.mxu0 0
        %5061 = vmatprep.subr.bf16.mxu0 0
        %5062 = vmatpush2.bf16.msra.mxu0 0
        %5063 = vmatprep.subr.bf16.mxu0 0
        %5064 = vmatpush2.bf16.msra.mxu0 0
        %5065 = vmatprep.subr.bf16.mxu0 0
        %5066 = vmatpush2.bf16.msra.mxu0 0
        %5067 = vmatprep.subr.bf16.mxu0 0
        %5068 = vmatpush2.bf16.msra.mxu0 0
        %5069 = vmatprep.subr.bf16.mxu0 0
        %5070 = vmatpush2.bf16.msra.mxu0 0
        %5071 = vmatprep.mubr.bf16.mxu0 0
        %5072 = vmatmul.mubr.bf16.gmra.mxu0 %v5016
        %v5073 = vpop.f32.mrf.mxu0
        %v5074 = vadd.f32 0.0, %v5073
        %v5075 = vpop.f32.mrf.mxu0
        %v5076 = vpop.f32.mrf.mxu0
        %v5077 = vadd.f32 0.0, %v5076
        %v5078 = vpop.f32.mrf.mxu0
        %5079 = vmatprep.mubr.bf16.mxu0 0
        %5080 = vmatmul.mubr.bf16.gmra.mxu0 %v5019
        %v5081 = vpop.f32.mrf.mxu0
        %v5082 = vadd.f32 0.0, %v5081
        %v5083 = vpop.f32.mrf.mxu0
        %v5084 = vpop.f32.mrf.mxu0
        %v5085 = vadd.f32 0.0, %v5084
        %v5086 = vpop.f32.mrf.mxu0
        %5087 = vmatprep.mubr.bf16.mxu0 0
        %5088 = vmatmul.mubr.bf16.gmra.mxu0 %v5022
        %v5089 = vpop.f32.mrf.mxu0
        %v5090 = vadd.f32 0.0, %v5089
        %v5091 = vpop.f32.mrf.mxu0
        %v5092 = vpop.f32.mrf.mxu0
        %v5093 = vadd.f32 0.0, %v5092
        %v5094 = vpop.f32.mrf.mxu0
        %5095 = vmatprep.mubr.bf16.mxu0 0
        %5096 = vmatmul.mubr.bf16.gmra.mxu0 %v5025
        %v5097 = vpop.f32.mrf.mxu0
        %v5098 = vadd.f32 0.0, %v5097
        %v5099 = vpop.f32.mrf.mxu0
        %v5100 = vpop.f32.mrf.mxu0
        %v5101 = vadd.f32 0.0, %v5100
        %v5102 = vpop.f32.mrf.mxu0
        %5103 = vmatprep.mubr.bf16.mxu0 0
        %5104 = vmatmul.mubr.bf16.gmra.mxu0 %v5028
        %v5105 = vpop.f32.mrf.mxu0
        %v5106 = vadd.f32 0.0, %v5105
        %v5107 = vpop.f32.mrf.mxu0
        %v5108 = vpop.f32.mrf.mxu0
        %v5109 = vadd.f32 0.0, %v5108
        %v5110 = vpop.f32.mrf.mxu0
        %5111 = vmatprep.mubr.bf16.mxu0 0
        %5112 = vmatmul.mubr.bf16.gmra.mxu0 %v5031
        %v5113 = vpop.f32.mrf.mxu0
        %v5114 = vadd.f32 0.0, %v5113
        %v5115 = vpop.f32.mrf.mxu0
        %v5116 = vpop.f32.mrf.mxu0
        %v5117 = vadd.f32 0.0, %v5116
        %v5118 = vpop.f32.mrf.mxu0
        %5119 = vmatprep.mubr.bf16.mxu0 0
        %5120 = vmatmul.mubr.bf16.gmra.mxu0 %v5034
        %v5121 = vpop.f32.mrf.mxu0
        %v5122 = vadd.f32 0.0, %v5121
        %v5123 = vpop.f32.mrf.mxu0
        %v5124 = vpop.f32.mrf.mxu0
        %v5125 = vpop.f32.mrf.mxu0
        %5126 = vdwg.mxu0
        %v5127 = vadd.f32 %v4331, %v5074
        %v5128 = vadd.f32 %v4332, %v5077
        %v5129 = vadd.f32 %v4333, %v5082
        %v5130 = vadd.f32 %v4334, %v5085
        %v5131 = vadd.f32 %v4335, %v5090
        %v5132 = vadd.f32 %v4336, %v5093
        %v5133 = vadd.f32 %v4337, %v5098
        %v5134 = vadd.f32 %v4338, %v5101
        %v5135 = vadd.f32 %v4339, %v5106
        %v5136 = vadd.f32 %v4340, %v5109
        %v5137 = vadd.f32 %v4341, %v5114
        %v5138 = vadd.f32 %v4342, %v5117
        %v5139 = vadd.f32 %v4343, %v5122
        %v5140 = vcombine.high %v4421, %v4421
        %v5141 = vcombine.high %v4468, %v4468
        %v5142 = vcombine.high %v4515, %v4515
        %v5143 = vcombine.high %v4562, %v4562
        %v5144 = vcombine.high %v4609, %v4609
        %v5145 = vcombine.high %v4656, %v4656
        %v5146 = vcombine.high %v4703, %v4703
        %v5148 = vshrl.u32 %v4390, 16
        %v5150 = vrot.slane %v5148, 7
        %v5151 = vrot.slane %v5150, 1
        %v5153 = vshll.u32 %v4397, 16
        %v5155 = vsel %vm593, %v5151, %v5153
        %v5156 = vshrl.u32 %v4397, 16
        %v5158 = vrot.slane %v5156, 7
        %v5159 = vrot.slane %v5158, 1
        %v5161 = vshll.u32 %v4398, 16
        %v5163 = vsel %vm593, %v5159, %v5161
        %v5164 = vshrl.u32 %v4398, 16
        %v5166 = vrot.slane %v5164, 7
        %v5167 = vrot.slane %v5166, 1
        %v5169 = vshll.u32 %v4399, 16
        %v5171 = vsel %vm593, %v5167, %v5169
        %v5172 = vshrl.u32 %v4399, 16
        %v5174 = vrot.slane %v5172, 7
        %v5175 = vrot.slane %v5174, 1
        %v5177 = vshll.u32 %v4414, 16
        %v5179 = vsel %vm593, %v5175, %v5177
        %v5180 = vshrl.u32 %v4414, 16
        %v5182 = vrot.slane %v5180, 7
        %v5183 = vrot.slane %v5182, 1
        %v5185 = vshll.u32 %v4421, 16
        %v5187 = vsel %vm593, %v5183, %v5185
        %v5188 = vshrl.u32 %v4421, 16
        %v5190 = vrot.slane %v5188, 7
        %v5191 = vrot.slane %v5190, 1
        %v5193 = vshll.u32 %v4422, 16
        %v5195 = vsel %vm593, %v5191, %v5193
        %v5196 = vshrl.u32 %v4422, 16
        %v5198 = vrot.slane %v5196, 7
        %v5199 = vrot.slane %v5198, 1
        %v5201 = vshll.u32 %v5140, 16
        %v5203 = vsel %vm593, %v5199, %v5201
        %v5205 = vshrl.u32 %v4437, 16
        %v5207 = vrot.slane %v5205, 7
        %v5208 = vrot.slane %v5207, 1
        %v5210 = vshll.u32 %v4444, 16
        %v5212 = vsel %vm593, %v5208, %v5210
        %v5213 = vshrl.u32 %v4444, 16
        %v5215 = vrot.slane %v5213, 7
        %v5216 = vrot.slane %v5215, 1
        %v5218 = vshll.u32 %v4445, 16
        %v5220 = vsel %vm593, %v5216, %v5218
        %v5221 = vshrl.u32 %v4445, 16
        %v5223 = vrot.slane %v5221, 7
        %v5224 = vrot.slane %v5223, 1
        %v5226 = vshll.u32 %v4446, 16
        %v5228 = vsel %vm593, %v5224, %v5226
        %v5229 = vshrl.u32 %v4446, 16
        %v5231 = vrot.slane %v5229, 7
        %v5232 = vrot.slane %v5231, 1
        %v5234 = vshll.u32 %v4461, 16
        %v5236 = vsel %vm593, %v5232, %v5234
        %v5237 = vshrl.u32 %v4461, 16
        %v5239 = vrot.slane %v5237, 7
        %v5240 = vrot.slane %v5239, 1
        %v5242 = vshll.u32 %v4468, 16
        %v5244 = vsel %vm593, %v5240, %v5242
        %v5245 = vshrl.u32 %v4468, 16
        %v5247 = vrot.slane %v5245, 7
        %v5248 = vrot.slane %v5247, 1
        %v5250 = vshll.u32 %v4469, 16
        %v5252 = vsel %vm593, %v5248, %v5250
        %v5253 = vshrl.u32 %v4469, 16
        %v5255 = vrot.slane %v5253, 7
        %v5256 = vrot.slane %v5255, 1
        %v5258 = vshll.u32 %v5141, 16
        %v5260 = vsel %vm593, %v5256, %v5258
        %v5262 = vshrl.u32 %v4484, 16
        %v5264 = vrot.slane %v5262, 7
        %v5265 = vrot.slane %v5264, 1
        %v5267 = vshll.u32 %v4491, 16
        %v5269 = vsel %vm593, %v5265, %v5267
        %v5270 = vshrl.u32 %v4491, 16
        %v5272 = vrot.slane %v5270, 7
        %v5273 = vrot.slane %v5272, 1
        %v5275 = vshll.u32 %v4492, 16
        %v5277 = vsel %vm593, %v5273, %v5275
        %v5278 = vshrl.u32 %v4492, 16
        %v5280 = vrot.slane %v5278, 7
        %v5281 = vrot.slane %v5280, 1
        %v5283 = vshll.u32 %v4493, 16
        %v5285 = vsel %vm593, %v5281, %v5283
        %v5286 = vshrl.u32 %v4493, 16
        %v5288 = vrot.slane %v5286, 7
        %v5289 = vrot.slane %v5288, 1
        %v5291 = vshll.u32 %v4508, 16
        %v5293 = vsel %vm593, %v5289, %v5291
        %v5294 = vshrl.u32 %v4508, 16
        %v5296 = vrot.slane %v5294, 7
        %v5297 = vrot.slane %v5296, 1
        %v5299 = vshll.u32 %v4515, 16
        %v5301 = vsel %vm593, %v5297, %v5299
        %v5302 = vshrl.u32 %v4515, 16
        %v5304 = vrot.slane %v5302, 7
        %v5305 = vrot.slane %v5304, 1
        %v5307 = vshll.u32 %v4516, 16
        %v5309 = vsel %vm593, %v5305, %v5307
        %v5310 = vshrl.u32 %v4516, 16
        %v5312 = vrot.slane %v5310, 7
        %v5313 = vrot.slane %v5312, 1
        %v5315 = vshll.u32 %v5142, 16
        %v5317 = vsel %vm593, %v5313, %v5315
        %v5319 = vshrl.u32 %v4531, 16
        %v5321 = vrot.slane %v5319, 7
        %v5322 = vrot.slane %v5321, 1
        %v5324 = vshll.u32 %v4538, 16
        %v5326 = vsel %vm593, %v5322, %v5324
        %v5327 = vshrl.u32 %v4538, 16
        %v5329 = vrot.slane %v5327, 7
        %v5330 = vrot.slane %v5329, 1
        %v5332 = vshll.u32 %v4539, 16
        %v5334 = vsel %vm593, %v5330, %v5332
        %v5335 = vshrl.u32 %v4539, 16
        %v5337 = vrot.slane %v5335, 7
        %v5338 = vrot.slane %v5337, 1
        %v5340 = vshll.u32 %v4540, 16
        %v5342 = vsel %vm593, %v5338, %v5340
        %v5343 = vshrl.u32 %v4540, 16
        %v5345 = vrot.slane %v5343, 7
        %v5346 = vrot.slane %v5345, 1
        %v5348 = vshll.u32 %v4555, 16
        %v5350 = vsel %vm593, %v5346, %v5348
        %v5351 = vshrl.u32 %v4555, 16
        %v5353 = vrot.slane %v5351, 7
        %v5354 = vrot.slane %v5353, 1
        %v5356 = vshll.u32 %v4562, 16
        %v5358 = vsel %vm593, %v5354, %v5356
        %v5359 = vshrl.u32 %v4562, 16
        %v5361 = vrot.slane %v5359, 7
        %v5362 = vrot.slane %v5361, 1
        %v5364 = vshll.u32 %v4563, 16
        %v5366 = vsel %vm593, %v5362, %v5364
        %v5367 = vshrl.u32 %v4563, 16
        %v5369 = vrot.slane %v5367, 7
        %v5370 = vrot.slane %v5369, 1
        %v5372 = vshll.u32 %v5143, 16
        %v5374 = vsel %vm593, %v5370, %v5372
        %v5376 = vshrl.u32 %v4578, 16
        %v5378 = vrot.slane %v5376, 7
        %v5379 = vrot.slane %v5378, 1
        %v5381 = vshll.u32 %v4585, 16
        %v5383 = vsel %vm593, %v5379, %v5381
        %v5384 = vshrl.u32 %v4585, 16
        %v5386 = vrot.slane %v5384, 7
        %v5387 = vrot.slane %v5386, 1
        %v5389 = vshll.u32 %v4586, 16
        %v5391 = vsel %vm593, %v5387, %v5389
        %v5392 = vshrl.u32 %v4586, 16
        %v5394 = vrot.slane %v5392, 7
        %v5395 = vrot.slane %v5394, 1
        %v5397 = vshll.u32 %v4587, 16
        %v5399 = vsel %vm593, %v5395, %v5397
        %v5400 = vshrl.u32 %v4587, 16
        %v5402 = vrot.slane %v5400, 7
        %v5403 = vrot.slane %v5402, 1
        %v5405 = vshll.u32 %v4602, 16
        %v5407 = vsel %vm593, %v5403, %v5405
        %v5408 = vshrl.u32 %v4602, 16
        %v5410 = vrot.slane %v5408, 7
        %v5411 = vrot.slane %v5410, 1
        %v5413 = vshll.u32 %v4609, 16
        %v5415 = vsel %vm593, %v5411, %v5413
        %v5416 = vshrl.u32 %v4609, 16
        %v5418 = vrot.slane %v5416, 7
        %v5419 = vrot.slane %v5418, 1
        %v5421 = vshll.u32 %v4610, 16
        %v5423 = vsel %vm593, %v5419, %v5421
        %v5424 = vshrl.u32 %v4610, 16
        %v5426 = vrot.slane %v5424, 7
        %v5427 = vrot.slane %v5426, 1
        %v5429 = vshll.u32 %v5144, 16
        %v5431 = vsel %vm593, %v5427, %v5429
        %v5433 = vshrl.u32 %v4625, 16
        %v5435 = vrot.slane %v5433, 7
        %v5436 = vrot.slane %v5435, 1
        %v5438 = vshll.u32 %v4632, 16
        %v5440 = vsel %vm593, %v5436, %v5438
        %v5441 = vshrl.u32 %v4632, 16
        %v5443 = vrot.slane %v5441, 7
        %v5444 = vrot.slane %v5443, 1
        %v5446 = vshll.u32 %v4633, 16
        %v5448 = vsel %vm593, %v5444, %v5446
        %v5449 = vshrl.u32 %v4633, 16
        %v5451 = vrot.slane %v5449, 7
        %v5452 = vrot.slane %v5451, 1
        %v5454 = vshll.u32 %v4634, 16
        %v5456 = vsel %vm593, %v5452, %v5454
        %v5457 = vshrl.u32 %v4634, 16
        %v5459 = vrot.slane %v5457, 7
        %v5460 = vrot.slane %v5459, 1
        %v5462 = vshll.u32 %v4649, 16
        %v5464 = vsel %vm593, %v5460, %v5462
        %v5465 = vshrl.u32 %v4649, 16
        %v5467 = vrot.slane %v5465, 7
        %v5468 = vrot.slane %v5467, 1
        %v5470 = vshll.u32 %v4656, 16
        %v5472 = vsel %vm593, %v5468, %v5470
        %v5473 = vshrl.u32 %v4656, 16
        %v5475 = vrot.slane %v5473, 7
        %v5476 = vrot.slane %v5475, 1
        %v5478 = vshll.u32 %v4657, 16
        %v5480 = vsel %vm593, %v5476, %v5478
        %v5481 = vshrl.u32 %v4657, 16
        %v5483 = vrot.slane %v5481, 7
        %v5484 = vrot.slane %v5483, 1
        %v5486 = vshll.u32 %v5145, 16
        %v5488 = vsel %vm593, %v5484, %v5486
        %v5490 = vshrl.u32 %v4672, 16
        %v5492 = vrot.slane %v5490, 7
        %v5493 = vrot.slane %v5492, 1
        %v5495 = vshll.u32 %v4679, 16
        %v5497 = vsel %vm593, %v5493, %v5495
        %v5498 = vshrl.u32 %v4679, 16
        %v5500 = vrot.slane %v5498, 7
        %v5501 = vrot.slane %v5500, 1
        %v5503 = vshll.u32 %v4680, 16
        %v5505 = vsel %vm593, %v5501, %v5503
        %v5506 = vshrl.u32 %v4680, 16
        %v5508 = vrot.slane %v5506, 7
        %v5509 = vrot.slane %v5508, 1
        %v5511 = vshll.u32 %v4681, 16
        %v5513 = vsel %vm593, %v5509, %v5511
        %v5514 = vshrl.u32 %v4681, 16
        %v5516 = vrot.slane %v5514, 7
        %v5517 = vrot.slane %v5516, 1
        %v5519 = vshll.u32 %v4696, 16
        %v5521 = vsel %vm593, %v5517, %v5519
        %v5522 = vshrl.u32 %v4696, 16
        %v5524 = vrot.slane %v5522, 7
        %v5525 = vrot.slane %v5524, 1
        %v5527 = vshll.u32 %v4703, 16
        %v5529 = vsel %vm593, %v5525, %v5527
        %v5530 = vshrl.u32 %v4703, 16
        %v5532 = vrot.slane %v5530, 7
        %v5533 = vrot.slane %v5532, 1
        %v5535 = vshll.u32 %v4704, 16
        %v5537 = vsel %vm593, %v5533, %v5535
        %v5538 = vshrl.u32 %v4704, 16
        %v5540 = vrot.slane %v5538, 7
        %v5541 = vrot.slane %v5540, 1
        %v5543 = vshll.u32 %v5146, 16
        %v5545 = vsel %vm593, %v5541, %v5543
        %s5546 = scalar_lea.vmem %s1, 14
        %v5547 = vld [vmem:[%s5546] sm:$0x3]
        %v5548 = vcombine.low %v5155, %v5163
        %v5549 = vcombine.low %v5171, %v5179
        %v5550 = vcombine.low %v5187, %v5195
        %v5551 = vcombine.low %v5203, %v5212
        %v5553 = vunpack.c.l.s4 1966171168
        %v5554 = vunpack.c.0.s8 %v5553
        %v5555 = vlaneseq
        %v5556 = vshrl.u32 %v5555, 7
        %v5557 = vsub.s32 %v5554, %v5556
        %v5558 = vrot.slane %v5548, %v5557
        %v5560 = vunpack.c.l.s4 1966171168
        %v5561 = vunpack.c.0.s8 %v5560
        %v5562 = vlaneseq
        %v5563 = vshrl.u32 %v5562, 7
        %v5564 = vsub.s32 %v5561, %v5563
        %v5565 = vrot.slane %v5549, %v5564
        %v5567 = vunpack.c.l.s4 1966171168
        %v5568 = vunpack.c.0.s8 %v5567
        %v5569 = vlaneseq
        %v5570 = vshrl.u32 %v5569, 7
        %v5571 = vsub.s32 %v5568, %v5570
        %v5572 = vrot.slane %v5550, %v5571
        %v5574 = vunpack.c.l.s4 1966171168
        %v5575 = vunpack.c.0.s8 %v5574
        %v5576 = vlaneseq
        %v5577 = vshrl.u32 %v5576, 7
        %v5578 = vsub.s32 %v5575, %v5577
        %v5579 = vrot.slane %v5551, %v5578
        %v5580 = vcombine.low %v5558, %v5565
        %v5581 = vcombine.low %v5572, %v5579
        %v5583 = vunpack.c.l.s4 1966171168
        %v5584 = vunpack.c.0.s8 %v5583
        %v5585 = vlaneseq
        %v5586 = vshrl.u32 %v5585, 7
        %v5587 = vsub.s32 %v5584, %v5586
        %v5588 = vrot.slane %v5580, %v5587
        %v5590 = vunpack.c.l.s4 1966171168
        %v5591 = vunpack.c.0.s8 %v5590
        %v5592 = vlaneseq
        %v5593 = vshrl.u32 %v5592, 7
        %v5594 = vsub.s32 %v5591, %v5593
        %v5595 = vrot.slane %v5581, %v5594
        %v5596 = vcombine.low %v5588, %v5595
        %v5597 = vcombine.low %v5220, %v5228
        %v5598 = vcombine.low %v5236, %v5244
        %v5599 = vcombine.low %v5252, %v5260
        %v5600 = vcombine.low %v5269, %v5277
        %v5602 = vunpack.c.l.s4 1966171168
        %v5603 = vunpack.c.0.s8 %v5602
        %v5604 = vlaneseq
        %v5605 = vshrl.u32 %v5604, 7
        %v5606 = vsub.s32 %v5603, %v5605
        %v5607 = vrot.slane %v5597, %v5606
        %v5609 = vunpack.c.l.s4 1966171168
        %v5610 = vunpack.c.0.s8 %v5609
        %v5611 = vlaneseq
        %v5612 = vshrl.u32 %v5611, 7
        %v5613 = vsub.s32 %v5610, %v5612
        %v5614 = vrot.slane %v5598, %v5613
        %v5616 = vunpack.c.l.s4 1966171168
        %v5617 = vunpack.c.0.s8 %v5616
        %v5618 = vlaneseq
        %v5619 = vshrl.u32 %v5618, 7
        %v5620 = vsub.s32 %v5617, %v5619
        %v5621 = vrot.slane %v5599, %v5620
        %v5623 = vunpack.c.l.s4 1966171168
        %v5624 = vunpack.c.0.s8 %v5623
        %v5625 = vlaneseq
        %v5626 = vshrl.u32 %v5625, 7
        %v5627 = vsub.s32 %v5624, %v5626
        %v5628 = vrot.slane %v5600, %v5627
        %v5629 = vcombine.low %v5607, %v5614
        %v5630 = vcombine.low %v5621, %v5628
        %v5632 = vunpack.c.l.s4 1966171168
        %v5633 = vunpack.c.0.s8 %v5632
        %v5634 = vlaneseq
        %v5635 = vshrl.u32 %v5634, 7
        %v5636 = vsub.s32 %v5633, %v5635
        %v5637 = vrot.slane %v5629, %v5636
        %v5639 = vunpack.c.l.s4 1966171168
        %v5640 = vunpack.c.0.s8 %v5639
        %v5641 = vlaneseq
        %v5642 = vshrl.u32 %v5641, 7
        %v5643 = vsub.s32 %v5640, %v5642
        %v5644 = vrot.slane %v5630, %v5643
        %v5645 = vcombine.low %v5637, %v5644
        %v5646 = vcombine.low %v5285, %v5293
        %v5647 = vcombine.low %v5301, %v5309
        %v5648 = vcombine.low %v5317, %v5326
        %v5649 = vcombine.low %v5334, %v5342
        %v5651 = vunpack.c.l.s4 1966171168
        %v5652 = vunpack.c.0.s8 %v5651
        %v5653 = vlaneseq
        %v5654 = vshrl.u32 %v5653, 7
        %v5655 = vsub.s32 %v5652, %v5654
        %v5656 = vrot.slane %v5646, %v5655
        %v5658 = vunpack.c.l.s4 1966171168
        %v5659 = vunpack.c.0.s8 %v5658
        %v5660 = vlaneseq
        %v5661 = vshrl.u32 %v5660, 7
        %v5662 = vsub.s32 %v5659, %v5661
        %v5663 = vrot.slane %v5647, %v5662
        %v5665 = vunpack.c.l.s4 1966171168
        %v5666 = vunpack.c.0.s8 %v5665
        %v5667 = vlaneseq
        %v5668 = vshrl.u32 %v5667, 7
        %v5669 = vsub.s32 %v5666, %v5668
        %v5670 = vrot.slane %v5648, %v5669
        %v5672 = vunpack.c.l.s4 1966171168
        %v5673 = vunpack.c.0.s8 %v5672
        %v5674 = vlaneseq
        %v5675 = vshrl.u32 %v5674, 7
        %v5676 = vsub.s32 %v5673, %v5675
        %v5677 = vrot.slane %v5649, %v5676
        %v5678 = vcombine.low %v5656, %v5663
        %v5679 = vcombine.low %v5670, %v5677
        %v5681 = vunpack.c.l.s4 1966171168
        %v5682 = vunpack.c.0.s8 %v5681
        %v5683 = vlaneseq
        %v5684 = vshrl.u32 %v5683, 7
        %v5685 = vsub.s32 %v5682, %v5684
        %v5686 = vrot.slane %v5678, %v5685
        %v5688 = vunpack.c.l.s4 1966171168
        %v5689 = vunpack.c.0.s8 %v5688
        %v5690 = vlaneseq
        %v5691 = vshrl.u32 %v5690, 7
        %v5692 = vsub.s32 %v5689, %v5691
        %v5693 = vrot.slane %v5679, %v5692
        %v5694 = vcombine.low %v5686, %v5693
        %v5695 = vcombine.low %v5350, %v5358
        %v5696 = vcombine.low %v5366, %v5374
        %v5697 = vcombine.low %v5383, %v5391
        %v5698 = vcombine.low %v5399, %v5407
        %v5700 = vunpack.c.l.s4 1966171168
        %v5701 = vunpack.c.0.s8 %v5700
        %v5702 = vlaneseq
        %v5703 = vshrl.u32 %v5702, 7
        %v5704 = vsub.s32 %v5701, %v5703
        %v5705 = vrot.slane %v5695, %v5704
        %v5707 = vunpack.c.l.s4 1966171168
        %v5708 = vunpack.c.0.s8 %v5707
        %v5709 = vlaneseq
        %v5710 = vshrl.u32 %v5709, 7
        %v5711 = vsub.s32 %v5708, %v5710
        %v5712 = vrot.slane %v5696, %v5711
        %v5714 = vunpack.c.l.s4 1966171168
        %v5715 = vunpack.c.0.s8 %v5714
        %v5716 = vlaneseq
        %v5717 = vshrl.u32 %v5716, 7
        %v5718 = vsub.s32 %v5715, %v5717
        %v5719 = vrot.slane %v5697, %v5718
        %v5721 = vunpack.c.l.s4 1966171168
        %v5722 = vunpack.c.0.s8 %v5721
        %v5723 = vlaneseq
        %v5724 = vshrl.u32 %v5723, 7
        %v5725 = vsub.s32 %v5722, %v5724
        %v5726 = vrot.slane %v5698, %v5725
        %v5727 = vcombine.low %v5705, %v5712
        %v5728 = vcombine.low %v5719, %v5726
        %v5730 = vunpack.c.l.s4 1966171168
        %v5731 = vunpack.c.0.s8 %v5730
        %v5732 = vlaneseq
        %v5733 = vshrl.u32 %v5732, 7
        %v5734 = vsub.s32 %v5731, %v5733
        %v5735 = vrot.slane %v5727, %v5734
        %v5737 = vunpack.c.l.s4 1966171168
        %v5738 = vunpack.c.0.s8 %v5737
        %v5739 = vlaneseq
        %v5740 = vshrl.u32 %v5739, 7
        %v5741 = vsub.s32 %v5738, %v5740
        %v5742 = vrot.slane %v5728, %v5741
        %v5743 = vcombine.low %v5735, %v5742
        %v5744 = vcombine.low %v5415, %v5423
        %v5745 = vcombine.low %v5431, %v5440
        %v5746 = vcombine.low %v5448, %v5456
        %v5747 = vcombine.low %v5464, %v5472
        %v5749 = vunpack.c.l.s4 1966171168
        %v5750 = vunpack.c.0.s8 %v5749
        %v5751 = vlaneseq
        %v5752 = vshrl.u32 %v5751, 7
        %v5753 = vsub.s32 %v5750, %v5752
        %v5754 = vrot.slane %v5744, %v5753
        %v5756 = vunpack.c.l.s4 1966171168
        %v5757 = vunpack.c.0.s8 %v5756
        %v5758 = vlaneseq
        %v5759 = vshrl.u32 %v5758, 7
        %v5760 = vsub.s32 %v5757, %v5759
        %v5761 = vrot.slane %v5745, %v5760
        %v5763 = vunpack.c.l.s4 1966171168
        %v5764 = vunpack.c.0.s8 %v5763
        %v5765 = vlaneseq
        %v5766 = vshrl.u32 %v5765, 7
        %v5767 = vsub.s32 %v5764, %v5766
        %v5768 = vrot.slane %v5746, %v5767
        %v5770 = vunpack.c.l.s4 1966171168
        %v5771 = vunpack.c.0.s8 %v5770
        %v5772 = vlaneseq
        %v5773 = vshrl.u32 %v5772, 7
        %v5774 = vsub.s32 %v5771, %v5773
        %v5775 = vrot.slane %v5747, %v5774
        %v5776 = vcombine.low %v5754, %v5761
        %v5777 = vcombine.low %v5768, %v5775
        %v5779 = vunpack.c.l.s4 1966171168
        %v5780 = vunpack.c.0.s8 %v5779
        %v5781 = vlaneseq
        %v5782 = vshrl.u32 %v5781, 7
        %v5783 = vsub.s32 %v5780, %v5782
        %v5784 = vrot.slane %v5776, %v5783
        %v5786 = vunpack.c.l.s4 1966171168
        %v5787 = vunpack.c.0.s8 %v5786
        %v5788 = vlaneseq
        %v5789 = vshrl.u32 %v5788, 7
        %v5790 = vsub.s32 %v5787, %v5789
        %v5791 = vrot.slane %v5777, %v5790
        %v5792 = vcombine.low %v5784, %v5791
        %v5793 = vcombine.low %v5480, %v5488
        %v5794 = vcombine.low %v5497, %v5505
        %v5795 = vcombine.low %v5513, %v5521
        %v5796 = vcombine.low %v5529, %v5537
        %v5798 = vunpack.c.l.s4 1966171168
        %v5799 = vunpack.c.0.s8 %v5798
        %v5800 = vlaneseq
        %v5801 = vshrl.u32 %v5800, 7
        %v5802 = vsub.s32 %v5799, %v5801
        %v5803 = vrot.slane %v5793, %v5802
        %v5805 = vunpack.c.l.s4 1966171168
        %v5806 = vunpack.c.0.s8 %v5805
        %v5807 = vlaneseq
        %v5808 = vshrl.u32 %v5807, 7
        %v5809 = vsub.s32 %v5806, %v5808
        %v5810 = vrot.slane %v5794, %v5809
        %v5812 = vunpack.c.l.s4 1966171168
        %v5813 = vunpack.c.0.s8 %v5812
        %v5814 = vlaneseq
        %v5815 = vshrl.u32 %v5814, 7
        %v5816 = vsub.s32 %v5813, %v5815
        %v5817 = vrot.slane %v5795, %v5816
        %v5819 = vunpack.c.l.s4 1966171168
        %v5820 = vunpack.c.0.s8 %v5819
        %v5821 = vlaneseq
        %v5822 = vshrl.u32 %v5821, 7
        %v5823 = vsub.s32 %v5820, %v5822
        %v5824 = vrot.slane %v5796, %v5823
        %v5825 = vcombine.low %v5803, %v5810
        %v5826 = vcombine.low %v5817, %v5824
        %v5828 = vunpack.c.l.s4 1966171168
        %v5829 = vunpack.c.0.s8 %v5828
        %v5830 = vlaneseq
        %v5831 = vshrl.u32 %v5830, 7
        %v5832 = vsub.s32 %v5829, %v5831
        %v5833 = vrot.slane %v5825, %v5832
        %v5835 = vunpack.c.l.s4 1966171168
        %v5836 = vunpack.c.0.s8 %v5835
        %v5837 = vlaneseq
        %v5838 = vshrl.u32 %v5837, 7
        %v5839 = vsub.s32 %v5836, %v5838
        %v5840 = vrot.slane %v5826, %v5839
        %v5841 = vcombine.low %v5833, %v5840
        %v5843 = vunpack.c.l.s4 1966171168
        %v5844 = vunpack.c.0.s8 %v5843
        %v5845 = vlaneseq
        %v5846 = vshrl.u32 %v5845, 7
        %v5847 = vsub.s32 %v5844, %v5846
        %v5848 = vrot.slane %v5545, %v5847
        %v5850 = vunpack.c.l.s4 1966171168
        %v5851 = vunpack.c.0.s8 %v5850
        %v5852 = vlaneseq
        %v5853 = vshrl.u32 %v5852, 7
        %v5854 = vsub.s32 %v5851, %v5853
        %v5855 = vrot.slane %v5848, %v5854
        %v5857 = vsel %vm1303, %v5596, 0
        %v5860 = vsel %vm1303, %v5645, 0
        %v5863 = vsel %vm1303, %v5694, 0
        %v5866 = vsel %vm1303, %v5743, 0
        %v5869 = vsel %vm1303, %v5792, 0
        %v5872 = vsel %vm1303, %v5841, 0
        %v5875 = vsel %vm1303, %v5855, 0
        %v5878 = vsel %vm1325, %v5547, 0
        %5880 = vmatprep.subr.bf16.mxu0 0
        %5881 = vmatpush1.bf16.msra.mxu0 0
        %5882 = vmatprep.subr.bf16.mxu0 0
        %5883 = vmatpush1.bf16.msra.mxu0 0
        %5884 = vmatprep.subr.bf16.mxu0 0
        %5885 = vmatpush1.bf16.msra.mxu0 0
        %5886 = vmatprep.subr.bf16.mxu0 0
        %5887 = vmatpush1.bf16.msra.mxu0 0
        %5888 = vmatprep.subr.bf16.mxu0 0
        %5889 = vmatpush1.bf16.msra.mxu0 0
        %5890 = vmatprep.subr.bf16.mxu0 0
        %5891 = vmatpush1.bf16.msra.mxu0 0
        %5892 = vmatprep.subr.bf16.mxu0 0
        %5893 = vmatpush1.bf16.msra.mxu0 0
        %5894 = vmatprep.subr.bf16.mxu0 0
        %5895 = vmatpush1.bf16.msra.mxu0 %v5878
        %5896 = vmatprep.subr.bf16.mxu0 0
        %5897 = vmatpush2.bf16.msra.mxu0 0
        %5898 = vmatprep.subr.bf16.mxu0 0
        %5899 = vmatpush2.bf16.msra.mxu0 0
        %5900 = vmatprep.subr.bf16.mxu0 0
        %5901 = vmatpush2.bf16.msra.mxu0 0
        %5902 = vmatprep.subr.bf16.mxu0 0
        %5903 = vmatpush2.bf16.msra.mxu0 0
        %5904 = vmatprep.subr.bf16.mxu0 0
        %5905 = vmatpush2.bf16.msra.mxu0 0
        %5906 = vmatprep.subr.bf16.mxu0 0
        %5907 = vmatpush2.bf16.msra.mxu0 0
        %5908 = vmatprep.subr.bf16.mxu0 0
        %5909 = vmatpush2.bf16.msra.mxu0 0
        %5910 = vmatprep.subr.bf16.mxu0 0
        %5911 = vmatpush2.bf16.msra.mxu0 0
        %5912 = vmatprep.mubr.bf16.mxu0 0
        %5913 = vmatmul.mubr.bf16.gmra.mxu0 %v5857
        %v5914 = vpop.f32.mrf.mxu0
        %v5915 = vadd.f32 0.0, %v5914
        %v5916 = vpop.f32.mrf.mxu0
        %v5917 = vpop.f32.mrf.mxu0
        %v5918 = vadd.f32 0.0, %v5917
        %v5919 = vpop.f32.mrf.mxu0
        %5920 = vmatprep.mubr.bf16.mxu0 0
        %5921 = vmatmul.mubr.bf16.gmra.mxu0 %v5860
        %v5922 = vpop.f32.mrf.mxu0
        %v5923 = vadd.f32 0.0, %v5922
        %v5924 = vpop.f32.mrf.mxu0
        %v5925 = vpop.f32.mrf.mxu0
        %v5926 = vadd.f32 0.0, %v5925
        %v5927 = vpop.f32.mrf.mxu0
        %5928 = vmatprep.mubr.bf16.mxu0 0
        %5929 = vmatmul.mubr.bf16.gmra.mxu0 %v5863
        %v5930 = vpop.f32.mrf.mxu0
        %v5931 = vadd.f32 0.0, %v5930
        %v5932 = vpop.f32.mrf.mxu0
        %v5933 = vpop.f32.mrf.mxu0
        %v5934 = vadd.f32 0.0, %v5933
        %v5935 = vpop.f32.mrf.mxu0
        %5936 = vmatprep.mubr.bf16.mxu0 0
        %5937 = vmatmul.mubr.bf16.gmra.mxu0 %v5866
        %v5938 = vpop.f32.mrf.mxu0
        %v5939 = vadd.f32 0.0, %v5938
        %v5940 = vpop.f32.mrf.mxu0
        %v5941 = vpop.f32.mrf.mxu0
        %v5942 = vadd.f32 0.0, %v5941
        %v5943 = vpop.f32.mrf.mxu0
        %5944 = vmatprep.mubr.bf16.mxu0 0
        %5945 = vmatmul.mubr.bf16.gmra.mxu0 %v5869
        %v5946 = vpop.f32.mrf.mxu0
        %v5947 = vadd.f32 0.0, %v5946
        %v5948 = vpop.f32.mrf.mxu0
        %v5949 = vpop.f32.mrf.mxu0
        %v5950 = vadd.f32 0.0, %v5949
        %v5951 = vpop.f32.mrf.mxu0
        %5952 = vmatprep.mubr.bf16.mxu0 0
        %5953 = vmatmul.mubr.bf16.gmra.mxu0 %v5872
        %v5954 = vpop.f32.mrf.mxu0
        %v5955 = vadd.f32 0.0, %v5954
        %v5956 = vpop.f32.mrf.mxu0
        %v5957 = vpop.f32.mrf.mxu0
        %v5958 = vadd.f32 0.0, %v5957
        %v5959 = vpop.f32.mrf.mxu0
        %5960 = vmatprep.mubr.bf16.mxu0 0
        %5961 = vmatmul.mubr.bf16.gmra.mxu0 %v5875
        %v5962 = vpop.f32.mrf.mxu0
        %v5963 = vadd.f32 0.0, %v5962
        %v5964 = vpop.f32.mrf.mxu0
        %v5965 = vpop.f32.mrf.mxu0
        %v5966 = vpop.f32.mrf.mxu0
        %5967 = vdwg.mxu0
        %v5968 = vadd.f32 %v5127, %v5915
        %v5969 = vadd.f32 %v5128, %v5918
        %v5970 = vadd.f32 %v5129, %v5923
        %v5971 = vadd.f32 %v5130, %v5926
        %v5972 = vadd.f32 %v5131, %v5931
        %v5973 = vadd.f32 %v5132, %v5934
        %v5974 = vadd.f32 %v5133, %v5939
        %v5975 = vadd.f32 %v5134, %v5942
        %v5976 = vadd.f32 %v5135, %v5947
        %v5977 = vadd.f32 %v5136, %v5950
        %v5978 = vadd.f32 %v5137, %v5955
        %v5979 = vadd.f32 %v5138, %v5958
        %v5980 = vadd.f32 %v5139, %v5963
        %s5981 = scalar_lea.vmem %s1, 16
        %v5982 = vld [vmem:[%s5981] sm:$0x3]
        %v5983 = vcombine.low %v4397, %v4398
        %v5984 = vcombine.low %v4399, %v4414
        %v5985 = vcombine.low %v4421, %v4422
        %v5986 = vcombine.low %v5140, %v4444
        %v5988 = vunpack.c.l.s4 1966171168
        %v5989 = vunpack.c.0.s8 %v5988
        %v5990 = vlaneseq
        %v5991 = vshrl.u32 %v5990, 7
        %v5992 = vsub.s32 %v5989, %v5991
        %v5993 = vrot.slane %v5983, %v5992
        %v5995 = vunpack.c.l.s4 1966171168
        %v5996 = vunpack.c.0.s8 %v5995
        %v5997 = vlaneseq
        %v5998 = vshrl.u32 %v5997, 7
        %v5999 = vsub.s32 %v5996, %v5998
        %v6000 = vrot.slane %v5984, %v5999
        %v6002 = vunpack.c.l.s4 1966171168
        %v6003 = vunpack.c.0.s8 %v6002
        %v6004 = vlaneseq
        %v6005 = vshrl.u32 %v6004, 7
        %v6006 = vsub.s32 %v6003, %v6005
        %v6007 = vrot.slane %v5985, %v6006
        %v6009 = vunpack.c.l.s4 1966171168
        %v6010 = vunpack.c.0.s8 %v6009
        %v6011 = vlaneseq
        %v6012 = vshrl.u32 %v6011, 7
        %v6013 = vsub.s32 %v6010, %v6012
        %v6014 = vrot.slane %v5986, %v6013
        %v6015 = vcombine.low %v5993, %v6000
        %v6016 = vcombine.low %v6007, %v6014
        %v6018 = vunpack.c.l.s4 1966171168
        %v6019 = vunpack.c.0.s8 %v6018
        %v6020 = vlaneseq
        %v6021 = vshrl.u32 %v6020, 7
        %v6022 = vsub.s32 %v6019, %v6021
        %v6023 = vrot.slane %v6015, %v6022
        %v6025 = vunpack.c.l.s4 1966171168
        %v6026 = vunpack.c.0.s8 %v6025
        %v6027 = vlaneseq
        %v6028 = vshrl.u32 %v6027, 7
        %v6029 = vsub.s32 %v6026, %v6028
        %v6030 = vrot.slane %v6016, %v6029
        %v6031 = vcombine.low %v6023, %v6030
        %v6032 = vcombine.low %v4445, %v4446
        %v6033 = vcombine.low %v4461, %v4468
        %v6034 = vcombine.low %v4469, %v5141
        %v6035 = vcombine.low %v4491, %v4492
        %v6037 = vunpack.c.l.s4 1966171168
        %v6038 = vunpack.c.0.s8 %v6037
        %v6039 = vlaneseq
        %v6040 = vshrl.u32 %v6039, 7
        %v6041 = vsub.s32 %v6038, %v6040
        %v6042 = vrot.slane %v6032, %v6041
        %v6044 = vunpack.c.l.s4 1966171168
        %v6045 = vunpack.c.0.s8 %v6044
        %v6046 = vlaneseq
        %v6047 = vshrl.u32 %v6046, 7
        %v6048 = vsub.s32 %v6045, %v6047
        %v6049 = vrot.slane %v6033, %v6048
        %v6051 = vunpack.c.l.s4 1966171168
        %v6052 = vunpack.c.0.s8 %v6051
        %v6053 = vlaneseq
        %v6054 = vshrl.u32 %v6053, 7
        %v6055 = vsub.s32 %v6052, %v6054
        %v6056 = vrot.slane %v6034, %v6055
        %v6058 = vunpack.c.l.s4 1966171168
        %v6059 = vunpack.c.0.s8 %v6058
        %v6060 = vlaneseq
        %v6061 = vshrl.u32 %v6060, 7
        %v6062 = vsub.s32 %v6059, %v6061
        %v6063 = vrot.slane %v6035, %v6062
        %v6064 = vcombine.low %v6042, %v6049
        %v6065 = vcombine.low %v6056, %v6063
        %v6067 = vunpack.c.l.s4 1966171168
        %v6068 = vunpack.c.0.s8 %v6067
        %v6069 = vlaneseq
        %v6070 = vshrl.u32 %v6069, 7
        %v6071 = vsub.s32 %v6068, %v6070
        %v6072 = vrot.slane %v6064, %v6071
        %v6074 = vunpack.c.l.s4 1966171168
        %v6075 = vunpack.c.0.s8 %v6074
        %v6076 = vlaneseq
        %v6077 = vshrl.u32 %v6076, 7
        %v6078 = vsub.s32 %v6075, %v6077
        %v6079 = vrot.slane %v6065, %v6078
        %v6080 = vcombine.low %v6072, %v6079
        %v6081 = vcombine.low %v4493, %v4508
        %v6082 = vcombine.low %v4515, %v4516
        %v6083 = vcombine.low %v5142, %v4538
        %v6084 = vcombine.low %v4539, %v4540
        %v6086 = vunpack.c.l.s4 1966171168
        %v6087 = vunpack.c.0.s8 %v6086
        %v6088 = vlaneseq
        %v6089 = vshrl.u32 %v6088, 7
        %v6090 = vsub.s32 %v6087, %v6089
        %v6091 = vrot.slane %v6081, %v6090
        %v6093 = vunpack.c.l.s4 1966171168
        %v6094 = vunpack.c.0.s8 %v6093
        %v6095 = vlaneseq
        %v6096 = vshrl.u32 %v6095, 7
        %v6097 = vsub.s32 %v6094, %v6096
        %v6098 = vrot.slane %v6082, %v6097
        %v6100 = vunpack.c.l.s4 1966171168
        %v6101 = vunpack.c.0.s8 %v6100
        %v6102 = vlaneseq
        %v6103 = vshrl.u32 %v6102, 7
        %v6104 = vsub.s32 %v6101, %v6103
        %v6105 = vrot.slane %v6083, %v6104
        %v6107 = vunpack.c.l.s4 1966171168
        %v6108 = vunpack.c.0.s8 %v6107
        %v6109 = vlaneseq
        %v6110 = vshrl.u32 %v6109, 7
        %v6111 = vsub.s32 %v6108, %v6110
        %v6112 = vrot.slane %v6084, %v6111
        %v6113 = vcombine.low %v6091, %v6098
        %v6114 = vcombine.low %v6105, %v6112
        %v6116 = vunpack.c.l.s4 1966171168
        %v6117 = vunpack.c.0.s8 %v6116
        %v6118 = vlaneseq
        %v6119 = vshrl.u32 %v6118, 7
        %v6120 = vsub.s32 %v6117, %v6119
        %v6121 = vrot.slane %v6113, %v6120
        %v6123 = vunpack.c.l.s4 1966171168
        %v6124 = vunpack.c.0.s8 %v6123
        %v6125 = vlaneseq
        %v6126 = vshrl.u32 %v6125, 7
        %v6127 = vsub.s32 %v6124, %v6126
        %v6128 = vrot.slane %v6114, %v6127
        %v6129 = vcombine.low %v6121, %v6128
        %v6130 = vcombine.low %v4555, %v4562
        %v6131 = vcombine.low %v4563, %v5143
        %v6132 = vcombine.low %v4585, %v4586
        %v6133 = vcombine.low %v4587, %v4602
        %v6135 = vunpack.c.l.s4 1966171168
        %v6136 = vunpack.c.0.s8 %v6135
        %v6137 = vlaneseq
        %v6138 = vshrl.u32 %v6137, 7
        %v6139 = vsub.s32 %v6136, %v6138
        %v6140 = vrot.slane %v6130, %v6139
        %v6142 = vunpack.c.l.s4 1966171168
        %v6143 = vunpack.c.0.s8 %v6142
        %v6144 = vlaneseq
        %v6145 = vshrl.u32 %v6144, 7
        %v6146 = vsub.s32 %v6143, %v6145
        %v6147 = vrot.slane %v6131, %v6146
        %v6149 = vunpack.c.l.s4 1966171168
        %v6150 = vunpack.c.0.s8 %v6149
        %v6151 = vlaneseq
        %v6152 = vshrl.u32 %v6151, 7
        %v6153 = vsub.s32 %v6150, %v6152
        %v6154 = vrot.slane %v6132, %v6153
        %v6156 = vunpack.c.l.s4 1966171168
        %v6157 = vunpack.c.0.s8 %v6156
        %v6158 = vlaneseq
        %v6159 = vshrl.u32 %v6158, 7
        %v6160 = vsub.s32 %v6157, %v6159
        %v6161 = vrot.slane %v6133, %v6160
        %v6162 = vcombine.low %v6140, %v6147
        %v6163 = vcombine.low %v6154, %v6161
        %v6165 = vunpack.c.l.s4 1966171168
        %v6166 = vunpack.c.0.s8 %v6165
        %v6167 = vlaneseq
        %v6168 = vshrl.u32 %v6167, 7
        %v6169 = vsub.s32 %v6166, %v6168
        %v6170 = vrot.slane %v6162, %v6169
        %v6172 = vunpack.c.l.s4 1966171168
        %v6173 = vunpack.c.0.s8 %v6172
        %v6174 = vlaneseq
        %v6175 = vshrl.u32 %v6174, 7
        %v6176 = vsub.s32 %v6173, %v6175
        %v6177 = vrot.slane %v6163, %v6176
        %v6178 = vcombine.low %v6170, %v6177
        %v6179 = vcombine.low %v4609, %v4610
        %v6180 = vcombine.low %v5144, %v4632
        %v6181 = vcombine.low %v4633, %v4634
        %v6182 = vcombine.low %v4649, %v4656
        %v6184 = vunpack.c.l.s4 1966171168
        %v6185 = vunpack.c.0.s8 %v6184
        %v6186 = vlaneseq
        %v6187 = vshrl.u32 %v6186, 7
        %v6188 = vsub.s32 %v6185, %v6187
        %v6189 = vrot.slane %v6179, %v6188
        %v6191 = vunpack.c.l.s4 1966171168
        %v6192 = vunpack.c.0.s8 %v6191
        %v6193 = vlaneseq
        %v6194 = vshrl.u32 %v6193, 7
        %v6195 = vsub.s32 %v6192, %v6194
        %v6196 = vrot.slane %v6180, %v6195
        %v6198 = vunpack.c.l.s4 1966171168
        %v6199 = vunpack.c.0.s8 %v6198
        %v6200 = vlaneseq
        %v6201 = vshrl.u32 %v6200, 7
        %v6202 = vsub.s32 %v6199, %v6201
        %v6203 = vrot.slane %v6181, %v6202
        %v6205 = vunpack.c.l.s4 1966171168
        %v6206 = vunpack.c.0.s8 %v6205
        %v6207 = vlaneseq
        %v6208 = vshrl.u32 %v6207, 7
        %v6209 = vsub.s32 %v6206, %v6208
        %v6210 = vrot.slane %v6182, %v6209
        %v6211 = vcombine.low %v6189, %v6196
        %v6212 = vcombine.low %v6203, %v6210
        %v6214 = vunpack.c.l.s4 1966171168
        %v6215 = vunpack.c.0.s8 %v6214
        %v6216 = vlaneseq
        %v6217 = vshrl.u32 %v6216, 7
        %v6218 = vsub.s32 %v6215, %v6217
        %v6219 = vrot.slane %v6211, %v6218
        %v6221 = vunpack.c.l.s4 1966171168
        %v6222 = vunpack.c.0.s8 %v6221
        %v6223 = vlaneseq
        %v6224 = vshrl.u32 %v6223, 7
        %v6225 = vsub.s32 %v6222, %v6224
        %v6226 = vrot.slane %v6212, %v6225
        %v6227 = vcombine.low %v6219, %v6226
        %v6228 = vcombine.low %v4657, %v5145
        %v6229 = vcombine.low %v4679, %v4680
        %v6230 = vcombine.low %v4681, %v4696
        %v6231 = vcombine.low %v4703, %v4704
        %v6233 = vunpack.c.l.s4 1966171168
        %v6234 = vunpack.c.0.s8 %v6233
        %v6235 = vlaneseq
        %v6236 = vshrl.u32 %v6235, 7
        %v6237 = vsub.s32 %v6234, %v6236
        %v6238 = vrot.slane %v6228, %v6237
        %v6240 = vunpack.c.l.s4 1966171168
        %v6241 = vunpack.c.0.s8 %v6240
        %v6242 = vlaneseq
        %v6243 = vshrl.u32 %v6242, 7
        %v6244 = vsub.s32 %v6241, %v6243
        %v6245 = vrot.slane %v6229, %v6244
        %v6247 = vunpack.c.l.s4 1966171168
        %v6248 = vunpack.c.0.s8 %v6247
        %v6249 = vlaneseq
        %v6250 = vshrl.u32 %v6249, 7
        %v6251 = vsub.s32 %v6248, %v6250
        %v6252 = vrot.slane %v6230, %v6251
        %v6254 = vunpack.c.l.s4 1966171168
        %v6255 = vunpack.c.0.s8 %v6254
        %v6256 = vlaneseq
        %v6257 = vshrl.u32 %v6256, 7
        %v6258 = vsub.s32 %v6255, %v6257
        %v6259 = vrot.slane %v6231, %v6258
        %v6260 = vcombine.low %v6238, %v6245
        %v6261 = vcombine.low %v6252, %v6259
        %v6263 = vunpack.c.l.s4 1966171168
        %v6264 = vunpack.c.0.s8 %v6263
        %v6265 = vlaneseq
        %v6266 = vshrl.u32 %v6265, 7
        %v6267 = vsub.s32 %v6264, %v6266
        %v6268 = vrot.slane %v6260, %v6267
        %v6270 = vunpack.c.l.s4 1966171168
        %v6271 = vunpack.c.0.s8 %v6270
        %v6272 = vlaneseq
        %v6273 = vshrl.u32 %v6272, 7
        %v6274 = vsub.s32 %v6271, %v6273
        %v6275 = vrot.slane %v6261, %v6274
        %v6276 = vcombine.low %v6268, %v6275
        %v6278 = vunpack.c.l.s4 1966171168
        %v6279 = vunpack.c.0.s8 %v6278
        %v6280 = vlaneseq
        %v6281 = vshrl.u32 %v6280, 7
        %v6282 = vsub.s32 %v6279, %v6281
        %v6283 = vrot.slane %v5146, %v6282
        %v6285 = vunpack.c.l.s4 1966171168
        %v6286 = vunpack.c.0.s8 %v6285
        %v6287 = vlaneseq
        %v6288 = vshrl.u32 %v6287, 7
        %v6289 = vsub.s32 %v6286, %v6288
        %v6290 = vrot.slane %v6283, %v6289
        %v6292 = vsel %vm1303, %v6031, 0
        %v6295 = vsel %vm1303, %v6080, 0
        %v6298 = vsel %vm1303, %v6129, 0
        %v6301 = vsel %vm1303, %v6178, 0
        %v6304 = vsel %vm1303, %v6227, 0
        %v6307 = vsel %vm1303, %v6276, 0
        %v6310 = vsel %vm1303, %v6290, 0
        %v6313 = vsel %vm1325, %v5982, 0
        %6315 = vmatprep.subr.bf16.mxu0 0
        %6316 = vmatpush1.bf16.msra.mxu0 0
        %6317 = vmatprep.subr.bf16.mxu0 0
        %6318 = vmatpush1.bf16.msra.mxu0 0
        %6319 = vmatprep.subr.bf16.mxu0 0
        %6320 = vmatpush1.bf16.msra.mxu0 0
        %6321 = vmatprep.subr.bf16.mxu0 0
        %6322 = vmatpush1.bf16.msra.mxu0 0
        %6323 = vmatprep.subr.bf16.mxu0 0
        %6324 = vmatpush1.bf16.msra.mxu0 0
        %6325 = vmatprep.subr.bf16.mxu0 0
        %6326 = vmatpush1.bf16.msra.mxu0 0
        %6327 = vmatprep.subr.bf16.mxu0 0
        %6328 = vmatpush1.bf16.msra.mxu0 0
        %6329 = vmatprep.subr.bf16.mxu0 0
        %6330 = vmatpush1.bf16.msra.mxu0 %v6313
        %6331 = vmatprep.subr.bf16.mxu0 0
        %6332 = vmatpush2.bf16.msra.mxu0 0
        %6333 = vmatprep.subr.bf16.mxu0 0
        %6334 = vmatpush2.bf16.msra.mxu0 0
        %6335 = vmatprep.subr.bf16.mxu0 0
        %6336 = vmatpush2.bf16.msra.mxu0 0
        %6337 = vmatprep.subr.bf16.mxu0 0
        %6338 = vmatpush2.bf16.msra.mxu0 0
        %6339 = vmatprep.subr.bf16.mxu0 0
        %6340 = vmatpush2.bf16.msra.mxu0 0
        %6341 = vmatprep.subr.bf16.mxu0 0
        %6342 = vmatpush2.bf16.msra.mxu0 0
        %6343 = vmatprep.subr.bf16.mxu0 0
        %6344 = vmatpush2.bf16.msra.mxu0 0
        %6345 = vmatprep.subr.bf16.mxu0 0
        %6346 = vmatpush2.bf16.msra.mxu0 0
        %6347 = vmatprep.mubr.bf16.mxu0 0
        %6348 = vmatmul.mubr.bf16.gmra.mxu0 %v6292
        %v6349 = vpop.f32.mrf.mxu0
        %v6350 = vadd.f32 0.0, %v6349
        %v6351 = vpop.f32.mrf.mxu0
        %v6352 = vpop.f32.mrf.mxu0
        %v6353 = vadd.f32 0.0, %v6352
        %v6354 = vpop.f32.mrf.mxu0
        %6355 = vmatprep.mubr.bf16.mxu0 0
        %6356 = vmatmul.mubr.bf16.gmra.mxu0 %v6295
        %v6357 = vpop.f32.mrf.mxu0
        %v6358 = vadd.f32 0.0, %v6357
        %v6359 = vpop.f32.mrf.mxu0
        %v6360 = vpop.f32.mrf.mxu0
        %v6361 = vadd.f32 0.0, %v6360
        %v6362 = vpop.f32.mrf.mxu0
        %6363 = vmatprep.mubr.bf16.mxu0 0
        %6364 = vmatmul.mubr.bf16.gmra.mxu0 %v6298
        %v6365 = vpop.f32.mrf.mxu0
        %v6366 = vadd.f32 0.0, %v6365
        %v6367 = vpop.f32.mrf.mxu0
        %v6368 = vpop.f32.mrf.mxu0
        %v6369 = vadd.f32 0.0, %v6368
        %v6370 = vpop.f32.mrf.mxu0
        %6371 = vmatprep.mubr.bf16.mxu0 0
        %6372 = vmatmul.mubr.bf16.gmra.mxu0 %v6301
        %v6373 = vpop.f32.mrf.mxu0
        %v6374 = vadd.f32 0.0, %v6373
        %v6375 = vpop.f32.mrf.mxu0
        %v6376 = vpop.f32.mrf.mxu0
        %v6377 = vadd.f32 0.0, %v6376
        %v6378 = vpop.f32.mrf.mxu0
        %6379 = vmatprep.mubr.bf16.mxu0 0
        %6380 = vmatmul.mubr.bf16.gmra.mxu0 %v6304
        %v6381 = vpop.f32.mrf.mxu0
        %v6382 = vadd.f32 0.0, %v6381
        %v6383 = vpop.f32.mrf.mxu0
        %v6384 = vpop.f32.mrf.mxu0
        %v6385 = vadd.f32 0.0, %v6384
        %v6386 = vpop.f32.mrf.mxu0
        %6387 = vmatprep.mubr.bf16.mxu0 0
        %6388 = vmatmul.mubr.bf16.gmra.mxu0 %v6307
        %v6389 = vpop.f32.mrf.mxu0
        %v6390 = vadd.f32 0.0, %v6389
        %v6391 = vpop.f32.mrf.mxu0
        %v6392 = vpop.f32.mrf.mxu0
        %v6393 = vadd.f32 0.0, %v6392
        %v6394 = vpop.f32.mrf.mxu0
        %6395 = vmatprep.mubr.bf16.mxu0 0
        %6396 = vmatmul.mubr.bf16.gmra.mxu0 %v6310
        %v6397 = vpop.f32.mrf.mxu0
        %v6398 = vadd.f32 0.0, %v6397
        %v6399 = vpop.f32.mrf.mxu0
        %v6400 = vpop.f32.mrf.mxu0
        %v6401 = vpop.f32.mrf.mxu0
        %6402 = vdwg.mxu0
        %v6403 = vadd.f32 %v5968, %v6350
        %v6404 = vadd.f32 %v5969, %v6353
        %v6405 = vadd.f32 %v5970, %v6358
        %v6406 = vadd.f32 %v5971, %v6361
        %v6407 = vadd.f32 %v5972, %v6366
        %v6408 = vadd.f32 %v5973, %v6369
        %v6409 = vadd.f32 %v5974, %v6374
        %v6410 = vadd.f32 %v5975, %v6377
        %v6411 = vadd.f32 %v5976, %v6382
        %v6412 = vadd.f32 %v5977, %v6385
        %v6413 = vadd.f32 %v5978, %v6390
        %v6414 = vadd.f32 %v5979, %v6393
        %v6415 = vadd.f32 %v5980, %v6398
        %v6429 = vcombine.high %v6403, %v6403
        %v6431 = vunpack.c.l.s4 1983009808
        %v6432 = vunpack.c.0.s8 %v6431
        %v6433 = vlaneseq
        %v6434 = vshrl.u32 %v6433, 7
        %v6435 = vsub.s32 %v6432, %v6434
        %v6436 = vrot.slane %v6403, %v6435
        %v6438 = vunpack.c.l.s4 1983009808
        %v6439 = vunpack.c.0.s8 %v6438
        %v6440 = vlaneseq
        %v6441 = vshrl.u32 %v6440, 7
        %v6442 = vsub.s32 %v6439, %v6441
        %v6443 = vrot.slane %v6429, %v6442
        %v6444 = vcombine.high %v6436, %v6436
        %v6445 = vcombine.high %v6443, %v6443
        %v6446 = vcombine.high %v6404, %v6404
        %v6448 = vunpack.c.l.s4 1983009808
        %v6449 = vunpack.c.0.s8 %v6448
        %v6450 = vlaneseq
        %v6451 = vshrl.u32 %v6450, 7
        %v6452 = vsub.s32 %v6449, %v6451
        %v6453 = vrot.slane %v6404, %v6452
        %v6455 = vunpack.c.l.s4 1983009808
        %v6456 = vunpack.c.0.s8 %v6455
        %v6457 = vlaneseq
        %v6458 = vshrl.u32 %v6457, 7
        %v6459 = vsub.s32 %v6456, %v6458
        %v6460 = vrot.slane %v6446, %v6459
        %v6461 = vcombine.high %v6453, %v6453
        %v6462 = vcombine.high %v6460, %v6460
        %v6463 = vcombine.high %v6405, %v6405
        %v6465 = vunpack.c.l.s4 1983009808
        %v6466 = vunpack.c.0.s8 %v6465
        %v6467 = vlaneseq
        %v6468 = vshrl.u32 %v6467, 7
        %v6469 = vsub.s32 %v6466, %v6468
        %v6470 = vrot.slane %v6405, %v6469
        %v6472 = vunpack.c.l.s4 1983009808
        %v6473 = vunpack.c.0.s8 %v6472
        %v6474 = vlaneseq
        %v6475 = vshrl.u32 %v6474, 7
        %v6476 = vsub.s32 %v6473, %v6475
        %v6477 = vrot.slane %v6463, %v6476
        %v6478 = vcombine.high %v6470, %v6470
        %v6479 = vcombine.high %v6477, %v6477
        %v6480 = vcombine.high %v6406, %v6406
        %v6482 = vunpack.c.l.s4 1983009808
        %v6483 = vunpack.c.0.s8 %v6482
        %v6484 = vlaneseq
        %v6485 = vshrl.u32 %v6484, 7
        %v6486 = vsub.s32 %v6483, %v6485
        %v6487 = vrot.slane %v6406, %v6486
        %v6489 = vunpack.c.l.s4 1983009808
        %v6490 = vunpack.c.0.s8 %v6489
        %v6491 = vlaneseq
        %v6492 = vshrl.u32 %v6491, 7
        %v6493 = vsub.s32 %v6490, %v6492
        %v6494 = vrot.slane %v6480, %v6493
        %v6495 = vcombine.high %v6487, %v6487
        %v6496 = vcombine.high %v6494, %v6494
        %v6497 = vcombine.high %v6407, %v6407
        %v6499 = vunpack.c.l.s4 1983009808
        %v6500 = vunpack.c.0.s8 %v6499
        %v6501 = vlaneseq
        %v6502 = vshrl.u32 %v6501, 7
        %v6503 = vsub.s32 %v6500, %v6502
        %v6504 = vrot.slane %v6407, %v6503
        %v6506 = vunpack.c.l.s4 1983009808
        %v6507 = vunpack.c.0.s8 %v6506
        %v6508 = vlaneseq
        %v6509 = vshrl.u32 %v6508, 7
        %v6510 = vsub.s32 %v6507, %v6509
        %v6511 = vrot.slane %v6497, %v6510
        %v6512 = vcombine.high %v6504, %v6504
        %v6513 = vcombine.high %v6511, %v6511
        %v6514 = vcombine.high %v6408, %v6408
        %v6516 = vunpack.c.l.s4 1983009808
        %v6517 = vunpack.c.0.s8 %v6516
        %v6518 = vlaneseq
        %v6519 = vshrl.u32 %v6518, 7
        %v6520 = vsub.s32 %v6517, %v6519
        %v6521 = vrot.slane %v6408, %v6520
        %v6523 = vunpack.c.l.s4 1983009808
        %v6524 = vunpack.c.0.s8 %v6523
        %v6525 = vlaneseq
        %v6526 = vshrl.u32 %v6525, 7
        %v6527 = vsub.s32 %v6524, %v6526
        %v6528 = vrot.slane %v6514, %v6527
        %v6529 = vcombine.high %v6521, %v6521
        %v6530 = vcombine.high %v6528, %v6528
        %v6531 = vcombine.high %v6409, %v6409
        %v6533 = vunpack.c.l.s4 1983009808
        %v6534 = vunpack.c.0.s8 %v6533
        %v6535 = vlaneseq
        %v6536 = vshrl.u32 %v6535, 7
        %v6537 = vsub.s32 %v6534, %v6536
        %v6538 = vrot.slane %v6409, %v6537
        %v6540 = vunpack.c.l.s4 1983009808
        %v6541 = vunpack.c.0.s8 %v6540
        %v6542 = vlaneseq
        %v6543 = vshrl.u32 %v6542, 7
        %v6544 = vsub.s32 %v6541, %v6543
        %v6545 = vrot.slane %v6531, %v6544
        %v6546 = vcombine.high %v6538, %v6538
        %v6547 = vcombine.high %v6545, %v6545
        %v6548 = vcombine.high %v6410, %v6410
        %v6550 = vunpack.c.l.s4 1983009808
        %v6551 = vunpack.c.0.s8 %v6550
        %v6552 = vlaneseq
        %v6553 = vshrl.u32 %v6552, 7
        %v6554 = vsub.s32 %v6551, %v6553
        %v6555 = vrot.slane %v6410, %v6554
        %v6557 = vunpack.c.l.s4 1983009808
        %v6558 = vunpack.c.0.s8 %v6557
        %v6559 = vlaneseq
        %v6560 = vshrl.u32 %v6559, 7
        %v6561 = vsub.s32 %v6558, %v6560
        %v6562 = vrot.slane %v6548, %v6561
        %v6563 = vcombine.high %v6555, %v6555
        %v6564 = vcombine.high %v6562, %v6562
        %v6565 = vcombine.high %v6411, %v6411
        %v6567 = vunpack.c.l.s4 1983009808
        %v6568 = vunpack.c.0.s8 %v6567
        %v6569 = vlaneseq
        %v6570 = vshrl.u32 %v6569, 7
        %v6571 = vsub.s32 %v6568, %v6570
        %v6572 = vrot.slane %v6411, %v6571
        %v6574 = vunpack.c.l.s4 1983009808
        %v6575 = vunpack.c.0.s8 %v6574
        %v6576 = vlaneseq
        %v6577 = vshrl.u32 %v6576, 7
        %v6578 = vsub.s32 %v6575, %v6577
        %v6579 = vrot.slane %v6565, %v6578
        %v6580 = vcombine.high %v6572, %v6572
        %v6581 = vcombine.high %v6579, %v6579
        %v6582 = vcombine.high %v6412, %v6412
        %v6584 = vunpack.c.l.s4 1983009808
        %v6585 = vunpack.c.0.s8 %v6584
        %v6586 = vlaneseq
        %v6587 = vshrl.u32 %v6586, 7
        %v6588 = vsub.s32 %v6585, %v6587
        %v6589 = vrot.slane %v6412, %v6588
        %v6591 = vunpack.c.l.s4 1983009808
        %v6592 = vunpack.c.0.s8 %v6591
        %v6593 = vlaneseq
        %v6594 = vshrl.u32 %v6593, 7
        %v6595 = vsub.s32 %v6592, %v6594
        %v6596 = vrot.slane %v6582, %v6595
        %v6597 = vcombine.high %v6589, %v6589
        %v6598 = vcombine.high %v6596, %v6596
        %v6599 = vcombine.high %v6413, %v6413
        %v6601 = vunpack.c.l.s4 1983009808
        %v6602 = vunpack.c.0.s8 %v6601
        %v6603 = vlaneseq
        %v6604 = vshrl.u32 %v6603, 7
        %v6605 = vsub.s32 %v6602, %v6604
        %v6606 = vrot.slane %v6413, %v6605
        %v6608 = vunpack.c.l.s4 1983009808
        %v6609 = vunpack.c.0.s8 %v6608
        %v6610 = vlaneseq
        %v6611 = vshrl.u32 %v6610, 7
        %v6612 = vsub.s32 %v6609, %v6611
        %v6613 = vrot.slane %v6599, %v6612
        %v6614 = vcombine.high %v6606, %v6606
        %v6615 = vcombine.high %v6613, %v6613
        %v6616 = vcombine.high %v6414, %v6414
        %v6618 = vunpack.c.l.s4 1983009808
        %v6619 = vunpack.c.0.s8 %v6618
        %v6620 = vlaneseq
        %v6621 = vshrl.u32 %v6620, 7
        %v6622 = vsub.s32 %v6619, %v6621
        %v6623 = vrot.slane %v6414, %v6622
        %v6625 = vunpack.c.l.s4 1983009808
        %v6626 = vunpack.c.0.s8 %v6625
        %v6627 = vlaneseq
        %v6628 = vshrl.u32 %v6627, 7
        %v6629 = vsub.s32 %v6626, %v6628
        %v6630 = vrot.slane %v6616, %v6629
        %v6631 = vcombine.high %v6623, %v6623
        %v6632 = vcombine.high %v6630, %v6630
        %v6634 = vunpack.c.l.s4 1983009808
        %v6635 = vunpack.c.0.s8 %v6634
        %v6636 = vlaneseq
        %v6637 = vshrl.u32 %v6636, 7
        %v6638 = vsub.s32 %v6635, %v6637
        %v6639 = vrot.slane %v6415, %v6638
        %v6640 = vcombine.low %v6436, %v6444
        %v6641 = vcombine.low %v6443, %v6445
        %v6643 = vunpack.c.l.s4 1983009808
        %v6644 = vunpack.c.0.s8 %v6643
        %v6645 = vlaneseq
        %v6646 = vshrl.u32 %v6645, 7
        %v6647 = vsub.s32 %v6644, %v6646
        %v6648 = vrot.slane %v6640, %v6647
        %v6650 = vunpack.c.l.s4 1983009808
        %v6651 = vunpack.c.0.s8 %v6650
        %v6652 = vlaneseq
        %v6653 = vshrl.u32 %v6652, 7
        %v6654 = vsub.s32 %v6651, %v6653
        %v6655 = vrot.slane %v6641, %v6654
        %v6656 = vcombine.low %v6648, %v6655
        %v6657 = vcombine.low %v6453, %v6461
        %v6659 = vunpack.c.l.s4 1983009808
        %v6660 = vunpack.c.0.s8 %v6659
        %v6661 = vlaneseq
        %v6662 = vshrl.u32 %v6661, 7
        %v6663 = vsub.s32 %v6660, %v6662
        %v6664 = vrot.slane %v6657, %v6663
        %v6666 = vunpack.c.l.s4 1983009808
        %v6667 = vunpack.c.0.s8 %v6666
        %v6668 = vlaneseq
        %v6669 = vshrl.u32 %v6668, 7
        %v6670 = vsub.s32 %v6667, %v6669
        %v6671 = vrot.slane %v6460, %v6670
        %v6672 = vcombine.low %v6664, %v6671
        %v6673 = vcombine.low %v6462, %v6470
        %v6674 = vcombine.low %v6478, %v6477
        %v6676 = vunpack.c.l.s4 1983009808
        %v6677 = vunpack.c.0.s8 %v6676
        %v6678 = vlaneseq
        %v6679 = vshrl.u32 %v6678, 7
        %v6680 = vsub.s32 %v6677, %v6679
        %v6681 = vrot.slane %v6673, %v6680
        %v6683 = vunpack.c.l.s4 1983009808
        %v6684 = vunpack.c.0.s8 %v6683
        %v6685 = vlaneseq
        %v6686 = vshrl.u32 %v6685, 7
        %v6687 = vsub.s32 %v6684, %v6686
        %v6688 = vrot.slane %v6674, %v6687
        %v6689 = vcombine.low %v6681, %v6688
        %v6690 = vcombine.low %v6479, %v6487
        %v6692 = vunpack.c.l.s4 1983009808
        %v6693 = vunpack.c.0.s8 %v6692
        %v6694 = vlaneseq
        %v6695 = vshrl.u32 %v6694, 7
        %v6696 = vsub.s32 %v6693, %v6695
        %v6697 = vrot.slane %v6690, %v6696
        %v6699 = vunpack.c.l.s4 1983009808
        %v6700 = vunpack.c.0.s8 %v6699
        %v6701 = vlaneseq
        %v6702 = vshrl.u32 %v6701, 7
        %v6703 = vsub.s32 %v6700, %v6702
        %v6704 = vrot.slane %v6495, %v6703
        %v6705 = vcombine.low %v6697, %v6704
        %v6706 = vcombine.low %v6494, %v6496
        %v6707 = vcombine.low %v6504, %v6512
        %v6709 = vunpack.c.l.s4 1983009808
        %v6710 = vunpack.c.0.s8 %v6709
        %v6711 = vlaneseq
        %v6712 = vshrl.u32 %v6711, 7
        %v6713 = vsub.s32 %v6710, %v6712
        %v6714 = vrot.slane %v6706, %v6713
        %v6716 = vunpack.c.l.s4 1983009808
        %v6717 = vunpack.c.0.s8 %v6716
        %v6718 = vlaneseq
        %v6719 = vshrl.u32 %v6718, 7
        %v6720 = vsub.s32 %v6717, %v6719
        %v6721 = vrot.slane %v6707, %v6720
        %v6722 = vcombine.low %v6714, %v6721
        %v6723 = vcombine.low %v6511, %v6513
        %v6725 = vunpack.c.l.s4 1983009808
        %v6726 = vunpack.c.0.s8 %v6725
        %v6727 = vlaneseq
        %v6728 = vshrl.u32 %v6727, 7
        %v6729 = vsub.s32 %v6726, %v6728
        %v6730 = vrot.slane %v6723, %v6729
        %v6732 = vunpack.c.l.s4 1983009808
        %v6733 = vunpack.c.0.s8 %v6732
        %v6734 = vlaneseq
        %v6735 = vshrl.u32 %v6734, 7
        %v6736 = vsub.s32 %v6733, %v6735
        %v6737 = vrot.slane %v6521, %v6736
        %v6738 = vcombine.low %v6730, %v6737
        %v6739 = vcombine.low %v6529, %v6528
        %v6740 = vcombine.low %v6530, %v6538
        %v6742 = vunpack.c.l.s4 1983009808
        %v6743 = vunpack.c.0.s8 %v6742
        %v6744 = vlaneseq
        %v6745 = vshrl.u32 %v6744, 7
        %v6746 = vsub.s32 %v6743, %v6745
        %v6747 = vrot.slane %v6739, %v6746
        %v6749 = vunpack.c.l.s4 1983009808
        %v6750 = vunpack.c.0.s8 %v6749
        %v6751 = vlaneseq
        %v6752 = vshrl.u32 %v6751, 7
        %v6753 = vsub.s32 %v6750, %v6752
        %v6754 = vrot.slane %v6740, %v6753
        %v6755 = vcombine.low %v6747, %v6754
        %v6756 = vcombine.low %v6546, %v6545
        %v6758 = vunpack.c.l.s4 1983009808
        %v6759 = vunpack.c.0.s8 %v6758
        %v6760 = vlaneseq
        %v6761 = vshrl.u32 %v6760, 7
        %v6762 = vsub.s32 %v6759, %v6761
        %v6763 = vrot.slane %v6756, %v6762
        %v6765 = vunpack.c.l.s4 1983009808
        %v6766 = vunpack.c.0.s8 %v6765
        %v6767 = vlaneseq
        %v6768 = vshrl.u32 %v6767, 7
        %v6769 = vsub.s32 %v6766, %v6768
        %v6770 = vrot.slane %v6547, %v6769
        %v6771 = vcombine.low %v6763, %v6770
        %v6772 = vcombine.low %v6555, %v6563
        %v6773 = vcombine.low %v6562, %v6564
        %v6775 = vunpack.c.l.s4 1983009808
        %v6776 = vunpack.c.0.s8 %v6775
        %v6777 = vlaneseq
        %v6778 = vshrl.u32 %v6777, 7
        %v6779 = vsub.s32 %v6776, %v6778
        %v6780 = vrot.slane %v6772, %v6779
        %v6782 = vunpack.c.l.s4 1983009808
        %v6783 = vunpack.c.0.s8 %v6782
        %v6784 = vlaneseq
        %v6785 = vshrl.u32 %v6784, 7
        %v6786 = vsub.s32 %v6783, %v6785
        %v6787 = vrot.slane %v6773, %v6786
        %v6788 = vcombine.low %v6780, %v6787
        %v6789 = vcombine.low %v6572, %v6580
        %v6791 = vunpack.c.l.s4 1983009808
        %v6792 = vunpack.c.0.s8 %v6791
        %v6793 = vlaneseq
        %v6794 = vshrl.u32 %v6793, 7
        %v6795 = vsub.s32 %v6792, %v6794
        %v6796 = vrot.slane %v6789, %v6795
        %v6798 = vunpack.c.l.s4 1983009808
        %v6799 = vunpack.c.0.s8 %v6798
        %v6800 = vlaneseq
        %v6801 = vshrl.u32 %v6800, 7
        %v6802 = vsub.s32 %v6799, %v6801
        %v6803 = vrot.slane %v6579, %v6802
        %v6804 = vcombine.low %v6796, %v6803
        %v6805 = vcombine.low %v6581, %v6589
        %v6806 = vcombine.low %v6597, %v6596
        %v6808 = vunpack.c.l.s4 1983009808
        %v6809 = vunpack.c.0.s8 %v6808
        %v6810 = vlaneseq
        %v6811 = vshrl.u32 %v6810, 7
        %v6812 = vsub.s32 %v6809, %v6811
        %v6813 = vrot.slane %v6805, %v6812
        %v6815 = vunpack.c.l.s4 1983009808
        %v6816 = vunpack.c.0.s8 %v6815
        %v6817 = vlaneseq
        %v6818 = vshrl.u32 %v6817, 7
        %v6819 = vsub.s32 %v6816, %v6818
        %v6820 = vrot.slane %v6806, %v6819
        %v6821 = vcombine.low %v6813, %v6820
        %v6822 = vcombine.low %v6598, %v6606
        %v6824 = vunpack.c.l.s4 1983009808
        %v6825 = vunpack.c.0.s8 %v6824
        %v6826 = vlaneseq
        %v6827 = vshrl.u32 %v6826, 7
        %v6828 = vsub.s32 %v6825, %v6827
        %v6829 = vrot.slane %v6822, %v6828
        %v6831 = vunpack.c.l.s4 1983009808
        %v6832 = vunpack.c.0.s8 %v6831
        %v6833 = vlaneseq
        %v6834 = vshrl.u32 %v6833, 7
        %v6835 = vsub.s32 %v6832, %v6834
        %v6836 = vrot.slane %v6614, %v6835
        %v6837 = vcombine.low %v6829, %v6836
        %v6838 = vcombine.low %v6613, %v6615
        %v6839 = vcombine.low %v6623, %v6631
        %v6841 = vunpack.c.l.s4 1983009808
        %v6842 = vunpack.c.0.s8 %v6841
        %v6843 = vlaneseq
        %v6844 = vshrl.u32 %v6843, 7
        %v6845 = vsub.s32 %v6842, %v6844
        %v6846 = vrot.slane %v6838, %v6845
        %v6848 = vunpack.c.l.s4 1983009808
        %v6849 = vunpack.c.0.s8 %v6848
        %v6850 = vlaneseq
        %v6851 = vshrl.u32 %v6850, 7
        %v6852 = vsub.s32 %v6849, %v6851
        %v6853 = vrot.slane %v6839, %v6852
        %v6854 = vcombine.low %v6846, %v6853
        %v6855 = vcombine.low %v6630, %v6632
        %v6857 = vunpack.c.l.s4 1983009808
        %v6858 = vunpack.c.0.s8 %v6857
        %v6859 = vlaneseq
        %v6860 = vshrl.u32 %v6859, 7
        %v6861 = vsub.s32 %v6858, %v6860
        %v6862 = vrot.slane %v6855, %v6861
        %v6864 = vunpack.c.l.s4 1983009808
        %v6865 = vunpack.c.0.s8 %v6864
        %v6866 = vlaneseq
        %v6867 = vshrl.u32 %v6866, 7
        %v6868 = vsub.s32 %v6865, %v6867
        %v6869 = vrot.slane %v6639, %v6868
        %v6870 = vcombine.low %v6862, %v6869
        %v6885 = vpack.c.bf16 %v6672, %v6656
        %v6886 = vpack.c.bf16 %v6705, %v6689
        %v6887 = vpack.c.bf16 %v6738, %v6722
        %v6888 = vpack.c.bf16 %v6771, %v6755
        %v6889 = vpack.c.bf16 %v6804, %v6788
        %v6890 = vpack.c.bf16 %v6837, %v6821
        %v6891 = vpack.c.bf16 %v6870, %v6854
        %v6899 = vunpack.c.l.b16 %v6885
        %v6900 = vunpack.c.h.b16 %v6885
        %v6901 = vunpack.c.l.b16 %v6886
        %v6902 = vunpack.c.h.b16 %v6886
        %v6903 = vunpack.c.l.b16 %v6887
        %v6904 = vunpack.c.h.b16 %v6887
        %v6905 = vunpack.c.l.b16 %v6888
        %v6906 = vunpack.c.h.b16 %v6888
        %v6907 = vunpack.c.l.b16 %v6889
        %v6908 = vunpack.c.h.b16 %v6889
        %v6909 = vunpack.c.l.b16 %v6890
        %v6910 = vunpack.c.h.b16 %v6890
        %v6911 = vunpack.c.l.b16 %v6891
        %v6912 = vunpack.c.h.b16 %v6891
        %v6913 = vpack.c.b16 %v6899, %v6899
        %v6914 = vpack.c.b16 %v6900, %v6900
        %v6915 = vpack.c.b16 %v6901, %v6901
        %v6916 = vpack.c.b16 %v6902, %v6902
        %v6917 = vpack.c.b16 %v6903, %v6903
        %v6918 = vpack.c.b16 %v6904, %v6904
        %v6919 = vpack.c.b16 %v6905, %v6905
        %v6920 = vpack.c.b16 %v6906, %v6906
        %v6921 = vpack.c.b16 %v6907, %v6907
        %v6922 = vpack.c.b16 %v6908, %v6908
        %v6923 = vpack.c.b16 %v6909, %v6909
        %v6924 = vpack.c.b16 %v6910, %v6910
        %v6925 = vpack.c.b16 %v6911, %v6911
        %v6926 = vpack.c.b16 %v6912, %v6912
        %vm6941 = vcmask 257024
        %6942 = vst.msk [vmem:[%s207] sm:$0xf] %vm6941, %v6913
        %vm6943 = vcmask 256000
        %6944 = vst.msk [vmem:[%s207 + $0x4] sm:$0x7] %vm6943, %v6914
        %6945 = vst.msk [vmem:[%s207 + $0x8] sm:$0xf] %vm6941, %v6915
        %6946 = vst.msk [vmem:[%s207 + $0xc] sm:$0x7] %vm6943, %v6916
        %6947 = vst.msk [vmem:[%s207 + $0x10] sm:$0xf] %vm6941, %v6917
        %6948 = vst.msk [vmem:[%s207 + $0x14] sm:$0x7] %vm6943, %v6918
        %6949 = vst.msk [vmem:[%s207 + $0x18] sm:$0xf] %vm6941, %v6919
        %6950 = vst.msk [vmem:[%s207 + $0x1c] sm:$0x7] %vm6943, %v6920
        %6951 = vst.msk [vmem:[%s207 + $0x20] sm:$0xf] %vm6941, %v6921
        %6952 = vst.msk [vmem:[%s207 + $0x24] sm:$0x7] %vm6943, %v6922
        %6953 = vst.msk [vmem:[%s207 + $0x28] sm:$0xf] %vm6941, %v6923
        %6954 = vst.msk [vmem:[%s207 + $0x2c] sm:$0x7] %vm6943, %v6924
        %6955 = vst.msk [vmem:[%s207 + $0x30] sm:$0xf] %vm6941, %v6925
        %6956 = vst.msk [vmem:[%s207 + $0x34] sm:$0x7] %vm6943, %v6926
        %vm6957 = vcmask 261120
        %v6958 = vsel %vm6957, %v6403, 0.0
        %v6959 = vsel %vm6957, %v6404, 0.0
        %v6960 = vadd.f32 %v6958, %v6959
        %v6961 = vsel %vm6957, %v6405, 0.0
        %v6962 = vadd.f32 %v6960, %v6961
        %v6963 = vsel %vm6957, %v6406, 0.0
        %v6964 = vadd.f32 %v6962, %v6963
        %v6965 = vsel %vm6957, %v6407, 0.0
        %v6966 = vadd.f32 %v6964, %v6965
        %v6967 = vsel %vm6957, %v6408, 0.0
        %v6968 = vadd.f32 %v6966, %v6967
        %v6969 = vsel %vm6957, %v6409, 0.0
        %v6970 = vadd.f32 %v6968, %v6969
        %v6971 = vsel %vm6957, %v6410, 0.0
        %v6972 = vadd.f32 %v6970, %v6971
        %v6973 = vsel %vm6957, %v6411, 0.0
        %v6974 = vadd.f32 %v6972, %v6973
        %v6975 = vsel %vm6957, %v6412, 0.0
        %v6976 = vadd.f32 %v6974, %v6975
        %v6977 = vsel %vm6957, %v6413, 0.0
        %v6978 = vadd.f32 %v6976, %v6977
        %v6979 = vsel %vm6957, %v6414, 0.0
        %v6980 = vadd.f32 %v6978, %v6979
        %vm6981 = vcmask 254976
        %v6982 = vsel %vm6981, %v6415, 0.0
        %v6983 = vadd.f32 %v6980, %v6982
        %v6984 = vrot.slane %v6983, 4
        %v6985 = vadd.f32 %v6983, %v6984
        %v6986 = vrot.slane %v6985, 2
        %v6987 = vadd.f32 %v6985, %v6986
        %v6988 = vrot.slane %v6987, 1
        %v6989 = vadd.f32 %v6987, %v6988
        %v6990 = vmul.f32 %v6989, 0.010204081
        %v6991 = vsub.f32 %v6403, %v6990
        %v6992 = vsub.f32 %v6404, %v6990
        %v6993 = vsub.f32 %v6405, %v6990
        %v6994 = vsub.f32 %v6406, %v6990
        %v6995 = vsub.f32 %v6407, %v6990
        %v6996 = vsub.f32 %v6408, %v6990
        %v6997 = vsub.f32 %v6409, %v6990
        %v6998 = vsub.f32 %v6410, %v6990
        %v6999 = vsub.f32 %v6411, %v6990
        %v7000 = vsub.f32 %v6412, %v6990
        %v7001 = vsub.f32 %v6413, %v6990
        %v7002 = vsub.f32 %v6414, %v6990
        %v7003 = vsub.f32 %v6415, %v6990
        %v7004 = vmul.f32 %v6991, %v6991
        %v7005 = vmul.f32 %v6992, %v6992
        %v7006 = vmul.f32 %v6993, %v6993
        %v7007 = vmul.f32 %v6994, %v6994
        %v7008 = vmul.f32 %v6995, %v6995
        %v7009 = vmul.f32 %v6996, %v6996
        %v7010 = vmul.f32 %v6997, %v6997
        %v7011 = vmul.f32 %v6998, %v6998
        %v7012 = vmul.f32 %v6999, %v6999
        %v7013 = vmul.f32 %v7000, %v7000
        %v7014 = vmul.f32 %v7001, %v7001
        %v7015 = vmul.f32 %v7002, %v7002
        %v7016 = vmul.f32 %v7003, %v7003
        %v7017 = vsel %vm6957, %v7004, 0.0
        %v7018 = vsel %vm6957, %v7005, 0.0
        %v7019 = vadd.f32 %v7017, %v7018
        %v7020 = vsel %vm6957, %v7006, 0.0
        %v7021 = vadd.f32 %v7019, %v7020
        %v7022 = vsel %vm6957, %v7007, 0.0
        %v7023 = vadd.f32 %v7021, %v7022
        %v7024 = vsel %vm6957, %v7008, 0.0
        %v7025 = vadd.f32 %v7023, %v7024
        %v7026 = vsel %vm6957, %v7009, 0.0
        %v7027 = vadd.f32 %v7025, %v7026
        %v7028 = vsel %vm6957, %v7010, 0.0
        %v7029 = vadd.f32 %v7027, %v7028
        %v7030 = vsel %vm6957, %v7011, 0.0
        %v7031 = vadd.f32 %v7029, %v7030
        %v7032 = vsel %vm6957, %v7012, 0.0
        %v7033 = vadd.f32 %v7031, %v7032
        %v7034 = vsel %vm6957, %v7013, 0.0
        %v7035 = vadd.f32 %v7033, %v7034
        %v7036 = vsel %vm6957, %v7014, 0.0
        %v7037 = vadd.f32 %v7035, %v7036
        %v7038 = vsel %vm6957, %v7015, 0.0
        %v7039 = vadd.f32 %v7037, %v7038
        %v7040 = vsel %vm6981, %v7016, 0.0
        %v7041 = vadd.f32 %v7039, %v7040
        %v7042 = vrot.slane %v7041, 4
        %v7043 = vadd.f32 %v7041, %v7042
        %v7044 = vrot.slane %v7043, 2
        %v7045 = vadd.f32 %v7043, %v7044
        %v7046 = vrot.slane %v7045, 1
        %v7047 = vadd.f32 %v7045, %v7046
        %vm7048 = vcmask 253952
        %7049 = vst.msk [vmem:[%s192] sm:$0x1] %vm7048, %v6989
        %7050 = vst.msk [vmem:[%s192 + $0x1] sm:$0x1] %vm7048, %v7047
        %s7051 = smul.u32 7, %s23
        %p7052 = scmp.lt.s32.totalorder %s22, 1
        %s7053 = scalar_select %p7052, %s22, 1
        %p7054 = scmp.lt.s32.totalorder %s7051, 13
        %s7055 = scalar_select %p7054, %s7051, 13
        %s7056 = smul.addr %s7055, 2
        %s7057 = smul.addr %s7053, 28
        %s7058 = sadd.s32 %s7056, %s7057
        %s7059 = smul.addr %s7058, 4
        %s7060 = scalar_lea.vmem %s2, %s7059
        %s7061 = sand.u32 %s115, 1
        %s7062 = scalar_lea.sflag [#allocation3], %s7061
        %s7063 = sand.u32 %s115, 1
        %s7064 = smul.addr %s7063, 2
        %s7065 = scalar_lea.vmem [#allocation2], %s7064
        // Predicated region
        $region29: #{tpu_custom_call.1} parent=27 // pred_check
          %p7066 = pneg %p97
        $region30: #{tpu_custom_call.1} parent=27 // pred_check_branch
          %7068 = sbr.rel (%p7066) target = $region32
        $region31: #{tpu_custom_call.1} parent=27 // pred_region
          %s7069 = smul.u32 7, %s23
        $region32: #{tpu_custom_call.1} parent=27 // pred_fallthru
          _
        // Predicated region
        $region33: #{tpu_custom_call.1} parent=27 // pred_check
          %p7070 = pneg %p125
        $region34: #{tpu_custom_call.1} parent=27 // pred_check_branch
          %7072 = sbr.rel (%p7070) target = $region36
        $region35: #{tpu_custom_call.1} parent=27 // pred_region
          %s7074 = ssub.s32 32, 32
          %7075 = vsyncadd %s7062, %s7074
          %s7076 = smul.addr %s22, 2
          %s7077 = sadd.s32 %s23, %s7076
          %s7078 = smul.addr %s7077, 32
          %s7079 = scalar_lea.hbm %s3, %s7078
          %s7081 = sshll.u32 %s7065, 4
          %s7082 = int_to_ptr.vmem [resolvable:$true] %s7081
          %7084 = dma.vmem_to_hbm [thread:$0]  %s7082, 32, %s7079, %s7062
        $region36: #{tpu_custom_call.1} parent=27 // pred_fallthru
          _
      $region28: #{tpu_custom_call.1} parent=5 // pred_fallthru
        _
      %p7085 = scmp.le.s32.totalorder 2, %s13
      // Predicated region
      $region37: #{tpu_custom_call.1} parent=5 // pred_check
        %p7086 = pneg %p7085
      $region38: #{tpu_custom_call.1} parent=5 // pred_check_branch
        %7088 = sbr.rel (%p7086) target = $region40
      $region39: #{tpu_custom_call.1} parent=5 // pred_region
        %s7089 = ssub.s32 %s13, 2
        // Predicated region
        $region41: #{tpu_custom_call.1} parent=39 // pred_check
          %p7090 = pneg %p103
        $region42: #{tpu_custom_call.1} parent=39 // pred_check_branch
          %7092 = sbr.rel (%p7090) target = $region44
        $region43: #{tpu_custom_call.1} parent=39 // pred_region
          %s7093 = smul.u32 7, %s25
          %p7094 = scmp.lt.s32.totalorder %s24, 1
          %s7095 = scalar_select %p7094, %s24, 1
          %p7096 = scmp.lt.s32.totalorder %s7093, 13
          %s7097 = scalar_select %p7096, %s7093, 13
          %s7098 = smul.addr %s7097, 2
          %s7099 = smul.addr %s7095, 28
          %s7100 = sadd.s32 %s7098, %s7099
          %s7101 = smul.addr %s7100, 4
          %s7102 = scalar_lea.vmem %s2, %s7101
        $region44: #{tpu_custom_call.1} parent=39 // pred_fallthru
          _
        // Predicated region
        $region45: #{tpu_custom_call.1} parent=39 // pred_check
          %p7103 = pneg %p131
        $region46: #{tpu_custom_call.1} parent=39 // pred_check_branch
          %7105 = sbr.rel (%p7103) target = $region48
        $region47: #{tpu_custom_call.1} parent=39 // pred_region
          %s7106 = sand.u32 %s116, 1
          %s7107 = scalar_lea.sflag [#allocation3], %s7106
          %s7108 = sand.u32 %s116, 1
          %s7109 = smul.addr %s7108, 2
          %s7110 = scalar_lea.vmem [#allocation2], %s7109
          %7111 = dma.done %s7107, 32
        $region48: #{tpu_custom_call.1} parent=39 // pred_fallthru
          _
      $region40: #{tpu_custom_call.1} parent=5 // pred_fallthru
        _
    $region6: #{tpu_custom_call.1} parent=1 // loop_footer
      %s17 = sadd.s32 1, %s13
    $region7: #{tpu_custom_call.1} parent=1 // loop_footer_branch
      %12 = sbr.rel target = $region3
    $region8: #{tpu_custom_call.1} parent=1 // loop_exit
      _
    %7112 = vsyncpa [#allocation3], 1
    %s7113 = scalar_lea.sflag [#allocation3], 1
    %7114 = vsyncpa %s7113, 1

</llo_original>
